<compile_context>
chip_gen: v7x
topology: tpu7x:2x2x1
jax: 0.10.0
libtpu: 0.0.40
codegen_flags: <defaults>
</compile_context>

<pallas_src>
import functools

import jax
import jax.numpy as jnp
from jax import lax
from jax.experimental import pallas as pl
from jax.experimental.pallas import tpu as pltpu


def _round_up(n, m):
    return (n + m - 1) // m * m


def _fold_bn(bn, eps=1e-5):
    scale = bn["gamma"] / jnp.sqrt(bn["var"] + eps)
    shift = bn["beta"] - bn["mean"] * scale
    return scale.reshape(1, -1), shift.reshape(1, -1)


# ----------------------------- fused Pallas kernel ---------------------------

def _bottleneck_kernel(x_ref, mask_ref, w1_ref, s1_ref, b1_ref,
                       w2_ref, s2_ref, b2_ref, w3_ref, s3_ref, b3_ref,
                       o_ref, *, wp, n_out):
    """One zero-padded image per invocation.

    x_ref   : (Np, Cin)  f32  -- padded image, (h', w') flattened row-major
    mask_ref: (Np, 1)    f32  -- 1.0 on interior pixels, 0.0 on the padding ring
    w1_ref  : (Cin, Cmid)     bf16
    w2_ref  : (9, Cmid, Cmid) bf16  -- tap-major (kh*3 + kw)
    w3_ref  : (Cmid, Cout)    bf16
    s*/b*   : (1, C)     f32  -- folded BN scale / shift
    o_ref   : (Nout, Cout) f32 -- output rows j correspond to padded flat
                                   position j + wp + 1
    """
    x = x_ref[...]                                   # (Np, Cin) f32

    # ---- conv1 (1x1) + bn1 + relu; border rows masked to zero so they act as
    # ---- conv2's zero padding.
    y1 = jnp.dot(x.astype(jnp.bfloat16), w1_ref[...],
                 preferred_element_type=jnp.float32)
    y1 = jnp.maximum(y1 * s1_ref[...] + b1_ref[...], 0.0) * mask_ref[...]

    # ---- conv2 (3x3, pad=1) as 9 shifted matmuls accumulated in f32.
    # Output row j <-> padded flat position j + wp + 1, so tap (kh, kw) reads
    # y1 rows [kh*wp + kw, kh*wp + kw + n_out).  Wrap-around taps hit masked
    # (zero) padding rows, so they contribute nothing.
    cmid = y1.shape[1]
    acc = jnp.zeros((n_out, cmid), jnp.float32)
    for kh in range(3):
        for kw in range(3):
            off = kh * wp + kw
            tap = y1[off:off + n_out, :].astype(jnp.bfloat16)
            acc = acc + jnp.dot(tap, w2_ref[kh * 3 + kw],
                                preferred_element_type=jnp.float32)
    y2 = jnp.maximum(acc * s2_ref[...] + b2_ref[...], 0.0)

    # ---- conv3 (1x1) + bn3 + identity residual + relu (epilogue in f32).
    z = jnp.dot(y2.astype(jnp.bfloat16), w3_ref[...],
                preferred_element_type=jnp.float32)
    z = z * s3_ref[...] + b3_ref[...]
    res = x[wp + 1:wp + 1 + n_out, :]                # identity residual (Cin == Cout)
    o_ref[...] = jnp.maximum(z + res, 0.0).astype(o_ref.dtype)


# ------------------------------ pallas_call wrapper --------------------------

def _vmem_limit_bytes(n_p, n_out, cin, cmid, cout):
    f32, bf16 = 4, 2
    per_step = (
        2 * (n_p * cin * f32 + n_p * f32)                      # x + mask (dbl buf)
        + 2 * n_out * cout * f32                               # out (dbl buf)
        + 2 * (9 * cmid * cmid + cin * cmid + cmid * cout) * bf16   # weights
        + 2 * 6 * max(cmid, cout) * f32                        # scales / shifts
        + n_p * cmid * f32                                     # y1
        + 3 * n_out * max(cmid, cout) * f32                    # acc / y2 / z temps
    )
    return int(min(max(4 * per_step, 32 * 1024 * 1024), 64 * 1024 * 1024))


def bottleneck_forward(x_nchw, params, *, stride=1, eps=1e-5):
    """Bottleneck forward. x_nchw: (B, Cin, H, W) float32 (PyTorch layout)."""
    b, cin, h, w = x_nchw.shape
    w1 = params["w1"]            # (Cin, Cmid)           conv1 1x1
    w2 = params["w2"]            # (3, 3, Cmid, Cmid)    conv2 3x3 (HWIO)
    w3 = params["w3"]            # (Cmid, 4*Cmid)        conv3 1x1
    cmid = w1.shape[1]
    cout = w3.shape[1]

    if stride != 1 or cin != cout:
        raise NotImplementedError(
            "downsample=None requires stride=1 and in_planes == 4*out_planes")

    s1, b1 = _fold_bn(params["bn1"], eps)
    s2, b2 = _fold_bn(params["bn2"], eps)
    s3, b3 = _fold_bn(params["bn3"], eps)

    # Padded, flattened geometry.  Row counts are rounded up to multiples of 8
    # so every block's second-to-last dim satisfies the (8,128) rule.
    wp = w + 2                                    # padded width
    n_out = _round_up(h * wp, 8)                  # output rows per image
    n_p = _round_up(n_out + 2 * wp + 2, 8)        # padded-input rows per image

    # Layout plumbing stays in the wrapper (XLA): NCHW -> NHWC, spatial zero pad,
    # flatten to 2D.  (Kept NCHW at the module boundary for PyTorch parity.)
    x_nhwc = jnp.transpose(x_nchw, (0, 2, 3, 1))
    xp = jnp.pad(x_nhwc, ((0, 0), (1, 1), (1, wp - w - 1), (0, 0)))
    xp = xp.reshape(b, (h + 2) * wp, cin)
    xp = jnp.pad(xp, ((0, 0), (0, n_p - (h + 2) * wp), (0, 0)))
    xp2d = xp.reshape(b * n_p, cin)

    # Interior mask (same for every image): 1.0 where the padded flat position
    # is a real pixel, 0.0 on the padding ring / filler rows.
    p_idx = jnp.arange(n_p, dtype=jnp.int32)
    hh = p_idx // wp
    ww = p_idx % wp
    interior = (hh >= 1) & (hh <= h) & (ww >= 1) & (ww <= w)
    mask = interior.astype(jnp.float32).reshape(n_p, 1)

    # bf16 MXU operands (f32 accumulation / epilogue kept in the kernel).
    w1b = w1.astype(jnp.bfloat16)
    w2b = w2.reshape(9, cmid, cmid).astype(jnp.bfloat16)   # tap-major (kh*3+kw)
    w3b = w3.astype(jnp.bfloat16)

    kernel = functools.partial(_bottleneck_kernel, wp=wp, n_out=n_out)

    flops = 2 * b * (n_p * cin * cmid + n_out * 9 * cmid * cmid
                     + n_out * cmid * cout)
    bytes_accessed = (b * n_p * cin * 4 + n_p * 4
                      + (w1b.size + w2b.size + w3b.size) * 2
                      + 6 * max(cmid, cout) * 4
                      + b * n_out * cout * 4)

    out2d = pl.pallas_call(
        kernel,
        out_shape=jax.ShapeDtypeStruct((b * n_out, cout), x_nchw.dtype),
        grid=(b,),
        in_specs=[
            pl.BlockSpec((n_p, cin), lambda i: (i, 0)),        # padded image
            pl.BlockSpec((n_p, 1), lambda i: (0, 0)),          # border mask
            pl.BlockSpec((cin, cmid), lambda i: (0, 0)),       # w1
            pl.BlockSpec((1, cmid), lambda i: (0, 0)),         # s1
            pl.BlockSpec((1, cmid), lambda i: (0, 0)),         # b1
            pl.BlockSpec((9, cmid, cmid), lambda i: (0, 0, 0)),  # w2 (per tap)
            pl.BlockSpec((1, cmid), lambda i: (0, 0)),         # s2
            pl.BlockSpec((1, cmid), lambda i: (0, 0)),         # b2
            pl.BlockSpec((cmid, cout), lambda i: (0, 0)),      # w3
            pl.BlockSpec((1, cout), lambda i: (0, 0)),         # s3
            pl.BlockSpec((1, cout), lambda i: (0, 0)),         # b3
        ],
        out_specs=pl.BlockSpec((n_out, cout), lambda i: (i, 0)),
        compiler_params=pltpu.CompilerParams(
            dimension_semantics=("parallel",),
            vmem_limit_bytes=_vmem_limit_bytes(n_p, n_out, cin, cmid, cout)),
        cost_estimate=pl.CostEstimate(flops=flops, transcendentals=0,
                                      bytes_accessed=bytes_accessed),
    )(xp2d, mask, w1b, s1, b1, w2b, s2, b2, w3b, s3, b3)

    # Undo the flattened/padded layout: rows j = hh*wp + ww <-> pixel (hh, ww).
    out = out2d.reshape(b, n_out, cout)[:, :h * wp, :]
    out = out.reshape(b, h, wp, cout)[:, :, :w, :]
    return jnp.transpose(out, (0, 3, 1, 2))


# ------------------------------ pure-JAX reference ---------------------------

def bottleneck_reference(x_nchw, params, *, stride=1, eps=1e-5):
    s1, b1 = _fold_bn(params["bn1"], eps)
    s2, b2 = _fold_bn(params["bn2"], eps)
    s3, b3 = _fold_bn(params["bn3"], eps)
    dn = ("NHWC", "HWIO", "NHWC")
    x = jnp.transpose(x_nchw, (0, 2, 3, 1))
    cin = x.shape[-1]
    cmid = params["w1"].shape[1]
    cout = params["w3"].shape[1]

    y = lax.conv_general_dilated(x, params["w1"].reshape(1, 1, cin, cmid),
                                 (1, 1), "VALID", dimension_numbers=dn)
    y = jnp.maximum(y * s1 + b1, 0.0)
    y = lax.conv_general_dilated(y, params["w2"], (stride, stride),
                                 ((1, 1), (1, 1)), dimension_numbers=dn)
    y = jnp.maximum(y * s2 + b2, 0.0)
    y = lax.conv_general_dilated(y, params["w3"].reshape(1, 1, cmid, cout),
                                 (1, 1), "VALID", dimension_numbers=dn)
    y = y * s3 + b3
    y = jnp.maximum(y + x, 0.0)
    return jnp.transpose(y, (0, 3, 1, 2))


# ------------------------------------ main -----------------------------------

if __name__ == "__main__":
    key = jax.random.PRNGKey(0)
    # Small shapes: batch=2, out_planes=4, spatial=16.
    # in_planes = 4*out_planes so the identity residual (downsample=None) is valid.
    B, in_planes, out_planes, H, W = 2, 16, 4, 16, 16
    cout = out_planes * 4

    ks = jax.random.split(key, 8)

    def bn_params(k, c):
        k1, k2, k3, k4 = jax.random.split(k, 4)
        return dict(
            gamma=jax.random.uniform(k1, (c,), jnp.float32, 0.5, 1.5),
            beta=0.1 * jax.random.normal(k2, (c,), jnp.float32),
            mean=0.1 * jax.random.normal(k3, (c,), jnp.float32),
            var=jax.random.uniform(k4, (c,), jnp.float32, 0.5, 1.5),
        )

    params = dict(
        w1=jax.random.normal(ks[0], (in_planes, out_planes), jnp.float32)
        / jnp.sqrt(in_planes),
        w2=jax.random.normal(ks[1], (3, 3, out_planes, out_planes), jnp.float32)
        / jnp.sqrt(9 * out_planes),
        w3=jax.random.normal(ks[2], (out_planes, cout), jnp.float32)
        / jnp.sqrt(out_planes),
        bn1=bn_params(ks[3], out_planes),
        bn2=bn_params(ks[4], out_planes),
        bn3=bn_params(ks[5], cout),
    )

    x = jax.random.normal(ks[6], (B, in_planes, H, W), jnp.float32)

    out = bottleneck_forward(x, params, stride=1)
    jax.block_until_ready(out)

    ref = bottleneck_reference(x, params, stride=1)
    assert out.shape == ref.shape == (B, cout, H, W), (out.shape, ref.shape)
    # bf16 MXU operands (f32 accumulation) -> slightly looser tolerance than a
    # pure-f32 comparison.
    max_err = float(jnp.max(jnp.abs(out - ref)))
    assert jnp.allclose(out, ref, rtol=5e-2, atol=5e-2), max_err

    print("KERNEL_OK")
</pallas_src>

<mosaic_0001>
module attributes {stable_mosaic.version = 11 : i64} {
  func.func @_bottleneck_kernel(%arg0: i32, %arg1: memref<328x16xf32, #tpu.memory_space<vmem>>, %arg2: memref<328x1xf32, #tpu.memory_space<vmem>>, %arg3: memref<16x4xbf16, #tpu.memory_space<vmem>>, %arg4: memref<1x4xf32, #tpu.memory_space<vmem>>, %arg5: memref<1x4xf32, #tpu.memory_space<vmem>>, %arg6: memref<9x4x4xbf16, #tpu.memory_space<vmem>>, %arg7: memref<1x4xf32, #tpu.memory_space<vmem>>, %arg8: memref<1x4xf32, #tpu.memory_space<vmem>>, %arg9: memref<4x16xbf16, #tpu.memory_space<vmem>>, %arg10: memref<1x16xf32, #tpu.memory_space<vmem>>, %arg11: memref<1x16xf32, #tpu.memory_space<vmem>>, %arg12: memref<288x16xf32, #tpu.memory_space<vmem>>) attributes {dimension_semantics = [#tpu.dimension_semantics<parallel>], iteration_bounds = array<i64: 2>, scalar_prefetch = 0 : i64, scratch_operands = 0 : i64, tpu.core_type = #tpu.core_type<tc>, window_params = [{transform_indices = @transform_0, window_bounds = array<i64: 328, 16>}, {pipeline_mode = #tpu.pipeline_mode<synchronous>, transform_indices = @transform_1, window_bounds = array<i64: 328, 1>}, {pipeline_mode = #tpu.pipeline_mode<synchronous>, transform_indices = @transform_2, window_bounds = array<i64: 16, 4>}, {pipeline_mode = #tpu.pipeline_mode<synchronous>, transform_indices = @transform_3, window_bounds = array<i64: 1, 4>}, {pipeline_mode = #tpu.pipeline_mode<synchronous>, transform_indices = @transform_4, window_bounds = array<i64: 1, 4>}, {pipeline_mode = #tpu.pipeline_mode<synchronous>, transform_indices = @transform_5, window_bounds = array<i64: 9, 4, 4>}, {pipeline_mode = #tpu.pipeline_mode<synchronous>, transform_indices = @transform_6, window_bounds = array<i64: 1, 4>}, {pipeline_mode = #tpu.pipeline_mode<synchronous>, transform_indices = @transform_7, window_bounds = array<i64: 1, 4>}, {pipeline_mode = #tpu.pipeline_mode<synchronous>, transform_indices = @transform_8, window_bounds = array<i64: 4, 16>}, {pipeline_mode = #tpu.pipeline_mode<synchronous>, transform_indices = @transform_9, window_bounds = array<i64: 1, 16>}, {pipeline_mode = #tpu.pipeline_mode<synchronous>, transform_indices = @transform_10, window_bounds = array<i64: 1, 16>}, {transform_indices = @transform_11, window_bounds = array<i64: 288, 16>}]} {
    %c0 = arith.constant 0 : index
    %c0_0 = arith.constant 0 : index
    %0 = vector.load %arg1[%c0, %c0_0] : memref<328x16xf32, #tpu.memory_space<vmem>>, vector<328x16xf32>
    %1 = arith.truncf %0 : vector<328x16xf32> to vector<328x16xbf16>
    %c0_1 = arith.constant 0 : index
    %c0_2 = arith.constant 0 : index
    %2 = vector.load %arg3[%c0_1, %c0_2] : memref<16x4xbf16, #tpu.memory_space<vmem>>, vector<16x4xbf16>
    %cst = arith.constant dense<0.000000e+00> : vector<328x4xf32>
    %3 = tpu.matmul %1, %2, %cst {dimension_numbers = #tpu.dot_dimension_numbers<[1], [0], [0], [1], [0, 0, 1, 1], [], []>} : vector<328x16xbf16>, vector<16x4xbf16>, vector<328x4xf32> -> vector<328x4xf32>
    %c0_3 = arith.constant 0 : index
    %c0_4 = arith.constant 0 : index
    %4 = vector.load %arg4[%c0_3, %c0_4] : memref<1x4xf32, #tpu.memory_space<vmem>>, vector<1x4xf32>
    %5 = vector.broadcast %4 : vector<1x4xf32> to vector<328x4xf32>
    %6 = arith.mulf %3, %5 : vector<328x4xf32>
    %c0_5 = arith.constant 0 : index
    %c0_6 = arith.constant 0 : index
    %7 = vector.load %arg5[%c0_5, %c0_6] : memref<1x4xf32, #tpu.memory_space<vmem>>, vector<1x4xf32>
    %8 = vector.broadcast %7 : vector<1x4xf32> to vector<328x4xf32>
    %9 = arith.addf %6, %8 : vector<328x4xf32>
    %cst_7 = arith.constant 0.000000e+00 : f32
    %10 = vector.broadcast %cst_7 : f32 to vector<328x4xf32>
    %11 = arith.maximumf %9, %10 : vector<328x4xf32>
    %c0_8 = arith.constant 0 : index
    %c0_9 = arith.constant 0 : index
    %12 = vector.load %arg2[%c0_8, %c0_9] : memref<328x1xf32, #tpu.memory_space<vmem>>, vector<328x1xf32>
    %13 = vector.broadcast %12 : vector<328x1xf32> to vector<328x4xf32>
    %14 = arith.mulf %11, %13 : vector<328x4xf32>
    %cst_10 = arith.constant 0.000000e+00 : f32
    %15 = vector.broadcast %cst_10 : f32 to vector<288x4xf32>
    %16 = vector.extract_strided_slice %14 {offsets = [0, 0], sizes = [288, 4], strides = [1, 1]} : vector<328x4xf32> to vector<288x4xf32>
    %17 = arith.truncf %16 : vector<288x4xf32> to vector<288x4xbf16>
    %c0_11 = arith.constant 0 : index
    %c0_12 = arith.constant 0 : index
    %c0_13 = arith.constant 0 : index
    %18 = vector.load %arg6[%c0_11, %c0_12, %c0_13] : memref<9x4x4xbf16, #tpu.memory_space<vmem>>, vector<1x4x4xbf16>
    %19 = vector.shape_cast %18 : vector<1x4x4xbf16> to vector<4x4xbf16>
    %cst_14 = arith.constant dense<0.000000e+00> : vector<288x4xf32>
    %20 = tpu.matmul %17, %19, %cst_14 {dimension_numbers = #tpu.dot_dimension_numbers<[1], [0], [0], [1], [0, 0, 1, 1], [], []>} : vector<288x4xbf16>, vector<4x4xbf16>, vector<288x4xf32> -> vector<288x4xf32>
    %21 = arith.addf %15, %20 : vector<288x4xf32>
    %22 = vector.extract_strided_slice %14 {offsets = [1, 0], sizes = [288, 4], strides = [1, 1]} : vector<328x4xf32> to vector<288x4xf32>
    %23 = arith.truncf %22 : vector<288x4xf32> to vector<288x4xbf16>
    %c1 = arith.constant 1 : index
    %c0_15 = arith.constant 0 : index
    %c0_16 = arith.constant 0 : index
    %24 = vector.load %arg6[%c1, %c0_15, %c0_16] : memref<9x4x4xbf16, #tpu.memory_space<vmem>>, vector<1x4x4xbf16>
    %25 = vector.shape_cast %24 : vector<1x4x4xbf16> to vector<4x4xbf16>
    %cst_17 = arith.constant dense<0.000000e+00> : vector<288x4xf32>
    %26 = tpu.matmul %23, %25, %cst_17 {dimension_numbers = #tpu.dot_dimension_numbers<[1], [0], [0], [1], [0, 0, 1, 1], [], []>} : vector<288x4xbf16>, vector<4x4xbf16>, vector<288x4xf32> -> vector<288x4xf32>
    %27 = arith.addf %21, %26 : vector<288x4xf32>
    %28 = vector.extract_strided_slice %14 {offsets = [2, 0], sizes = [288, 4], strides = [1, 1]} : vector<328x4xf32> to vector<288x4xf32>
    %29 = arith.truncf %28 : vector<288x4xf32> to vector<288x4xbf16>
    %c2 = arith.constant 2 : index
    %c0_18 = arith.constant 0 : index
    %c0_19 = arith.constant 0 : index
    %30 = vector.load %arg6[%c2, %c0_18, %c0_19] : memref<9x4x4xbf16, #tpu.memory_space<vmem>>, vector<1x4x4xbf16>
    %31 = vector.shape_cast %30 : vector<1x4x4xbf16> to vector<4x4xbf16>
    %cst_20 = arith.constant dense<0.000000e+00> : vector<288x4xf32>
    %32 = tpu.matmul %29, %31, %cst_20 {dimension_numbers = #tpu.dot_dimension_numbers<[1], [0], [0], [1], [0, 0, 1, 1], [], []>} : vector<288x4xbf16>, vector<4x4xbf16>, vector<288x4xf32> -> vector<288x4xf32>
    %33 = arith.addf %27, %32 : vector<288x4xf32>
    %34 = vector.extract_strided_slice %14 {offsets = [18, 0], sizes = [288, 4], strides = [1, 1]} : vector<328x4xf32> to vector<288x4xf32>
    %35 = arith.truncf %34 : vector<288x4xf32> to vector<288x4xbf16>
    %c3 = arith.constant 3 : index
    %c0_21 = arith.constant 0 : index
    %c0_22 = arith.constant 0 : index
    %36 = vector.load %arg6[%c3, %c0_21, %c0_22] : memref<9x4x4xbf16, #tpu.memory_space<vmem>>, vector<1x4x4xbf16>
    %37 = vector.shape_cast %36 : vector<1x4x4xbf16> to vector<4x4xbf16>
    %cst_23 = arith.constant dense<0.000000e+00> : vector<288x4xf32>
    %38 = tpu.matmul %35, %37, %cst_23 {dimension_numbers = #tpu.dot_dimension_numbers<[1], [0], [0], [1], [0, 0, 1, 1], [], []>} : vector<288x4xbf16>, vector<4x4xbf16>, vector<288x4xf32> -> vector<288x4xf32>
    %39 = arith.addf %33, %38 : vector<288x4xf32>
    %40 = vector.extract_strided_slice %14 {offsets = [19, 0], sizes = [288, 4], strides = [1, 1]} : vector<328x4xf32> to vector<288x4xf32>
    %41 = arith.truncf %40 : vector<288x4xf32> to vector<288x4xbf16>
    %c4 = arith.constant 4 : index
    %c0_24 = arith.constant 0 : index
    %c0_25 = arith.constant 0 : index
    %42 = vector.load %arg6[%c4, %c0_24, %c0_25] : memref<9x4x4xbf16, #tpu.memory_space<vmem>>, vector<1x4x4xbf16>
    %43 = vector.shape_cast %42 : vector<1x4x4xbf16> to vector<4x4xbf16>
    %cst_26 = arith.constant dense<0.000000e+00> : vector<288x4xf32>
    %44 = tpu.matmul %41, %43, %cst_26 {dimension_numbers = #tpu.dot_dimension_numbers<[1], [0], [0], [1], [0, 0, 1, 1], [], []>} : vector<288x4xbf16>, vector<4x4xbf16>, vector<288x4xf32> -> vector<288x4xf32>
    %45 = arith.addf %39, %44 : vector<288x4xf32>
    %46 = vector.extract_strided_slice %14 {offsets = [20, 0], sizes = [288, 4], strides = [1, 1]} : vector<328x4xf32> to vector<288x4xf32>
    %47 = arith.truncf %46 : vector<288x4xf32> to vector<288x4xbf16>
    %c5 = arith.constant 5 : index
    %c0_27 = arith.constant 0 : index
    %c0_28 = arith.constant 0 : index
    %48 = vector.load %arg6[%c5, %c0_27, %c0_28] : memref<9x4x4xbf16, #tpu.memory_space<vmem>>, vector<1x4x4xbf16>
    %49 = vector.shape_cast %48 : vector<1x4x4xbf16> to vector<4x4xbf16>
    %cst_29 = arith.constant dense<0.000000e+00> : vector<288x4xf32>
    %50 = tpu.matmul %47, %49, %cst_29 {dimension_numbers = #tpu.dot_dimension_numbers<[1], [0], [0], [1], [0, 0, 1, 1], [], []>} : vector<288x4xbf16>, vector<4x4xbf16>, vector<288x4xf32> -> vector<288x4xf32>
    %51 = arith.addf %45, %50 : vector<288x4xf32>
    %52 = vector.extract_strided_slice %14 {offsets = [36, 0], sizes = [288, 4], strides = [1, 1]} : vector<328x4xf32> to vector<288x4xf32>
    %53 = arith.truncf %52 : vector<288x4xf32> to vector<288x4xbf16>
    %c6 = arith.constant 6 : index
    %c0_30 = arith.constant 0 : index
    %c0_31 = arith.constant 0 : index
    %54 = vector.load %arg6[%c6, %c0_30, %c0_31] : memref<9x4x4xbf16, #tpu.memory_space<vmem>>, vector<1x4x4xbf16>
    %55 = vector.shape_cast %54 : vector<1x4x4xbf16> to vector<4x4xbf16>
    %cst_32 = arith.constant dense<0.000000e+00> : vector<288x4xf32>
    %56 = tpu.matmul %53, %55, %cst_32 {dimension_numbers = #tpu.dot_dimension_numbers<[1], [0], [0], [1], [0, 0, 1, 1], [], []>} : vector<288x4xbf16>, vector<4x4xbf16>, vector<288x4xf32> -> vector<288x4xf32>
    %57 = arith.addf %51, %56 : vector<288x4xf32>
    %58 = vector.extract_strided_slice %14 {offsets = [37, 0], sizes = [288, 4], strides = [1, 1]} : vector<328x4xf32> to vector<288x4xf32>
    %59 = arith.truncf %58 : vector<288x4xf32> to vector<288x4xbf16>
    %c7 = arith.constant 7 : index
    %c0_33 = arith.constant 0 : index
    %c0_34 = arith.constant 0 : index
    %60 = vector.load %arg6[%c7, %c0_33, %c0_34] : memref<9x4x4xbf16, #tpu.memory_space<vmem>>, vector<1x4x4xbf16>
    %61 = vector.shape_cast %60 : vector<1x4x4xbf16> to vector<4x4xbf16>
    %cst_35 = arith.constant dense<0.000000e+00> : vector<288x4xf32>
    %62 = tpu.matmul %59, %61, %cst_35 {dimension_numbers = #tpu.dot_dimension_numbers<[1], [0], [0], [1], [0, 0, 1, 1], [], []>} : vector<288x4xbf16>, vector<4x4xbf16>, vector<288x4xf32> -> vector<288x4xf32>
    %63 = arith.addf %57, %62 : vector<288x4xf32>
    %64 = vector.extract_strided_slice %14 {offsets = [38, 0], sizes = [288, 4], strides = [1, 1]} : vector<328x4xf32> to vector<288x4xf32>
    %65 = arith.truncf %64 : vector<288x4xf32> to vector<288x4xbf16>
    %c8 = arith.constant 8 : index
    %c0_36 = arith.constant 0 : index
    %c0_37 = arith.constant 0 : index
    %66 = vector.load %arg6[%c8, %c0_36, %c0_37] : memref<9x4x4xbf16, #tpu.memory_space<vmem>>, vector<1x4x4xbf16>
    %67 = vector.shape_cast %66 : vector<1x4x4xbf16> to vector<4x4xbf16>
    %cst_38 = arith.constant dense<0.000000e+00> : vector<288x4xf32>
    %68 = tpu.matmul %65, %67, %cst_38 {dimension_numbers = #tpu.dot_dimension_numbers<[1], [0], [0], [1], [0, 0, 1, 1], [], []>} : vector<288x4xbf16>, vector<4x4xbf16>, vector<288x4xf32> -> vector<288x4xf32>
    %69 = arith.addf %63, %68 : vector<288x4xf32>
    %c0_39 = arith.constant 0 : index
    %c0_40 = arith.constant 0 : index
    %70 = vector.load %arg7[%c0_39, %c0_40] : memref<1x4xf32, #tpu.memory_space<vmem>>, vector<1x4xf32>
    %71 = vector.broadcast %70 : vector<1x4xf32> to vector<288x4xf32>
    %72 = arith.mulf %69, %71 : vector<288x4xf32>
    %c0_41 = arith.constant 0 : index
    %c0_42 = arith.constant 0 : index
    %73 = vector.load %arg8[%c0_41, %c0_42] : memref<1x4xf32, #tpu.memory_space<vmem>>, vector<1x4xf32>
    %74 = vector.broadcast %73 : vector<1x4xf32> to vector<288x4xf32>
    %75 = arith.addf %72, %74 : vector<288x4xf32>
    %cst_43 = arith.constant 0.000000e+00 : f32
    %76 = vector.broadcast %cst_43 : f32 to vector<288x4xf32>
    %77 = arith.maximumf %75, %76 : vector<288x4xf32>
    %78 = arith.truncf %77 : vector<288x4xf32> to vector<288x4xbf16>
    %c0_44 = arith.constant 0 : index
    %c0_45 = arith.constant 0 : index
    %79 = vector.load %arg9[%c0_44, %c0_45] : memref<4x16xbf16, #tpu.memory_space<vmem>>, vector<4x16xbf16>
    %cst_46 = arith.constant dense<0.000000e+00> : vector<288x16xf32>
    %80 = tpu.matmul %78, %79, %cst_46 {dimension_numbers = #tpu.dot_dimension_numbers<[1], [0], [0], [1], [0, 0, 1, 1], [], []>} : vector<288x4xbf16>, vector<4x16xbf16>, vector<288x16xf32> -> vector<288x16xf32>
    %c0_47 = arith.constant 0 : index
    %c0_48 = arith.constant 0 : index
    %81 = vector.load %arg10[%c0_47, %c0_48] : memref<1x16xf32, #tpu.memory_space<vmem>>, vector<1x16xf32>
    %82 = vector.broadcast %81 : vector<1x16xf32> to vector<288x16xf32>
    %83 = arith.mulf %80, %82 : vector<288x16xf32>
    %c0_49 = arith.constant 0 : index
    %c0_50 = arith.constant 0 : index
    %84 = vector.load %arg11[%c0_49, %c0_50] : memref<1x16xf32, #tpu.memory_space<vmem>>, vector<1x16xf32>
    %85 = vector.broadcast %84 : vector<1x16xf32> to vector<288x16xf32>
    %86 = arith.addf %83, %85 : vector<288x16xf32>
    %87 = vector.extract_strided_slice %0 {offsets = [19, 0], sizes = [288, 16], strides = [1, 1]} : vector<328x16xf32> to vector<288x16xf32>
    %88 = arith.addf %86, %87 : vector<288x16xf32>
    %cst_51 = arith.constant 0.000000e+00 : f32
    %89 = vector.broadcast %cst_51 : f32 to vector<288x16xf32>
    %90 = arith.maximumf %88, %89 : vector<288x16xf32>
    %c0_52 = arith.constant 0 : index
    %c0_53 = arith.constant 0 : index
    %91 = vector.load %arg12[%c0_52, %c0_53] : memref<288x16xf32, #tpu.memory_space<vmem>>, vector<288x16xf32>
    tpu.vector_store %arg12[%c0_52, %c0_53], %90 {strides = array<i32>} : memref<288x16xf32, #tpu.memory_space<vmem>>, vector<288x16xf32>,
    return
  }
  func.func @transform_0(%arg0: i32) -> (i32, i32) {
    %c0_i32 = arith.constant 0 : i32
    %c0_i32_0 = arith.constant 0 : i32
    return %arg0, %c0_i32 : i32, i32
  }
  func.func @transform_1(%arg0: i32) -> (i32, i32) {
    %c0_i32 = arith.constant 0 : i32
    %c0_i32_0 = arith.constant 0 : i32
    %c0_i32_1 = arith.constant 0 : i32
    return %c0_i32, %c0_i32_0 : i32, i32
  }
  func.func @transform_2(%arg0: i32) -> (i32, i32) {
    %c0_i32 = arith.constant 0 : i32
    %c0_i32_0 = arith.constant 0 : i32
    %c0_i32_1 = arith.constant 0 : i32
    return %c0_i32, %c0_i32_0 : i32, i32
  }
  func.func @transform_3(%arg0: i32) -> (i32, i32) {
    %c0_i32 = arith.constant 0 : i32
    %c0_i32_0 = arith.constant 0 : i32
    %c0_i32_1 = arith.constant 0 : i32
    return %c0_i32, %c0_i32_0 : i32, i32
  }
  func.func @transform_4(%arg0: i32) -> (i32, i32) {
    %c0_i32 = arith.constant 0 : i32
    %c0_i32_0 = arith.constant 0 : i32
    %c0_i32_1 = arith.constant 0 : i32
    return %c0_i32, %c0_i32_0 : i32, i32
  }
  func.func @transform_5(%arg0: i32) -> (i32, i32, i32) {
    %c0_i32 = arith.constant 0 : i32
    %c0_i32_0 = arith.constant 0 : i32
    %c0_i32_1 = arith.constant 0 : i32
    %c0_i32_2 = arith.constant 0 : i32
    return %c0_i32, %c0_i32_0, %c0_i32_1 : i32, i32, i32
  }
  func.func @transform_6(%arg0: i32) -> (i32, i32) {
    %c0_i32 = arith.constant 0 : i32
    %c0_i32_0 = arith.constant 0 : i32
    %c0_i32_1 = arith.constant 0 : i32
    return %c0_i32, %c0_i32_0 : i32, i32
  }
  func.func @transform_7(%arg0: i32) -> (i32, i32) {
    %c0_i32 = arith.constant 0 : i32
    %c0_i32_0 = arith.constant 0 : i32
    %c0_i32_1 = arith.constant 0 : i32
    return %c0_i32, %c0_i32_0 : i32, i32
  }
  func.func @transform_8(%arg0: i32) -> (i32, i32) {
    %c0_i32 = arith.constant 0 : i32
    %c0_i32_0 = arith.constant 0 : i32
    %c0_i32_1 = arith.constant 0 : i32
    return %c0_i32, %c0_i32_0 : i32, i32
  }
  func.func @transform_9(%arg0: i32) -> (i32, i32) {
    %c0_i32 = arith.constant 0 : i32
    %c0_i32_0 = arith.constant 0 : i32
    %c0_i32_1 = arith.constant 0 : i32
    return %c0_i32, %c0_i32_0 : i32, i32
  }
  func.func @transform_10(%arg0: i32) -> (i32, i32) {
    %c0_i32 = arith.constant 0 : i32
    %c0_i32_0 = arith.constant 0 : i32
    %c0_i32_1 = arith.constant 0 : i32
    return %c0_i32, %c0_i32_0 : i32, i32
  }
  func.func @transform_11(%arg0: i32) -> (i32, i32) {
    %c0_i32 = arith.constant 0 : i32
    %c0_i32_0 = arith.constant 0 : i32
    return %arg0, %c0_i32 : i32, i32
  }
}

</mosaic_0001>

<llo_original>
// kernel: tpu_custom_call.1
$region0: #{tpu_custom_call.1}
  #allocation0 [shape = 'u32[]', space=smem, size = 0x4, offset = 0x4, fixed_abs, tag = 'smem constant byte address 0x4 - core index']
  #allocation1 [shape = 'u32[144,128]{1,0:T(1,128)}', space=vmem, size = 0x12000, scoped, tag = 'internal scratch']
  %s0 = inlined_call_operand.vmem [shape: f32[656,16], index: 0, kind: input, shape index: {}]
  %s1 = inlined_call_operand.vmem [shape: f32[328,1], index: 1, kind: input, shape index: {}]
  %s2 = inlined_call_operand.vmem [shape: bf16[16,4], index: 2, kind: input, shape index: {}]
  %s3 = inlined_call_operand.vmem [shape: f32[1,4], index: 3, kind: input, shape index: {}]
  %s4 = inlined_call_operand.vmem [shape: f32[1,4], index: 4, kind: input, shape index: {}]
  %s5 = inlined_call_operand.vmem [shape: bf16[9,4,4], index: 5, kind: input, shape index: {}]
  %s6 = inlined_call_operand.vmem [shape: f32[1,4], index: 6, kind: input, shape index: {}]
  %s7 = inlined_call_operand.vmem [shape: f32[1,4], index: 7, kind: input, shape index: {}]
  %s8 = inlined_call_operand.vmem [shape: bf16[4,16], index: 8, kind: input, shape index: {}]
  %s9 = inlined_call_operand.vmem [shape: f32[1,16], index: 9, kind: input, shape index: {}]
  %s10 = inlined_call_operand.vmem [shape: f32[1,16], index: 10, kind: input, shape index: {}]
  %s11 = inlined_call_operand.vmem [shape: f32[576,16], index: 11, kind: output, shape index: {}]
  %s12 = sld [smem:[#allocation0]]
  $region77: #{tpu_custom_call.1} parent=0
    _
  %s14 = ssub.s32 1, %s12
  %s15 = scalar_select 0, %s14, %s12
  loop: start=0, step=1, limit=4
  $region2: #{tpu_custom_call.1} parent=0 // loop_pre_header
    _
  $region3: #{tpu_custom_call.1} parent=0 // loop_header
    %s17 = sphi 0, %s21
    %p18 = scmp.ge.s32.totalorder %s17, 4
    %s27 = sphi 0, %s29
    %s30 = sphi 0, %s27
    %s31 = sphi 0, %s30
    %s47 = sphi 0, %s31
    %s51 = sphi 0, %s51
    %s53 = sphi 0, %s51
    %s54 = sphi 0, %s53
    %s68 = sphi 0, %s54
    %s72 = sphi 0, %s72
    %s74 = sphi 0, %s72
    %s75 = sphi 0, %s74
    %s89 = sphi 0, %s75
    %s93 = sphi 0, %s93
    %s95 = sphi 0, %s93
    %s96 = sphi 0, %s95
    %s110 = sphi 0, %s96
    %s114 = sphi 0, %s114
    %s116 = sphi 0, %s114
    %s117 = sphi 0, %s116
    %s131 = sphi 0, %s117
    %s135 = sphi 0, %s135
    %s137 = sphi 0, %s135
    %s138 = sphi 0, %s137
    %s152 = sphi 0, %s138
    %s156 = sphi 0, %s156
    %s158 = sphi 0, %s156
    %s159 = sphi 0, %s158
    %s173 = sphi 0, %s159
    %s177 = sphi 0, %s177
    %s179 = sphi 0, %s177
    %s180 = sphi 0, %s179
    %s194 = sphi 0, %s180
    %s198 = sphi 0, %s198
    %s200 = sphi 0, %s198
    %s201 = sphi 0, %s200
    %s215 = sphi 0, %s201
    %s219 = sphi 0, %s219
    %s221 = sphi 0, %s219
    %s222 = sphi 0, %s221
    %s236 = sphi 0, %s222
    %s240 = sphi 0, %s240
    %s242 = sphi 0, %s240
    %s243 = sphi 0, %s242
    %s257 = sphi 0, %s243
    %s263 = sphi 0, %s265
    %s266 = sphi 0, %s263
    %s267 = sphi 0, %s266
    %s283 = sphi 0, %s267
  $region4: #{tpu_custom_call.1} parent=0 // loop_header_branch
    %20 = sbr.rel (%p18) target = $region8
  $region5: #{tpu_custom_call.1} parent=0 // loop_body
    %s22 = ssub.s32 %s17, 1
    %s23 = ssub.s32 %s17, 2
    %s24 = sadd.s32 %s17, 1
    %s25 = ssub.s32 %s17, %s24
    %p26 = scmp.eq.s32.totalorder %s25, 0
    %s28 = sadd.s32 %s27, 1
    %s29 = scalar_select %p26, %s27, %s28
    %p32 = pneg %p26
    %p33 = scmp.eq.s32.totalorder %s17, 1
    %p34 = por %p32, %p33
    %p35 = scmp.ne.s32.totalorder %s27, %s30
    %p36 = scmp.eq.s32.totalorder %s17, 0
    %p37 = por %p35, %p36
    %p38 = scmp.ne.s32.totalorder %s27, %s30
    %p39 = scmp.eq.s32.totalorder %s22, 1
    %p40 = por %p38, %p39
    %p41 = scmp.ne.s32.totalorder %s30, %s31
    %p42 = scmp.eq.s32.totalorder %s22, 0
    %p43 = por %p41, %p42
    %p44 = scmp.ne.s32.totalorder %s30, %s31
    %p45 = scmp.eq.s32.totalorder %s23, 1
    %p46 = por %p44, %p45
    %p48 = scmp.ne.s32.totalorder %s31, %s47
    %p49 = scmp.eq.s32.totalorder %s23, 0
    %p50 = por %p48, %p49
    %s52 = sadd.s32 %s51, 1
    %p55 = scmp.eq.s32.totalorder %s17, 1
    %p56 = scmp.ne.s32.totalorder %s51, %s53
    %p57 = scmp.eq.s32.totalorder %s17, 0
    %p58 = por %p56, %p57
    %p59 = scmp.ne.s32.totalorder %s51, %s53
    %p60 = scmp.eq.s32.totalorder %s22, 1
    %p61 = por %p59, %p60
    %p62 = scmp.ne.s32.totalorder %s53, %s54
    %p63 = scmp.eq.s32.totalorder %s22, 0
    %p64 = por %p62, %p63
    %p65 = scmp.ne.s32.totalorder %s53, %s54
    %p66 = scmp.eq.s32.totalorder %s23, 1
    %p67 = por %p65, %p66
    %p69 = scmp.ne.s32.totalorder %s54, %s68
    %p70 = scmp.eq.s32.totalorder %s23, 0
    %p71 = por %p69, %p70
    %s73 = sadd.s32 %s72, 1
    %p76 = scmp.eq.s32.totalorder %s17, 1
    %p77 = scmp.ne.s32.totalorder %s72, %s74
    %p78 = scmp.eq.s32.totalorder %s17, 0
    %p79 = por %p77, %p78
    %p80 = scmp.ne.s32.totalorder %s72, %s74
    %p81 = scmp.eq.s32.totalorder %s22, 1
    %p82 = por %p80, %p81
    %p83 = scmp.ne.s32.totalorder %s74, %s75
    %p84 = scmp.eq.s32.totalorder %s22, 0
    %p85 = por %p83, %p84
    %p86 = scmp.ne.s32.totalorder %s74, %s75
    %p87 = scmp.eq.s32.totalorder %s23, 1
    %p88 = por %p86, %p87
    %p90 = scmp.ne.s32.totalorder %s75, %s89
    %p91 = scmp.eq.s32.totalorder %s23, 0
    %p92 = por %p90, %p91
    %s94 = sadd.s32 %s93, 1
    %p97 = scmp.eq.s32.totalorder %s17, 1
    %p98 = scmp.ne.s32.totalorder %s93, %s95
    %p99 = scmp.eq.s32.totalorder %s17, 0
    %p100 = por %p98, %p99
    %p101 = scmp.ne.s32.totalorder %s93, %s95
    %p102 = scmp.eq.s32.totalorder %s22, 1
    %p103 = por %p101, %p102
    %p104 = scmp.ne.s32.totalorder %s95, %s96
    %p105 = scmp.eq.s32.totalorder %s22, 0
    %p106 = por %p104, %p105
    %p107 = scmp.ne.s32.totalorder %s95, %s96
    %p108 = scmp.eq.s32.totalorder %s23, 1
    %p109 = por %p107, %p108
    %p111 = scmp.ne.s32.totalorder %s96, %s110
    %p112 = scmp.eq.s32.totalorder %s23, 0
    %p113 = por %p111, %p112
    %s115 = sadd.s32 %s114, 1
    %p118 = scmp.eq.s32.totalorder %s17, 1
    %p119 = scmp.ne.s32.totalorder %s114, %s116
    %p120 = scmp.eq.s32.totalorder %s17, 0
    %p121 = por %p119, %p120
    %p122 = scmp.ne.s32.totalorder %s114, %s116
    %p123 = scmp.eq.s32.totalorder %s22, 1
    %p124 = por %p122, %p123
    %p125 = scmp.ne.s32.totalorder %s116, %s117
    %p126 = scmp.eq.s32.totalorder %s22, 0
    %p127 = por %p125, %p126
    %p128 = scmp.ne.s32.totalorder %s116, %s117
    %p129 = scmp.eq.s32.totalorder %s23, 1
    %p130 = por %p128, %p129
    %p132 = scmp.ne.s32.totalorder %s117, %s131
    %p133 = scmp.eq.s32.totalorder %s23, 0
    %p134 = por %p132, %p133
    %s136 = sadd.s32 %s135, 1
    %p139 = scmp.eq.s32.totalorder %s17, 1
    %p140 = scmp.ne.s32.totalorder %s135, %s137
    %p141 = scmp.eq.s32.totalorder %s17, 0
    %p142 = por %p140, %p141
    %p143 = scmp.ne.s32.totalorder %s135, %s137
    %p144 = scmp.eq.s32.totalorder %s22, 1
    %p145 = por %p143, %p144
    %p146 = scmp.ne.s32.totalorder %s137, %s138
    %p147 = scmp.eq.s32.totalorder %s22, 0
    %p148 = por %p146, %p147
    %p149 = scmp.ne.s32.totalorder %s137, %s138
    %p150 = scmp.eq.s32.totalorder %s23, 1
    %p151 = por %p149, %p150
    %p153 = scmp.ne.s32.totalorder %s138, %s152
    %p154 = scmp.eq.s32.totalorder %s23, 0
    %p155 = por %p153, %p154
    %s157 = sadd.s32 %s156, 1
    %p160 = scmp.eq.s32.totalorder %s17, 1
    %p161 = scmp.ne.s32.totalorder %s156, %s158
    %p162 = scmp.eq.s32.totalorder %s17, 0
    %p163 = por %p161, %p162
    %p164 = scmp.ne.s32.totalorder %s156, %s158
    %p165 = scmp.eq.s32.totalorder %s22, 1
    %p166 = por %p164, %p165
    %p167 = scmp.ne.s32.totalorder %s158, %s159
    %p168 = scmp.eq.s32.totalorder %s22, 0
    %p169 = por %p167, %p168
    %p170 = scmp.ne.s32.totalorder %s158, %s159
    %p171 = scmp.eq.s32.totalorder %s23, 1
    %p172 = por %p170, %p171
    %p174 = scmp.ne.s32.totalorder %s159, %s173
    %p175 = scmp.eq.s32.totalorder %s23, 0
    %p176 = por %p174, %p175
    %s178 = sadd.s32 %s177, 1
    %p181 = scmp.eq.s32.totalorder %s17, 1
    %p182 = scmp.ne.s32.totalorder %s177, %s179
    %p183 = scmp.eq.s32.totalorder %s17, 0
    %p184 = por %p182, %p183
    %p185 = scmp.ne.s32.totalorder %s177, %s179
    %p186 = scmp.eq.s32.totalorder %s22, 1
    %p187 = por %p185, %p186
    %p188 = scmp.ne.s32.totalorder %s179, %s180
    %p189 = scmp.eq.s32.totalorder %s22, 0
    %p190 = por %p188, %p189
    %p191 = scmp.ne.s32.totalorder %s179, %s180
    %p192 = scmp.eq.s32.totalorder %s23, 1
    %p193 = por %p191, %p192
    %p195 = scmp.ne.s32.totalorder %s180, %s194
    %p196 = scmp.eq.s32.totalorder %s23, 0
    %p197 = por %p195, %p196
    %s199 = sadd.s32 %s198, 1
    %p202 = scmp.eq.s32.totalorder %s17, 1
    %p203 = scmp.ne.s32.totalorder %s198, %s200
    %p204 = scmp.eq.s32.totalorder %s17, 0
    %p205 = por %p203, %p204
    %p206 = scmp.ne.s32.totalorder %s198, %s200
    %p207 = scmp.eq.s32.totalorder %s22, 1
    %p208 = por %p206, %p207
    %p209 = scmp.ne.s32.totalorder %s200, %s201
    %p210 = scmp.eq.s32.totalorder %s22, 0
    %p211 = por %p209, %p210
    %p212 = scmp.ne.s32.totalorder %s200, %s201
    %p213 = scmp.eq.s32.totalorder %s23, 1
    %p214 = por %p212, %p213
    %p216 = scmp.ne.s32.totalorder %s201, %s215
    %p217 = scmp.eq.s32.totalorder %s23, 0
    %p218 = por %p216, %p217
    %s220 = sadd.s32 %s219, 1
    %p223 = scmp.eq.s32.totalorder %s17, 1
    %p224 = scmp.ne.s32.totalorder %s219, %s221
    %p225 = scmp.eq.s32.totalorder %s17, 0
    %p226 = por %p224, %p225
    %p227 = scmp.ne.s32.totalorder %s219, %s221
    %p228 = scmp.eq.s32.totalorder %s22, 1
    %p229 = por %p227, %p228
    %p230 = scmp.ne.s32.totalorder %s221, %s222
    %p231 = scmp.eq.s32.totalorder %s22, 0
    %p232 = por %p230, %p231
    %p233 = scmp.ne.s32.totalorder %s221, %s222
    %p234 = scmp.eq.s32.totalorder %s23, 1
    %p235 = por %p233, %p234
    %p237 = scmp.ne.s32.totalorder %s222, %s236
    %p238 = scmp.eq.s32.totalorder %s23, 0
    %p239 = por %p237, %p238
    %s241 = sadd.s32 %s240, 1
    %p244 = scmp.eq.s32.totalorder %s17, 1
    %p245 = scmp.ne.s32.totalorder %s240, %s242
    %p246 = scmp.eq.s32.totalorder %s17, 0
    %p247 = por %p245, %p246
    %p248 = scmp.ne.s32.totalorder %s240, %s242
    %p249 = scmp.eq.s32.totalorder %s22, 1
    %p250 = por %p248, %p249
    %p251 = scmp.ne.s32.totalorder %s242, %s243
    %p252 = scmp.eq.s32.totalorder %s22, 0
    %p253 = por %p251, %p252
    %p254 = scmp.ne.s32.totalorder %s242, %s243
    %p255 = scmp.eq.s32.totalorder %s23, 1
    %p256 = por %p254, %p255
    %p258 = scmp.ne.s32.totalorder %s243, %s257
    %p259 = scmp.eq.s32.totalorder %s23, 0
    %p260 = por %p258, %p259
    %s261 = ssub.s32 %s17, %s24
    %p262 = scmp.eq.s32.totalorder %s261, 0
    %s264 = sadd.s32 %s263, 1
    %s265 = scalar_select %p262, %s263, %s264
    %p268 = pneg %p262
    %p269 = scmp.eq.s32.totalorder %s17, 1
    %p270 = por %p268, %p269
    %p271 = scmp.ne.s32.totalorder %s263, %s266
    %p272 = scmp.eq.s32.totalorder %s17, 0
    %p273 = por %p271, %p272
    %p274 = scmp.ne.s32.totalorder %s263, %s266
    %p275 = scmp.eq.s32.totalorder %s22, 1
    %p276 = por %p274, %p275
    %p277 = scmp.ne.s32.totalorder %s266, %s267
    %p278 = scmp.eq.s32.totalorder %s22, 0
    %p279 = por %p277, %p278
    %p280 = scmp.ne.s32.totalorder %s266, %s267
    %p281 = scmp.eq.s32.totalorder %s23, 1
    %p282 = por %p280, %p281
    %p284 = scmp.ne.s32.totalorder %s267, %s283
    %p285 = scmp.eq.s32.totalorder %s23, 0
    %p286 = por %p284, %p285
    %p287 = scmp.le.s32.totalorder 1, %s17
    %p288 = scmp.lt.s32.totalorder %s17, 3
    %p289 = pnand %p287, %p288
    %p290 = pneg %p289
    // Predicated region
    $region9: #{tpu_custom_call.1} parent=5 // pred_check
      _
    $region10: #{tpu_custom_call.1} parent=5 // pred_check_branch
      %292 = sbr.rel (%p289) target = $region12
    $region11: #{tpu_custom_call.1} parent=5 // pred_region
      %s293 = ssub.s32 %s17, 1
      // Predicated region
      $region13: #{tpu_custom_call.1} parent=11 // pred_check
        %p294 = pneg %p64
      $region14: #{tpu_custom_call.1} parent=11 // pred_check_branch
        %296 = sbr.rel (%p294) target = $region16
      $region15: #{tpu_custom_call.1} parent=11 // pred_region
        _
      $region16: #{tpu_custom_call.1} parent=11 // pred_fallthru
        _
      // Predicated region
      $region17: #{tpu_custom_call.1} parent=11 // pred_check
        %p297 = pneg %p85
      $region18: #{tpu_custom_call.1} parent=11 // pred_check_branch
        %299 = sbr.rel (%p297) target = $region20
      $region19: #{tpu_custom_call.1} parent=11 // pred_region
        _
      $region20: #{tpu_custom_call.1} parent=11 // pred_fallthru
        _
      // Predicated region
      $region21: #{tpu_custom_call.1} parent=11 // pred_check
        %p300 = pneg %p106
      $region22: #{tpu_custom_call.1} parent=11 // pred_check_branch
        %302 = sbr.rel (%p300) target = $region24
      $region23: #{tpu_custom_call.1} parent=11 // pred_region
        _
      $region24: #{tpu_custom_call.1} parent=11 // pred_fallthru
        _
      // Predicated region
      $region25: #{tpu_custom_call.1} parent=11 // pred_check
        %p303 = pneg %p127
      $region26: #{tpu_custom_call.1} parent=11 // pred_check_branch
        %305 = sbr.rel (%p303) target = $region28
      $region27: #{tpu_custom_call.1} parent=11 // pred_region
        _
      $region28: #{tpu_custom_call.1} parent=11 // pred_fallthru
        _
      // Predicated region
      $region29: #{tpu_custom_call.1} parent=11 // pred_check
        %p306 = pneg %p148
      $region30: #{tpu_custom_call.1} parent=11 // pred_check_branch
        %308 = sbr.rel (%p306) target = $region32
      $region31: #{tpu_custom_call.1} parent=11 // pred_region
        _
      $region32: #{tpu_custom_call.1} parent=11 // pred_fallthru
        _
      // Predicated region
      $region33: #{tpu_custom_call.1} parent=11 // pred_check
        %p309 = pneg %p169
      $region34: #{tpu_custom_call.1} parent=11 // pred_check_branch
        %311 = sbr.rel (%p309) target = $region36
      $region35: #{tpu_custom_call.1} parent=11 // pred_region
        _
      $region36: #{tpu_custom_call.1} parent=11 // pred_fallthru
        _
      // Predicated region
      $region37: #{tpu_custom_call.1} parent=11 // pred_check
        %p312 = pneg %p190
      $region38: #{tpu_custom_call.1} parent=11 // pred_check_branch
        %314 = sbr.rel (%p312) target = $region40
      $region39: #{tpu_custom_call.1} parent=11 // pred_region
        _
      $region40: #{tpu_custom_call.1} parent=11 // pred_fallthru
        _
      // Predicated region
      $region41: #{tpu_custom_call.1} parent=11 // pred_check
        %p315 = pneg %p211
      $region42: #{tpu_custom_call.1} parent=11 // pred_check_branch
        %317 = sbr.rel (%p315) target = $region44
      $region43: #{tpu_custom_call.1} parent=11 // pred_region
        _
      $region44: #{tpu_custom_call.1} parent=11 // pred_fallthru
        _
      // Predicated region
      $region45: #{tpu_custom_call.1} parent=11 // pred_check
        %p318 = pneg %p232
      $region46: #{tpu_custom_call.1} parent=11 // pred_check_branch
        %320 = sbr.rel (%p318) target = $region48
      $region47: #{tpu_custom_call.1} parent=11 // pred_region
        _
      $region48: #{tpu_custom_call.1} parent=11 // pred_fallthru
        _
      // Predicated region
      $region49: #{tpu_custom_call.1} parent=11 // pred_check
        %p321 = pneg %p253
      $region50: #{tpu_custom_call.1} parent=11 // pred_check_branch
        %323 = sbr.rel (%p321) target = $region52
      $region51: #{tpu_custom_call.1} parent=11 // pred_region
        _
      $region52: #{tpu_custom_call.1} parent=11 // pred_fallthru
        _
    $region12: #{tpu_custom_call.1} parent=5 // pred_fallthru
      _
    %p324 = scmp.lt.s32.totalorder %s17, 2
    // Predicated region
    $region53: #{tpu_custom_call.1} parent=5 // pred_check
      %p325 = pneg %p324
    $region54: #{tpu_custom_call.1} parent=5 // pred_check_branch
      %327 = sbr.rel (%p325) target = $region56
    $region55: #{tpu_custom_call.1} parent=5 // pred_region
      // Predicated region
      $region57: #{tpu_custom_call.1} parent=55 // pred_check
        %p328 = pneg %p37
      $region58: #{tpu_custom_call.1} parent=55 // pred_check_branch
        %330 = sbr.rel (%p328) target = $region60
      $region59: #{tpu_custom_call.1} parent=55 // pred_region
        %s331 = smul.u32 41, %s17
        %p332 = scmp.lt.s32.totalorder %s331, 81
        %s333 = scalar_select %p332, %s331, 81
        %s334 = smul.addr %s333, 8
        %s335 = scalar_lea.vmem %s0, %s334
        %s336 = smul.u32 41, %s17
      $region60: #{tpu_custom_call.1} parent=55 // pred_fallthru
        _
    $region56: #{tpu_custom_call.1} parent=5 // pred_fallthru
      _
    %p337 = scmp.le.s32.totalorder 1, %s17
    %p338 = scmp.lt.s32.totalorder %s17, 3
    %p339 = pnand %p337, %p338
    %p340 = pneg %p339
    // Predicated region
    $region61: #{tpu_custom_call.1} parent=5 // pred_check
      _
    $region62: #{tpu_custom_call.1} parent=5 // pred_check_branch
      %342 = sbr.rel (%p339) target = $region64
    $region63: #{tpu_custom_call.1} parent=5 // pred_region
      %s343 = ssub.s32 %s17, 1
      %s344 = smul.u32 41, %s22
      %p345 = scmp.lt.s32.totalorder %s344, 81
      %s346 = scalar_select %p345, %s344, 81
      %s347 = smul.addr %s346, 8
      %s348 = scalar_lea.vmem %s0, %s347
      %p349 = pneg %p43
      %p350 = pneg %p40
      %p351 = pneg %p64
      %p352 = pneg %p61
      %p353 = pneg %p85
      %p354 = pneg %p82
      %p355 = pneg %p106
      %p356 = pneg %p103
      %p357 = pneg %p127
      %p358 = pneg %p124
      %p359 = pneg %p148
      %p360 = pneg %p145
      %p361 = pneg %p169
      %p362 = pneg %p166
      %p363 = pneg %p190
      %p364 = pneg %p187
      %p365 = pneg %p211
      %p366 = pneg %p208
      %p367 = pneg %p232
      %p368 = pneg %p229
      %p369 = pneg %p253
      %p370 = pneg %p250
      %p371 = pneg %p279
      %p372 = pneg %p276
      %s373 = smul.u32 36, %s22
      %p374 = scmp.lt.s32.totalorder %s373, 71
      %s375 = scalar_select %p374, %s373, 71
      %s376 = smul.addr %s375, 8
      %s377 = scalar_lea.vmem %s11, %s376
      %s378 = smul.u32 41, %s22
      %p379 = scmp.lt.s32.totalorder %s378, 81
      %s380 = scalar_select %p379, %s378, 81
      %s381 = smul.addr %s380, 8
      %s382 = scalar_lea.vmem %s0, %s381
      %s383 = smul.u32 41, %s22
      %s384 = smul.u32 36, %s22
      %p385 = scmp.lt.s32.totalorder %s384, 71
      %s386 = scalar_select %p385, %s384, 71
      %s387 = smul.addr %s386, 8
      %s388 = scalar_lea.vmem %s11, %s387
      %s389 = smul.u32 36, %s22
      %v391 = vld [vmem:[%s382] sm:$0xff]
      %v392 = vld [vmem:[%s382 + $0x8] sm:$0xff]
      %v393 = vld [vmem:[%s382 + $0x10] sm:$0xff]
      %v394 = vld [vmem:[%s382 + $0x18] sm:$0xff]
      %v395 = vld [vmem:[%s382 + $0x20] sm:$0xff]
      %v396 = vld [vmem:[%s382 + $0x28] sm:$0xff]
      %v397 = vld [vmem:[%s382 + $0x30] sm:$0xff]
      %v398 = vld [vmem:[%s382 + $0x38] sm:$0xff]
      %v399 = vld [vmem:[%s382 + $0x40] sm:$0xff]
      %v400 = vld [vmem:[%s382 + $0x48] sm:$0xff]
      %v401 = vld [vmem:[%s382 + $0x50] sm:$0xff]
      %v402 = vld [vmem:[%s382 + $0x58] sm:$0xff]
      %v403 = vld [vmem:[%s382 + $0x60] sm:$0xff]
      %v404 = vld [vmem:[%s382 + $0x68] sm:$0xff]
      %v405 = vld [vmem:[%s382 + $0x70] sm:$0xff]
      %v406 = vld [vmem:[%s382 + $0x78] sm:$0xff]
      %v407 = vld [vmem:[%s382 + $0x80] sm:$0xff]
      %v408 = vld [vmem:[%s382 + $0x88] sm:$0xff]
      %v409 = vld [vmem:[%s382 + $0x90] sm:$0xff]
      %v410 = vld [vmem:[%s382 + $0x98] sm:$0xff]
      %v411 = vld [vmem:[%s382 + $0xa0] sm:$0xff]
      %v412 = vld [vmem:[%s382 + $0xa8] sm:$0xff]
      %v413 = vld [vmem:[%s382 + $0xb0] sm:$0xff]
      %v414 = vld [vmem:[%s382 + $0xb8] sm:$0xff]
      %v415 = vld [vmem:[%s382 + $0xc0] sm:$0xff]
      %v416 = vld [vmem:[%s382 + $0xc8] sm:$0xff]
      %v417 = vld [vmem:[%s382 + $0xd0] sm:$0xff]
      %v418 = vld [vmem:[%s382 + $0xd8] sm:$0xff]
      %v419 = vld [vmem:[%s382 + $0xe0] sm:$0xff]
      %v420 = vld [vmem:[%s382 + $0xe8] sm:$0xff]
      %v421 = vld [vmem:[%s382 + $0xf0] sm:$0xff]
      %v422 = vld [vmem:[%s382 + $0xf8] sm:$0xff]
      %v423 = vld [vmem:[%s382 + $0x100] sm:$0xff]
      %v424 = vld [vmem:[%s382 + $0x108] sm:$0xff]
      %v425 = vld [vmem:[%s382 + $0x110] sm:$0xff]
      %v426 = vld [vmem:[%s382 + $0x118] sm:$0xff]
      %v427 = vld [vmem:[%s382 + $0x120] sm:$0xff]
      %v428 = vld [vmem:[%s382 + $0x128] sm:$0xff]
      %v429 = vld [vmem:[%s382 + $0x130] sm:$0xff]
      %v430 = vld [vmem:[%s382 + $0x138] sm:$0xff]
      %v431 = vld [vmem:[%s382 + $0x140] sm:$0xff]
      %v432 = vpack.c.bf16 %v392, %v391
      %v433 = vpack.c.bf16 %v394, %v393
      %v434 = vpack.c.bf16 %v396, %v395
      %v435 = vpack.c.bf16 %v398, %v397
      %v436 = vpack.c.bf16 %v400, %v399
      %v437 = vpack.c.bf16 %v402, %v401
      %v438 = vpack.c.bf16 %v404, %v403
      %v439 = vpack.c.bf16 %v406, %v405
      %v440 = vpack.c.bf16 %v408, %v407
      %v441 = vpack.c.bf16 %v410, %v409
      %v442 = vpack.c.bf16 %v412, %v411
      %v443 = vpack.c.bf16 %v414, %v413
      %v444 = vpack.c.bf16 %v416, %v415
      %v445 = vpack.c.bf16 %v418, %v417
      %v446 = vpack.c.bf16 %v420, %v419
      %v447 = vpack.c.bf16 %v422, %v421
      %v448 = vpack.c.bf16 %v424, %v423
      %v449 = vpack.c.bf16 %v426, %v425
      %v450 = vpack.c.bf16 %v428, %v427
      %v451 = vpack.c.bf16 %v430, %v429
      %v452 = vpack.c.bf16 %v431, %v431
      %v453 = vld [vmem:[%s2] sm:$0xf]
      %v454 = vld [vmem:[%s2 + $0x4] sm:$0xf]
      %v457 = vunpack.c.l.b16 %v453
      %v458 = vunpack.c.l.b16 %v454
      %v459 = vpack.c.b16 %v458, %v457
      %vm461 = vcmask 130048
      %v463 = vsel %vm461, %v432, 0
      %v466 = vsel %vm461, %v433, 0
      %v469 = vsel %vm461, %v434, 0
      %v472 = vsel %vm461, %v435, 0
      %v475 = vsel %vm461, %v436, 0
      %v478 = vsel %vm461, %v437, 0
      %v481 = vsel %vm461, %v438, 0
      %v484 = vsel %vm461, %v439, 0
      %v487 = vsel %vm461, %v440, 0
      %v490 = vsel %vm461, %v441, 0
      %v493 = vsel %vm461, %v442, 0
      %v496 = vsel %vm461, %v443, 0
      %v499 = vsel %vm461, %v444, 0
      %v502 = vsel %vm461, %v445, 0
      %v505 = vsel %vm461, %v446, 0
      %v508 = vsel %vm461, %v447, 0
      %v511 = vsel %vm461, %v448, 0
      %v514 = vsel %vm461, %v449, 0
      %v517 = vsel %vm461, %v450, 0
      %v520 = vsel %vm461, %v451, 0
      %v523 = vsel %vm461, %v452, 0
      %525 = vmatprep.subr.bf16.mxu0 0
      %526 = vmatpush1.bf16.msra.mxu0 %v459
      %527 = vmatprep.subr.bf16.mxu0 0
      %528 = vmatpush1.bf16.msra.mxu0 0
      %529 = vmatprep.subr.bf16.mxu0 0
      %530 = vmatpush1.bf16.msra.mxu0 0
      %531 = vmatprep.subr.bf16.mxu0 0
      %532 = vmatpush1.bf16.msra.mxu0 0
      %533 = vmatprep.subr.bf16.mxu0 0
      %534 = vmatpush1.bf16.msra.mxu0 0
      %535 = vmatprep.subr.bf16.mxu0 0
      %536 = vmatpush1.bf16.msra.mxu0 0
      %537 = vmatprep.subr.bf16.mxu0 0
      %538 = vmatpush1.bf16.msra.mxu0 0
      %539 = vmatprep.subr.bf16.mxu0 0
      %540 = vmatpush1.bf16.msra.mxu0 0
      %541 = vmatprep.subr.bf16.mxu0 0
      %542 = vmatpush1.bf16.msra.mxu0 0
      %543 = vmatprep.subr.bf16.mxu0 0
      %544 = vmatpush1.bf16.msra.mxu0 0
      %545 = vmatprep.subr.bf16.mxu0 0
      %546 = vmatpush1.bf16.msra.mxu0 0
      %547 = vmatprep.subr.bf16.mxu0 0
      %548 = vmatpush1.bf16.msra.mxu0 0
      %549 = vmatprep.subr.bf16.mxu0 0
      %550 = vmatpush1.bf16.msra.mxu0 0
      %551 = vmatprep.subr.bf16.mxu0 0
      %552 = vmatpush1.bf16.msra.mxu0 0
      %553 = vmatprep.subr.bf16.mxu0 0
      %554 = vmatpush1.bf16.msra.mxu0 0
      %555 = vmatprep.subr.bf16.mxu0 0
      %556 = vmatpush1.bf16.msra.mxu0 0
      %557 = vmatprep.mubr.bf16.mxu0 0
      %558 = vmatmul.mubr.bf16.gmra.mrb[0].mxu0 %v463
      %v559 = vpop.f32.mrb[0].mxu0
      %v560 = vadd.f32 0.0, %v559
      %v561 = vpop.f32.mrb[0].mxu0
      %v562 = vpop.f32.mrb[0].mxu0
      %v563 = vadd.f32 0.0, %v562
      %v564 = vpop.f32.mrb[0].mxu0
      %565 = vmatprep.mubr.bf16.mxu0 0
      %566 = vmatmul.mubr.bf16.gmra.mrb[0].mxu0 %v466
      %v567 = vpop.f32.mrb[0].mxu0
      %v568 = vadd.f32 0.0, %v567
      %v569 = vpop.f32.mrb[0].mxu0
      %v570 = vpop.f32.mrb[0].mxu0
      %v571 = vadd.f32 0.0, %v570
      %v572 = vpop.f32.mrb[0].mxu0
      %573 = vmatprep.mubr.bf16.mxu0 0
      %574 = vmatmul.mubr.bf16.gmra.mrb[0].mxu0 %v469
      %v575 = vpop.f32.mrb[0].mxu0
      %v576 = vadd.f32 0.0, %v575
      %v577 = vpop.f32.mrb[0].mxu0
      %v578 = vpop.f32.mrb[0].mxu0
      %v579 = vadd.f32 0.0, %v578
      %v580 = vpop.f32.mrb[0].mxu0
      %581 = vmatprep.mubr.bf16.mxu0 0
      %582 = vmatmul.mubr.bf16.gmra.mrb[0].mxu0 %v472
      %v583 = vpop.f32.mrb[0].mxu0
      %v584 = vadd.f32 0.0, %v583
      %v585 = vpop.f32.mrb[0].mxu0
      %v586 = vpop.f32.mrb[0].mxu0
      %v587 = vadd.f32 0.0, %v586
      %v588 = vpop.f32.mrb[0].mxu0
      %589 = vmatprep.mubr.bf16.mxu0 0
      %590 = vmatmul.mubr.bf16.gmra.mrb[0].mxu0 %v475
      %v591 = vpop.f32.mrb[0].mxu0
      %v592 = vadd.f32 0.0, %v591
      %v593 = vpop.f32.mrb[0].mxu0
      %v594 = vpop.f32.mrb[0].mxu0
      %v595 = vadd.f32 0.0, %v594
      %v596 = vpop.f32.mrb[0].mxu0
      %597 = vmatprep.mubr.bf16.mxu0 0
      %598 = vmatmul.mubr.bf16.gmra.mrb[0].mxu0 %v478
      %v599 = vpop.f32.mrb[0].mxu0
      %v600 = vadd.f32 0.0, %v599
      %v601 = vpop.f32.mrb[0].mxu0
      %v602 = vpop.f32.mrb[0].mxu0
      %v603 = vadd.f32 0.0, %v602
      %v604 = vpop.f32.mrb[0].mxu0
      %605 = vmatprep.mubr.bf16.mxu0 0
      %606 = vmatmul.mubr.bf16.gmra.mrb[0].mxu0 %v481
      %v607 = vpop.f32.mrb[0].mxu0
      %v608 = vadd.f32 0.0, %v607
      %v609 = vpop.f32.mrb[0].mxu0
      %v610 = vpop.f32.mrb[0].mxu0
      %v611 = vadd.f32 0.0, %v610
      %v612 = vpop.f32.mrb[0].mxu0
      %613 = vmatprep.mubr.bf16.mxu0 0
      %614 = vmatmul.mubr.bf16.gmra.mrb[0].mxu0 %v484
      %v615 = vpop.f32.mrb[0].mxu0
      %v616 = vadd.f32 0.0, %v615
      %v617 = vpop.f32.mrb[0].mxu0
      %v618 = vpop.f32.mrb[0].mxu0
      %v619 = vadd.f32 0.0, %v618
      %v620 = vpop.f32.mrb[0].mxu0
      %621 = vmatprep.mubr.bf16.mxu0 0
      %622 = vmatmul.mubr.bf16.gmra.mrb[0].mxu0 %v487
      %v623 = vpop.f32.mrb[0].mxu0
      %v624 = vadd.f32 0.0, %v623
      %v625 = vpop.f32.mrb[0].mxu0
      %v626 = vpop.f32.mrb[0].mxu0
      %v627 = vadd.f32 0.0, %v626
      %v628 = vpop.f32.mrb[0].mxu0
      %629 = vmatprep.mubr.bf16.mxu0 0
      %630 = vmatmul.mubr.bf16.gmra.mrb[0].mxu0 %v490
      %v631 = vpop.f32.mrb[0].mxu0
      %v632 = vadd.f32 0.0, %v631
      %v633 = vpop.f32.mrb[0].mxu0
      %v634 = vpop.f32.mrb[0].mxu0
      %v635 = vadd.f32 0.0, %v634
      %v636 = vpop.f32.mrb[0].mxu0
      %637 = vmatprep.mubr.bf16.mxu0 0
      %638 = vmatmul.mubr.bf16.gmra.mrb[0].mxu0 %v493
      %v639 = vpop.f32.mrb[0].mxu0
      %v640 = vadd.f32 0.0, %v639
      %v641 = vpop.f32.mrb[0].mxu0
      %v642 = vpop.f32.mrb[0].mxu0
      %v643 = vadd.f32 0.0, %v642
      %v644 = vpop.f32.mrb[0].mxu0
      %645 = vmatprep.mubr.bf16.mxu0 0
      %646 = vmatmul.mubr.bf16.gmra.mrb[0].mxu0 %v496
      %v647 = vpop.f32.mrb[0].mxu0
      %v648 = vadd.f32 0.0, %v647
      %v649 = vpop.f32.mrb[0].mxu0
      %v650 = vpop.f32.mrb[0].mxu0
      %v651 = vadd.f32 0.0, %v650
      %v652 = vpop.f32.mrb[0].mxu0
      %653 = vmatprep.mubr.bf16.mxu0 0
      %654 = vmatmul.mubr.bf16.gmra.mrb[0].mxu0 %v499
      %v655 = vpop.f32.mrb[0].mxu0
      %v656 = vadd.f32 0.0, %v655
      %v657 = vpop.f32.mrb[0].mxu0
      %v658 = vpop.f32.mrb[0].mxu0
      %v659 = vadd.f32 0.0, %v658
      %v660 = vpop.f32.mrb[0].mxu0
      %661 = vmatprep.mubr.bf16.mxu0 0
      %662 = vmatmul.mubr.bf16.gmra.mrb[0].mxu0 %v502
      %v663 = vpop.f32.mrb[0].mxu0
      %v664 = vadd.f32 0.0, %v663
      %v665 = vpop.f32.mrb[0].mxu0
      %v666 = vpop.f32.mrb[0].mxu0
      %v667 = vadd.f32 0.0, %v666
      %v668 = vpop.f32.mrb[0].mxu0
      %669 = vmatprep.mubr.bf16.mxu0 0
      %670 = vmatmul.mubr.bf16.gmra.mrb[0].mxu0 %v505
      %v671 = vpop.f32.mrb[0].mxu0
      %v672 = vadd.f32 0.0, %v671
      %v673 = vpop.f32.mrb[0].mxu0
      %v674 = vpop.f32.mrb[0].mxu0
      %v675 = vadd.f32 0.0, %v674
      %v676 = vpop.f32.mrb[0].mxu0
      %677 = vmatprep.mubr.bf16.mxu0 0
      %678 = vmatmul.mubr.bf16.gmra.mrb[0].mxu0 %v508
      %v679 = vpop.f32.mrb[0].mxu0
      %v680 = vadd.f32 0.0, %v679
      %v681 = vpop.f32.mrb[0].mxu0
      %v682 = vpop.f32.mrb[0].mxu0
      %v683 = vadd.f32 0.0, %v682
      %v684 = vpop.f32.mrb[0].mxu0
      %685 = vmatprep.mubr.bf16.mxu0 0
      %686 = vmatmul.mubr.bf16.gmra.mrb[0].mxu0 %v511
      %v687 = vpop.f32.mrb[0].mxu0
      %v688 = vadd.f32 0.0, %v687
      %v689 = vpop.f32.mrb[0].mxu0
      %v690 = vpop.f32.mrb[0].mxu0
      %v691 = vadd.f32 0.0, %v690
      %v692 = vpop.f32.mrb[0].mxu0
      %693 = vmatprep.mubr.bf16.mxu0 0
      %694 = vmatmul.mubr.bf16.gmra.mrb[0].mxu0 %v514
      %v695 = vpop.f32.mrb[0].mxu0
      %v696 = vadd.f32 0.0, %v695
      %v697 = vpop.f32.mrb[0].mxu0
      %v698 = vpop.f32.mrb[0].mxu0
      %v699 = vadd.f32 0.0, %v698
      %v700 = vpop.f32.mrb[0].mxu0
      %701 = vmatprep.mubr.bf16.mxu0 0
      %702 = vmatmul.mubr.bf16.gmra.mrb[0].mxu0 %v517
      %v703 = vpop.f32.mrb[0].mxu0
      %v704 = vadd.f32 0.0, %v703
      %v705 = vpop.f32.mrb[0].mxu0
      %v706 = vpop.f32.mrb[0].mxu0
      %v707 = vadd.f32 0.0, %v706
      %v708 = vpop.f32.mrb[0].mxu0
      %709 = vmatprep.mubr.bf16.mxu0 0
      %710 = vmatmul.mubr.bf16.gmra.mrb[0].mxu0 %v520
      %v711 = vpop.f32.mrb[0].mxu0
      %v712 = vadd.f32 0.0, %v711
      %v713 = vpop.f32.mrb[0].mxu0
      %v714 = vpop.f32.mrb[0].mxu0
      %v715 = vadd.f32 0.0, %v714
      %v716 = vpop.f32.mrb[0].mxu0
      %717 = vmatprep.mubr.bf16.mxu0 0
      %718 = vmatmul.mubr.bf16.gmra.mrb[0].mxu0 %v523
      %v719 = vpop.f32.mrb[0].mxu0
      %v720 = vadd.f32 0.0, %v719
      %v721 = vpop.f32.mrb[0].mxu0
      %v722 = vpop.f32.mrb[0].mxu0
      %v723 = vpop.f32.mrb[0].mxu0
      %724 = vdwg.mxu0
      %v725 = vld [vmem:[%s3] sm:$0x1]
      %v727 = vlaneseq
      %v728 = vshrl.u32 %v727, 7
      %v729 = vsub.s32 0, %v728
      %v730 = vrot.slane %v725, %v729
      %v732 = vmul.f32 %v560, %v730
      %v733 = vmul.f32 %v563, %v730
      %v734 = vmul.f32 %v568, %v730
      %v735 = vmul.f32 %v571, %v730
      %v736 = vmul.f32 %v576, %v730
      %v737 = vmul.f32 %v579, %v730
      %v738 = vmul.f32 %v584, %v730
      %v739 = vmul.f32 %v587, %v730
      %v740 = vmul.f32 %v592, %v730
      %v741 = vmul.f32 %v595, %v730
      %v742 = vmul.f32 %v600, %v730
      %v743 = vmul.f32 %v603, %v730
      %v744 = vmul.f32 %v608, %v730
      %v745 = vmul.f32 %v611, %v730
      %v746 = vmul.f32 %v616, %v730
      %v747 = vmul.f32 %v619, %v730
      %v748 = vmul.f32 %v624, %v730
      %v749 = vmul.f32 %v627, %v730
      %v750 = vmul.f32 %v632, %v730
      %v751 = vmul.f32 %v635, %v730
      %v752 = vmul.f32 %v640, %v730
      %v753 = vmul.f32 %v643, %v730
      %v754 = vmul.f32 %v648, %v730
      %v755 = vmul.f32 %v651, %v730
      %v756 = vmul.f32 %v656, %v730
      %v757 = vmul.f32 %v659, %v730
      %v758 = vmul.f32 %v664, %v730
      %v759 = vmul.f32 %v667, %v730
      %v760 = vmul.f32 %v672, %v730
      %v761 = vmul.f32 %v675, %v730
      %v762 = vmul.f32 %v680, %v730
      %v763 = vmul.f32 %v683, %v730
      %v764 = vmul.f32 %v688, %v730
      %v765 = vmul.f32 %v691, %v730
      %v766 = vmul.f32 %v696, %v730
      %v767 = vmul.f32 %v699, %v730
      %v768 = vmul.f32 %v704, %v730
      %v769 = vmul.f32 %v707, %v730
      %v770 = vmul.f32 %v712, %v730
      %v771 = vmul.f32 %v715, %v730
      %v772 = vmul.f32 %v720, %v730
      %v773 = vld [vmem:[%s4] sm:$0x1]
      %v775 = vlaneseq
      %v776 = vshrl.u32 %v775, 7
      %v777 = vsub.s32 0, %v776
      %v778 = vrot.slane %v773, %v777
      %v780 = vadd.f32 %v732, %v778
      %v781 = vadd.f32 %v733, %v778
      %v782 = vadd.f32 %v734, %v778
      %v783 = vadd.f32 %v735, %v778
      %v784 = vadd.f32 %v736, %v778
      %v785 = vadd.f32 %v737, %v778
      %v786 = vadd.f32 %v738, %v778
      %v787 = vadd.f32 %v739, %v778
      %v788 = vadd.f32 %v740, %v778
      %v789 = vadd.f32 %v741, %v778
      %v790 = vadd.f32 %v742, %v778
      %v791 = vadd.f32 %v743, %v778
      %v792 = vadd.f32 %v744, %v778
      %v793 = vadd.f32 %v745, %v778
      %v794 = vadd.f32 %v746, %v778
      %v795 = vadd.f32 %v747, %v778
      %v796 = vadd.f32 %v748, %v778
      %v797 = vadd.f32 %v749, %v778
      %v798 = vadd.f32 %v750, %v778
      %v799 = vadd.f32 %v751, %v778
      %v800 = vadd.f32 %v752, %v778
      %v801 = vadd.f32 %v753, %v778
      %v802 = vadd.f32 %v754, %v778
      %v803 = vadd.f32 %v755, %v778
      %v804 = vadd.f32 %v756, %v778
      %v805 = vadd.f32 %v757, %v778
      %v806 = vadd.f32 %v758, %v778
      %v807 = vadd.f32 %v759, %v778
      %v808 = vadd.f32 %v760, %v778
      %v809 = vadd.f32 %v761, %v778
      %v810 = vadd.f32 %v762, %v778
      %v811 = vadd.f32 %v763, %v778
      %v812 = vadd.f32 %v764, %v778
      %v813 = vadd.f32 %v765, %v778
      %v814 = vadd.f32 %v766, %v778
      %v815 = vadd.f32 %v767, %v778
      %v816 = vadd.f32 %v768, %v778
      %v817 = vadd.f32 %v769, %v778
      %v818 = vadd.f32 %v770, %v778
      %v819 = vadd.f32 %v771, %v778
      %v820 = vadd.f32 %v772, %v778
      %v821 = vmax.f32 %v780, 0.0
      %v822 = vmax.f32 %v781, 0.0
      %v823 = vmax.f32 %v782, 0.0
      %v824 = vmax.f32 %v783, 0.0
      %v825 = vmax.f32 %v784, 0.0
      %v826 = vmax.f32 %v785, 0.0
      %v827 = vmax.f32 %v786, 0.0
      %v828 = vmax.f32 %v787, 0.0
      %v829 = vmax.f32 %v788, 0.0
      %v830 = vmax.f32 %v789, 0.0
      %v831 = vmax.f32 %v790, 0.0
      %v832 = vmax.f32 %v791, 0.0
      %v833 = vmax.f32 %v792, 0.0
      %v834 = vmax.f32 %v793, 0.0
      %v835 = vmax.f32 %v794, 0.0
      %v836 = vmax.f32 %v795, 0.0
      %v837 = vmax.f32 %v796, 0.0
      %v838 = vmax.f32 %v797, 0.0
      %v839 = vmax.f32 %v798, 0.0
      %v840 = vmax.f32 %v799, 0.0
      %v841 = vmax.f32 %v800, 0.0
      %v842 = vmax.f32 %v801, 0.0
      %v843 = vmax.f32 %v802, 0.0
      %v844 = vmax.f32 %v803, 0.0
      %v845 = vmax.f32 %v804, 0.0
      %v846 = vmax.f32 %v805, 0.0
      %v847 = vmax.f32 %v806, 0.0
      %v848 = vmax.f32 %v807, 0.0
      %v849 = vmax.f32 %v808, 0.0
      %v850 = vmax.f32 %v809, 0.0
      %v851 = vmax.f32 %v810, 0.0
      %v852 = vmax.f32 %v811, 0.0
      %v853 = vmax.f32 %v812, 0.0
      %v854 = vmax.f32 %v813, 0.0
      %v855 = vmax.f32 %v814, 0.0
      %v856 = vmax.f32 %v815, 0.0
      %v857 = vmax.f32 %v816, 0.0
      %v858 = vmax.f32 %v817, 0.0
      %v859 = vmax.f32 %v818, 0.0
      %v860 = vmax.f32 %v819, 0.0
      %v861 = vmax.f32 %v820, 0.0
      %v862 = vld [vmem:[%s1] sm:$0xff]
      %v863 = vld [vmem:[%s1 + $0x8] sm:$0xff]
      %v864 = vld [vmem:[%s1 + $0x10] sm:$0xff]
      %v865 = vld [vmem:[%s1 + $0x18] sm:$0xff]
      %v866 = vld [vmem:[%s1 + $0x20] sm:$0xff]
      %v867 = vld [vmem:[%s1 + $0x28] sm:$0xff]
      %v868 = vld [vmem:[%s1 + $0x30] sm:$0xff]
      %v869 = vld [vmem:[%s1 + $0x38] sm:$0xff]
      %v870 = vld [vmem:[%s1 + $0x40] sm:$0xff]
      %v871 = vld [vmem:[%s1 + $0x48] sm:$0xff]
      %v872 = vld [vmem:[%s1 + $0x50] sm:$0xff]
      %v873 = vld [vmem:[%s1 + $0x58] sm:$0xff]
      %v874 = vld [vmem:[%s1 + $0x60] sm:$0xff]
      %v875 = vld [vmem:[%s1 + $0x68] sm:$0xff]
      %v876 = vld [vmem:[%s1 + $0x70] sm:$0xff]
      %v877 = vld [vmem:[%s1 + $0x78] sm:$0xff]
      %v878 = vld [vmem:[%s1 + $0x80] sm:$0xff]
      %v879 = vld [vmem:[%s1 + $0x88] sm:$0xff]
      %v880 = vld [vmem:[%s1 + $0x90] sm:$0xff]
      %v881 = vld [vmem:[%s1 + $0x98] sm:$0xff]
      %v882 = vld [vmem:[%s1 + $0xa0] sm:$0xff]
      %v883 = vld [vmem:[%s1 + $0xa8] sm:$0xff]
      %v884 = vld [vmem:[%s1 + $0xb0] sm:$0xff]
      %v885 = vld [vmem:[%s1 + $0xb8] sm:$0xff]
      %v886 = vld [vmem:[%s1 + $0xc0] sm:$0xff]
      %v887 = vld [vmem:[%s1 + $0xc8] sm:$0xff]
      %v888 = vld [vmem:[%s1 + $0xd0] sm:$0xff]
      %v889 = vld [vmem:[%s1 + $0xd8] sm:$0xff]
      %v890 = vld [vmem:[%s1 + $0xe0] sm:$0xff]
      %v891 = vld [vmem:[%s1 + $0xe8] sm:$0xff]
      %v892 = vld [vmem:[%s1 + $0xf0] sm:$0xff]
      %v893 = vld [vmem:[%s1 + $0xf8] sm:$0xff]
      %v894 = vld [vmem:[%s1 + $0x100] sm:$0xff]
      %v895 = vld [vmem:[%s1 + $0x108] sm:$0xff]
      %v896 = vld [vmem:[%s1 + $0x110] sm:$0xff]
      %v897 = vld [vmem:[%s1 + $0x118] sm:$0xff]
      %v898 = vld [vmem:[%s1 + $0x120] sm:$0xff]
      %v899 = vld [vmem:[%s1 + $0x128] sm:$0xff]
      %v900 = vld [vmem:[%s1 + $0x130] sm:$0xff]
      %v901 = vld [vmem:[%s1 + $0x138] sm:$0xff]
      %v902 = vld [vmem:[%s1 + $0x140] sm:$0xff]
      %904 = vset.pattern.permute.xlu0 0
      %905 = vperm.xlu0 %904, %v862
      %v906 = vpop.permute.xlu0 %905
      %909 = vset.pattern.permute.xlu0 0
      %910 = vperm.xlu0 %909, %v863
      %v911 = vpop.permute.xlu0 %910
      %914 = vset.pattern.permute.xlu0 0
      %915 = vperm.xlu0 %914, %v864
      %v916 = vpop.permute.xlu0 %915
      %919 = vset.pattern.permute.xlu0 0
      %920 = vperm.xlu0 %919, %v865
      %v921 = vpop.permute.xlu0 %920
      %924 = vset.pattern.permute.xlu0 0
      %925 = vperm.xlu0 %924, %v866
      %v926 = vpop.permute.xlu0 %925
      %929 = vset.pattern.permute.xlu0 0
      %930 = vperm.xlu0 %929, %v867
      %v931 = vpop.permute.xlu0 %930
      %934 = vset.pattern.permute.xlu0 0
      %935 = vperm.xlu0 %934, %v868
      %v936 = vpop.permute.xlu0 %935
      %939 = vset.pattern.permute.xlu0 0
      %940 = vperm.xlu0 %939, %v869
      %v941 = vpop.permute.xlu0 %940
      %944 = vset.pattern.permute.xlu0 0
      %945 = vperm.xlu0 %944, %v870
      %v946 = vpop.permute.xlu0 %945
      %949 = vset.pattern.permute.xlu0 0
      %950 = vperm.xlu0 %949, %v871
      %v951 = vpop.permute.xlu0 %950
      %954 = vset.pattern.permute.xlu0 0
      %955 = vperm.xlu0 %954, %v872
      %v956 = vpop.permute.xlu0 %955
      %959 = vset.pattern.permute.xlu0 0
      %960 = vperm.xlu0 %959, %v873
      %v961 = vpop.permute.xlu0 %960
      %964 = vset.pattern.permute.xlu0 0
      %965 = vperm.xlu0 %964, %v874
      %v966 = vpop.permute.xlu0 %965
      %969 = vset.pattern.permute.xlu0 0
      %970 = vperm.xlu0 %969, %v875
      %v971 = vpop.permute.xlu0 %970
      %974 = vset.pattern.permute.xlu0 0
      %975 = vperm.xlu0 %974, %v876
      %v976 = vpop.permute.xlu0 %975
      %979 = vset.pattern.permute.xlu0 0
      %980 = vperm.xlu0 %979, %v877
      %v981 = vpop.permute.xlu0 %980
      %984 = vset.pattern.permute.xlu0 0
      %985 = vperm.xlu0 %984, %v878
      %v986 = vpop.permute.xlu0 %985
      %989 = vset.pattern.permute.xlu0 0
      %990 = vperm.xlu0 %989, %v879
      %v991 = vpop.permute.xlu0 %990
      %994 = vset.pattern.permute.xlu0 0
      %995 = vperm.xlu0 %994, %v880
      %v996 = vpop.permute.xlu0 %995
      %999 = vset.pattern.permute.xlu0 0
      %1000 = vperm.xlu0 %999, %v881
      %v1001 = vpop.permute.xlu0 %1000
      %1004 = vset.pattern.permute.xlu0 0
      %1005 = vperm.xlu0 %1004, %v882
      %v1006 = vpop.permute.xlu0 %1005
      %1009 = vset.pattern.permute.xlu0 0
      %1010 = vperm.xlu0 %1009, %v883
      %v1011 = vpop.permute.xlu0 %1010
      %1014 = vset.pattern.permute.xlu0 0
      %1015 = vperm.xlu0 %1014, %v884
      %v1016 = vpop.permute.xlu0 %1015
      %1019 = vset.pattern.permute.xlu0 0
      %1020 = vperm.xlu0 %1019, %v885
      %v1021 = vpop.permute.xlu0 %1020
      %1024 = vset.pattern.permute.xlu0 0
      %1025 = vperm.xlu0 %1024, %v886
      %v1026 = vpop.permute.xlu0 %1025
      %1029 = vset.pattern.permute.xlu0 0
      %1030 = vperm.xlu0 %1029, %v887
      %v1031 = vpop.permute.xlu0 %1030
      %1034 = vset.pattern.permute.xlu0 0
      %1035 = vperm.xlu0 %1034, %v888
      %v1036 = vpop.permute.xlu0 %1035
      %1039 = vset.pattern.permute.xlu0 0
      %1040 = vperm.xlu0 %1039, %v889
      %v1041 = vpop.permute.xlu0 %1040
      %1044 = vset.pattern.permute.xlu0 0
      %1045 = vperm.xlu0 %1044, %v890
      %v1046 = vpop.permute.xlu0 %1045
      %1049 = vset.pattern.permute.xlu0 0
      %1050 = vperm.xlu0 %1049, %v891
      %v1051 = vpop.permute.xlu0 %1050
      %1054 = vset.pattern.permute.xlu0 0
      %1055 = vperm.xlu0 %1054, %v892
      %v1056 = vpop.permute.xlu0 %1055
      %1059 = vset.pattern.permute.xlu0 0
      %1060 = vperm.xlu0 %1059, %v893
      %v1061 = vpop.permute.xlu0 %1060
      %1064 = vset.pattern.permute.xlu0 0
      %1065 = vperm.xlu0 %1064, %v894
      %v1066 = vpop.permute.xlu0 %1065
      %1069 = vset.pattern.permute.xlu0 0
      %1070 = vperm.xlu0 %1069, %v895
      %v1071 = vpop.permute.xlu0 %1070
      %1074 = vset.pattern.permute.xlu0 0
      %1075 = vperm.xlu0 %1074, %v896
      %v1076 = vpop.permute.xlu0 %1075
      %1079 = vset.pattern.permute.xlu0 0
      %1080 = vperm.xlu0 %1079, %v897
      %v1081 = vpop.permute.xlu0 %1080
      %1084 = vset.pattern.permute.xlu0 0
      %1085 = vperm.xlu0 %1084, %v898
      %v1086 = vpop.permute.xlu0 %1085
      %1089 = vset.pattern.permute.xlu0 0
      %1090 = vperm.xlu0 %1089, %v899
      %v1091 = vpop.permute.xlu0 %1090
      %1094 = vset.pattern.permute.xlu0 0
      %1095 = vperm.xlu0 %1094, %v900
      %v1096 = vpop.permute.xlu0 %1095
      %1099 = vset.pattern.permute.xlu0 0
      %1100 = vperm.xlu0 %1099, %v901
      %v1101 = vpop.permute.xlu0 %1100
      %1104 = vset.pattern.permute.xlu0 0
      %1105 = vperm.xlu0 %1104, %v902
      %v1106 = vpop.permute.xlu0 %1105
      %v1108 = vmul.f32 %v821, %v906
      %v1109 = vmul.f32 %v822, %v911
      %v1110 = vmul.f32 %v823, %v916
      %v1111 = vmul.f32 %v824, %v921
      %v1112 = vmul.f32 %v825, %v926
      %v1113 = vmul.f32 %v826, %v931
      %v1114 = vmul.f32 %v827, %v936
      %v1115 = vmul.f32 %v828, %v941
      %v1116 = vmul.f32 %v829, %v946
      %v1117 = vmul.f32 %v830, %v951
      %v1118 = vmul.f32 %v831, %v956
      %v1119 = vmul.f32 %v832, %v961
      %v1120 = vmul.f32 %v833, %v966
      %v1121 = vmul.f32 %v834, %v971
      %v1122 = vmul.f32 %v835, %v976
      %v1123 = vmul.f32 %v836, %v981
      %v1124 = vmul.f32 %v837, %v986
      %v1125 = vmul.f32 %v838, %v991
      %v1126 = vmul.f32 %v839, %v996
      %v1127 = vmul.f32 %v840, %v1001
      %v1128 = vmul.f32 %v841, %v1006
      %v1129 = vmul.f32 %v842, %v1011
      %v1130 = vmul.f32 %v843, %v1016
      %v1131 = vmul.f32 %v844, %v1021
      %v1132 = vmul.f32 %v845, %v1026
      %v1133 = vmul.f32 %v846, %v1031
      %v1134 = vmul.f32 %v847, %v1036
      %v1135 = vmul.f32 %v848, %v1041
      %v1136 = vmul.f32 %v849, %v1046
      %v1137 = vmul.f32 %v850, %v1051
      %v1138 = vmul.f32 %v851, %v1056
      %v1139 = vmul.f32 %v852, %v1061
      %v1140 = vmul.f32 %v853, %v1066
      %v1141 = vmul.f32 %v854, %v1071
      %v1142 = vmul.f32 %v855, %v1076
      %v1143 = vmul.f32 %v856, %v1081
      %v1144 = vmul.f32 %v857, %v1086
      %v1145 = vmul.f32 %v858, %v1091
      %v1146 = vmul.f32 %v859, %v1096
      %v1147 = vmul.f32 %v860, %v1101
      %v1148 = vmul.f32 %v861, %v1106
      %v1149 = vpack.c.bf16 %v1109, %v1108
      %v1150 = vpack.c.bf16 %v1111, %v1110
      %v1151 = vpack.c.bf16 %v1113, %v1112
      %v1152 = vpack.c.bf16 %v1115, %v1114
      %v1153 = vpack.c.bf16 %v1117, %v1116
      %v1154 = vpack.c.bf16 %v1119, %v1118
      %v1155 = vpack.c.bf16 %v1121, %v1120
      %v1156 = vpack.c.bf16 %v1123, %v1122
      %v1157 = vpack.c.bf16 %v1125, %v1124
      %v1158 = vpack.c.bf16 %v1127, %v1126
      %v1159 = vpack.c.bf16 %v1129, %v1128
      %v1160 = vpack.c.bf16 %v1131, %v1130
      %v1161 = vpack.c.bf16 %v1133, %v1132
      %v1162 = vpack.c.bf16 %v1135, %v1134
      %v1163 = vpack.c.bf16 %v1137, %v1136
      %v1164 = vpack.c.bf16 %v1139, %v1138
      %v1165 = vpack.c.bf16 %v1141, %v1140
      %v1166 = vpack.c.bf16 %v1143, %v1142
      %v1167 = vld [vmem:[%s5] sm:$0x3]
      %v1168 = vpack.c.bf16 %v1144, %v1144
      %s1169 = scalar_lea.vmem %s5, 2
      %v1170 = vld [vmem:[%s1169] sm:$0x3]
      %vm1171 = vsmask.f32 7424
      %v1173 = vshrl.u32 %v1149, 16
      %v1175 = vshll.u32 %v1149, 16
      %v1177 = vrot.slane %v1175, 1
      %v1178 = vor.u32 %v1173, %v1177
      %v1180 = vshll.u32 %v1150, 16
      %v1182 = vrot.slane %v1180, 1
      %v1183 = vsel %vm1171, %v1178, %v1182
      %v1184 = vshrl.u32 %v1150, 16
      %v1186 = vor.u32 %v1184, %v1182
      %v1188 = vshll.u32 %v1151, 16
      %v1190 = vrot.slane %v1188, 1
      %v1191 = vsel %vm1171, %v1186, %v1190
      %v1192 = vshrl.u32 %v1151, 16
      %v1194 = vor.u32 %v1192, %v1190
      %v1196 = vshll.u32 %v1152, 16
      %v1198 = vrot.slane %v1196, 1
      %v1199 = vsel %vm1171, %v1194, %v1198
      %v1200 = vshrl.u32 %v1152, 16
      %v1202 = vor.u32 %v1200, %v1198
      %v1204 = vshll.u32 %v1153, 16
      %v1206 = vrot.slane %v1204, 1
      %v1207 = vsel %vm1171, %v1202, %v1206
      %v1208 = vshrl.u32 %v1153, 16
      %v1210 = vor.u32 %v1208, %v1206
      %v1212 = vshll.u32 %v1154, 16
      %v1214 = vrot.slane %v1212, 1
      %v1215 = vsel %vm1171, %v1210, %v1214
      %v1216 = vshrl.u32 %v1154, 16
      %v1218 = vor.u32 %v1216, %v1214
      %v1220 = vshll.u32 %v1155, 16
      %v1222 = vrot.slane %v1220, 1
      %v1223 = vsel %vm1171, %v1218, %v1222
      %v1224 = vshrl.u32 %v1155, 16
      %v1226 = vor.u32 %v1224, %v1222
      %v1228 = vshll.u32 %v1156, 16
      %v1230 = vrot.slane %v1228, 1
      %v1231 = vsel %vm1171, %v1226, %v1230
      %v1232 = vshrl.u32 %v1156, 16
      %v1234 = vor.u32 %v1232, %v1230
      %v1236 = vshll.u32 %v1157, 16
      %v1238 = vrot.slane %v1236, 1
      %v1239 = vsel %vm1171, %v1234, %v1238
      %v1240 = vshrl.u32 %v1157, 16
      %v1242 = vor.u32 %v1240, %v1238
      %v1244 = vshll.u32 %v1158, 16
      %v1246 = vrot.slane %v1244, 1
      %v1247 = vsel %vm1171, %v1242, %v1246
      %v1248 = vshrl.u32 %v1158, 16
      %v1250 = vor.u32 %v1248, %v1246
      %v1252 = vshll.u32 %v1159, 16
      %v1254 = vrot.slane %v1252, 1
      %v1255 = vsel %vm1171, %v1250, %v1254
      %v1256 = vshrl.u32 %v1159, 16
      %v1258 = vor.u32 %v1256, %v1254
      %v1260 = vshll.u32 %v1160, 16
      %v1262 = vrot.slane %v1260, 1
      %v1263 = vsel %vm1171, %v1258, %v1262
      %v1264 = vshrl.u32 %v1160, 16
      %v1266 = vor.u32 %v1264, %v1262
      %v1268 = vshll.u32 %v1161, 16
      %v1270 = vrot.slane %v1268, 1
      %v1271 = vsel %vm1171, %v1266, %v1270
      %v1272 = vshrl.u32 %v1161, 16
      %v1274 = vor.u32 %v1272, %v1270
      %v1276 = vshll.u32 %v1162, 16
      %v1278 = vrot.slane %v1276, 1
      %v1279 = vsel %vm1171, %v1274, %v1278
      %v1280 = vshrl.u32 %v1162, 16
      %v1282 = vor.u32 %v1280, %v1278
      %v1284 = vshll.u32 %v1163, 16
      %v1286 = vrot.slane %v1284, 1
      %v1287 = vsel %vm1171, %v1282, %v1286
      %v1288 = vshrl.u32 %v1163, 16
      %v1290 = vor.u32 %v1288, %v1286
      %v1292 = vshll.u32 %v1164, 16
      %v1294 = vrot.slane %v1292, 1
      %v1295 = vsel %vm1171, %v1290, %v1294
      %v1296 = vshrl.u32 %v1164, 16
      %v1298 = vor.u32 %v1296, %v1294
      %v1300 = vshll.u32 %v1165, 16
      %v1302 = vrot.slane %v1300, 1
      %v1303 = vsel %vm1171, %v1298, %v1302
      %v1304 = vshrl.u32 %v1165, 16
      %v1306 = vor.u32 %v1304, %v1302
      %v1308 = vshll.u32 %v1166, 16
      %v1310 = vrot.slane %v1308, 1
      %v1311 = vsel %vm1171, %v1306, %v1310
      %v1312 = vshrl.u32 %v1166, 16
      %v1314 = vor.u32 %v1312, %v1310
      %v1316 = vshll.u32 %v1168, 16
      %v1318 = vrot.slane %v1316, 1
      %v1319 = vsel %vm1171, %v1314, %v1318
      %vm1320 = vcmask 31744
      %v1322 = vsel %vm1320, %v1183, 0
      %v1325 = vsel %vm1320, %v1191, 0
      %v1328 = vsel %vm1320, %v1199, 0
      %v1331 = vsel %vm1320, %v1207, 0
      %v1334 = vsel %vm1320, %v1215, 0
      %v1337 = vsel %vm1320, %v1223, 0
      %v1340 = vsel %vm1320, %v1231, 0
      %v1343 = vsel %vm1320, %v1239, 0
      %v1346 = vsel %vm1320, %v1247, 0
      %v1349 = vsel %vm1320, %v1255, 0
      %v1352 = vsel %vm1320, %v1263, 0
      %v1355 = vsel %vm1320, %v1271, 0
      %v1358 = vsel %vm1320, %v1279, 0
      %v1361 = vsel %vm1320, %v1287, 0
      %v1364 = vsel %vm1320, %v1295, 0
      %v1367 = vsel %vm1320, %v1303, 0
      %v1370 = vsel %vm1320, %v1311, 0
      %v1373 = vsel %vm1320, %v1319, 0
      %vm1375 = vcmask 1041408
      %v1377 = vsel %vm1375, %v1170, 0
      %1379 = vmatprep.subr.bf16.mxu0 0
      %1380 = vmatpush1.bf16.msra.mxu0 %v1377
      %1381 = vmatprep.subr.bf16.mxu0 0
      %1382 = vmatpush1.bf16.msra.mxu0 0
      %1383 = vmatprep.subr.bf16.mxu0 0
      %1384 = vmatpush1.bf16.msra.mxu0 0
      %1385 = vmatprep.subr.bf16.mxu0 0
      %1386 = vmatpush1.bf16.msra.mxu0 0
      %1387 = vmatprep.subr.bf16.mxu0 0
      %1388 = vmatpush1.bf16.msra.mxu0 0
      %1389 = vmatprep.subr.bf16.mxu0 0
      %1390 = vmatpush1.bf16.msra.mxu0 0
      %1391 = vmatprep.subr.bf16.mxu0 0
      %1392 = vmatpush1.bf16.msra.mxu0 0
      %1393 = vmatprep.subr.bf16.mxu0 0
      %1394 = vmatpush1.bf16.msra.mxu0 0
      %1395 = vmatprep.subr.bf16.mxu0 0
      %1396 = vmatpush1.bf16.msra.mxu0 0
      %1397 = vmatprep.subr.bf16.mxu0 0
      %1398 = vmatpush1.bf16.msra.mxu0 0
      %1399 = vmatprep.subr.bf16.mxu0 0
      %1400 = vmatpush1.bf16.msra.mxu0 0
      %1401 = vmatprep.subr.bf16.mxu0 0
      %1402 = vmatpush1.bf16.msra.mxu0 0
      %1403 = vmatprep.subr.bf16.mxu0 0
      %1404 = vmatpush1.bf16.msra.mxu0 0
      %1405 = vmatprep.subr.bf16.mxu0 0
      %1406 = vmatpush1.bf16.msra.mxu0 0
      %1407 = vmatprep.subr.bf16.mxu0 0
      %1408 = vmatpush1.bf16.msra.mxu0 0
      %1409 = vmatprep.subr.bf16.mxu0 0
      %1410 = vmatpush1.bf16.msra.mxu0 0
      %1411 = vmatprep.mubr.bf16.mxu0 0
      %1412 = vmatmul.mubr.bf16.gmra.mrb[0].mxu0 %v1322
      %v1413 = vpop.f32.mrb[0].mxu0
      %v1414 = vadd.f32 0.0, %v1413
      %v1415 = vpop.f32.mrb[0].mxu0
      %v1416 = vpop.f32.mrb[0].mxu0
      %v1417 = vadd.f32 0.0, %v1416
      %v1418 = vpop.f32.mrb[0].mxu0
      %1419 = vmatprep.mubr.bf16.mxu0 0
      %1420 = vmatmul.mubr.bf16.gmra.mrb[0].mxu0 %v1325
      %v1421 = vpop.f32.mrb[0].mxu0
      %v1422 = vadd.f32 0.0, %v1421
      %v1423 = vpop.f32.mrb[0].mxu0
      %v1424 = vpop.f32.mrb[0].mxu0
      %v1425 = vadd.f32 0.0, %v1424
      %v1426 = vpop.f32.mrb[0].mxu0
      %1427 = vmatprep.mubr.bf16.mxu0 0
      %1428 = vmatmul.mubr.bf16.gmra.mrb[0].mxu0 %v1328
      %v1429 = vpop.f32.mrb[0].mxu0
      %v1430 = vadd.f32 0.0, %v1429
      %v1431 = vpop.f32.mrb[0].mxu0
      %v1432 = vpop.f32.mrb[0].mxu0
      %v1433 = vadd.f32 0.0, %v1432
      %v1434 = vpop.f32.mrb[0].mxu0
      %1435 = vmatprep.mubr.bf16.mxu0 0
      %1436 = vmatmul.mubr.bf16.gmra.mrb[0].mxu0 %v1331
      %v1437 = vpop.f32.mrb[0].mxu0
      %v1438 = vadd.f32 0.0, %v1437
      %v1439 = vpop.f32.mrb[0].mxu0
      %v1440 = vpop.f32.mrb[0].mxu0
      %v1441 = vadd.f32 0.0, %v1440
      %v1442 = vpop.f32.mrb[0].mxu0
      %1443 = vmatprep.mubr.bf16.mxu0 0
      %1444 = vmatmul.mubr.bf16.gmra.mrb[0].mxu0 %v1334
      %v1445 = vpop.f32.mrb[0].mxu0
      %v1446 = vadd.f32 0.0, %v1445
      %v1447 = vpop.f32.mrb[0].mxu0
      %v1448 = vpop.f32.mrb[0].mxu0
      %v1449 = vadd.f32 0.0, %v1448
      %v1450 = vpop.f32.mrb[0].mxu0
      %1451 = vmatprep.mubr.bf16.mxu0 0
      %1452 = vmatmul.mubr.bf16.gmra.mrb[0].mxu0 %v1337
      %v1453 = vpop.f32.mrb[0].mxu0
      %v1454 = vadd.f32 0.0, %v1453
      %v1455 = vpop.f32.mrb[0].mxu0
      %v1456 = vpop.f32.mrb[0].mxu0
      %v1457 = vadd.f32 0.0, %v1456
      %v1458 = vpop.f32.mrb[0].mxu0
      %1459 = vmatprep.mubr.bf16.mxu0 0
      %1460 = vmatmul.mubr.bf16.gmra.mrb[0].mxu0 %v1340
      %v1461 = vpop.f32.mrb[0].mxu0
      %v1462 = vadd.f32 0.0, %v1461
      %v1463 = vpop.f32.mrb[0].mxu0
      %v1464 = vpop.f32.mrb[0].mxu0
      %v1465 = vadd.f32 0.0, %v1464
      %v1466 = vpop.f32.mrb[0].mxu0
      %1467 = vmatprep.mubr.bf16.mxu0 0
      %1468 = vmatmul.mubr.bf16.gmra.mrb[0].mxu0 %v1343
      %v1469 = vpop.f32.mrb[0].mxu0
      %v1470 = vadd.f32 0.0, %v1469
      %v1471 = vpop.f32.mrb[0].mxu0
      %v1472 = vpop.f32.mrb[0].mxu0
      %v1473 = vadd.f32 0.0, %v1472
      %v1474 = vpop.f32.mrb[0].mxu0
      %1475 = vmatprep.mubr.bf16.mxu0 0
      %1476 = vmatmul.mubr.bf16.gmra.mrb[0].mxu0 %v1346
      %v1477 = vpop.f32.mrb[0].mxu0
      %v1478 = vadd.f32 0.0, %v1477
      %v1479 = vpop.f32.mrb[0].mxu0
      %v1480 = vpop.f32.mrb[0].mxu0
      %v1481 = vadd.f32 0.0, %v1480
      %v1482 = vpop.f32.mrb[0].mxu0
      %1483 = vmatprep.mubr.bf16.mxu0 0
      %1484 = vmatmul.mubr.bf16.gmra.mrb[0].mxu0 %v1349
      %v1485 = vpop.f32.mrb[0].mxu0
      %v1486 = vadd.f32 0.0, %v1485
      %v1487 = vpop.f32.mrb[0].mxu0
      %v1488 = vpop.f32.mrb[0].mxu0
      %v1489 = vadd.f32 0.0, %v1488
      %v1490 = vpop.f32.mrb[0].mxu0
      %1491 = vmatprep.mubr.bf16.mxu0 0
      %1492 = vmatmul.mubr.bf16.gmra.mrb[0].mxu0 %v1352
      %v1493 = vpop.f32.mrb[0].mxu0
      %v1494 = vadd.f32 0.0, %v1493
      %v1495 = vpop.f32.mrb[0].mxu0
      %v1496 = vpop.f32.mrb[0].mxu0
      %v1497 = vadd.f32 0.0, %v1496
      %v1498 = vpop.f32.mrb[0].mxu0
      %1499 = vmatprep.mubr.bf16.mxu0 0
      %1500 = vmatmul.mubr.bf16.gmra.mrb[0].mxu0 %v1355
      %v1501 = vpop.f32.mrb[0].mxu0
      %v1502 = vadd.f32 0.0, %v1501
      %v1503 = vpop.f32.mrb[0].mxu0
      %v1504 = vpop.f32.mrb[0].mxu0
      %v1505 = vadd.f32 0.0, %v1504
      %v1506 = vpop.f32.mrb[0].mxu0
      %1507 = vmatprep.mubr.bf16.mxu0 0
      %1508 = vmatmul.mubr.bf16.gmra.mrb[0].mxu0 %v1358
      %v1509 = vpop.f32.mrb[0].mxu0
      %v1510 = vadd.f32 0.0, %v1509
      %v1511 = vpop.f32.mrb[0].mxu0
      %v1512 = vpop.f32.mrb[0].mxu0
      %v1513 = vadd.f32 0.0, %v1512
      %v1514 = vpop.f32.mrb[0].mxu0
      %1515 = vmatprep.mubr.bf16.mxu0 0
      %1516 = vmatmul.mubr.bf16.gmra.mrb[0].mxu0 %v1361
      %v1517 = vpop.f32.mrb[0].mxu0
      %v1518 = vadd.f32 0.0, %v1517
      %v1519 = vpop.f32.mrb[0].mxu0
      %v1520 = vpop.f32.mrb[0].mxu0
      %v1521 = vadd.f32 0.0, %v1520
      %v1522 = vpop.f32.mrb[0].mxu0
      %1523 = vmatprep.mubr.bf16.mxu0 0
      %1524 = vmatmul.mubr.bf16.gmra.mrb[0].mxu0 %v1364
      %v1525 = vpop.f32.mrb[0].mxu0
      %v1526 = vadd.f32 0.0, %v1525
      %v1527 = vpop.f32.mrb[0].mxu0
      %v1528 = vpop.f32.mrb[0].mxu0
      %v1529 = vadd.f32 0.0, %v1528
      %v1530 = vpop.f32.mrb[0].mxu0
      %1531 = vmatprep.mubr.bf16.mxu0 0
      %1532 = vmatmul.mubr.bf16.gmra.mrb[0].mxu0 %v1367
      %v1533 = vpop.f32.mrb[0].mxu0
      %v1534 = vadd.f32 0.0, %v1533
      %v1535 = vpop.f32.mrb[0].mxu0
      %v1536 = vpop.f32.mrb[0].mxu0
      %v1537 = vadd.f32 0.0, %v1536
      %v1538 = vpop.f32.mrb[0].mxu0
      %1539 = vmatprep.mubr.bf16.mxu0 0
      %1540 = vmatmul.mubr.bf16.gmra.mrb[0].mxu0 %v1370
      %v1541 = vpop.f32.mrb[0].mxu0
      %v1542 = vadd.f32 0.0, %v1541
      %v1543 = vpop.f32.mrb[0].mxu0
      %v1544 = vpop.f32.mrb[0].mxu0
      %v1545 = vadd.f32 0.0, %v1544
      %v1546 = vpop.f32.mrb[0].mxu0
      %1547 = vmatprep.mubr.bf16.mxu0 0
      %1548 = vmatmul.mubr.bf16.gmra.mrb[0].mxu0 %v1373
      %v1549 = vpop.f32.mrb[0].mxu0
      %v1550 = vadd.f32 0.0, %v1549
      %v1551 = vpop.f32.mrb[0].mxu0
      %v1552 = vpop.f32.mrb[0].mxu0
      %v1553 = vadd.f32 0.0, %v1552
      %v1554 = vpop.f32.mrb[0].mxu0
      %1555 = vdwg.mxu0
      %v1556 = vsel %vm1320, %v1149, 0
      %v1558 = vsel %vm1320, %v1150, 0
      %v1560 = vsel %vm1320, %v1151, 0
      %v1562 = vsel %vm1320, %v1152, 0
      %v1564 = vsel %vm1320, %v1153, 0
      %v1566 = vsel %vm1320, %v1154, 0
      %v1568 = vsel %vm1320, %v1155, 0
      %v1570 = vsel %vm1320, %v1156, 0
      %v1572 = vsel %vm1320, %v1157, 0
      %v1574 = vsel %vm1320, %v1158, 0
      %v1576 = vsel %vm1320, %v1159, 0
      %v1578 = vsel %vm1320, %v1160, 0
      %v1580 = vsel %vm1320, %v1161, 0
      %v1582 = vsel %vm1320, %v1162, 0
      %v1584 = vsel %vm1320, %v1163, 0
      %v1586 = vsel %vm1320, %v1164, 0
      %v1588 = vsel %vm1320, %v1165, 0
      %v1590 = vsel %vm1320, %v1166, 0
      %v1593 = vsel %vm1375, %v1167, 0
      %1595 = vmatprep.subr.bf16.mxu0 0
      %1596 = vmatpush1.bf16.msra.mxu0 %v1593
      %1597 = vmatprep.subr.bf16.mxu0 0
      %1598 = vmatpush1.bf16.msra.mxu0 0
      %1599 = vmatprep.subr.bf16.mxu0 0
      %1600 = vmatpush1.bf16.msra.mxu0 0
      %1601 = vmatprep.subr.bf16.mxu0 0
      %1602 = vmatpush1.bf16.msra.mxu0 0
      %1603 = vmatprep.subr.bf16.mxu0 0
      %1604 = vmatpush1.bf16.msra.mxu0 0
      %1605 = vmatprep.subr.bf16.mxu0 0
      %1606 = vmatpush1.bf16.msra.mxu0 0
      %1607 = vmatprep.subr.bf16.mxu0 0
      %1608 = vmatpush1.bf16.msra.mxu0 0
      %1609 = vmatprep.subr.bf16.mxu0 0
      %1610 = vmatpush1.bf16.msra.mxu0 0
      %1611 = vmatprep.subr.bf16.mxu0 0
      %1612 = vmatpush1.bf16.msra.mxu0 0
      %1613 = vmatprep.subr.bf16.mxu0 0
      %1614 = vmatpush1.bf16.msra.mxu0 0
      %1615 = vmatprep.subr.bf16.mxu0 0
      %1616 = vmatpush1.bf16.msra.mxu0 0
      %1617 = vmatprep.subr.bf16.mxu0 0
      %1618 = vmatpush1.bf16.msra.mxu0 0
      %1619 = vmatprep.subr.bf16.mxu0 0
      %1620 = vmatpush1.bf16.msra.mxu0 0
      %1621 = vmatprep.subr.bf16.mxu0 0
      %1622 = vmatpush1.bf16.msra.mxu0 0
      %1623 = vmatprep.subr.bf16.mxu0 0
      %1624 = vmatpush1.bf16.msra.mxu0 0
      %1625 = vmatprep.subr.bf16.mxu0 0
      %1626 = vmatpush1.bf16.msra.mxu0 0
      %1627 = vmatprep.mubr.bf16.mxu0 0
      %1628 = vmatmul.mubr.bf16.gmra.mrb[0].mxu0 %v1556
      %v1629 = vpop.f32.mrb[0].mxu0
      %v1630 = vadd.f32 %v1414, %v1629
      %v1631 = vpop.f32.mrb[0].mxu0
      %v1632 = vpop.f32.mrb[0].mxu0
      %v1633 = vadd.f32 %v1417, %v1632
      %v1634 = vpop.f32.mrb[0].mxu0
      %1635 = vmatprep.mubr.bf16.mxu0 0
      %1636 = vmatmul.mubr.bf16.gmra.mrb[0].mxu0 %v1558
      %v1637 = vpop.f32.mrb[0].mxu0
      %v1638 = vadd.f32 %v1422, %v1637
      %v1639 = vpop.f32.mrb[0].mxu0
      %v1640 = vpop.f32.mrb[0].mxu0
      %v1641 = vadd.f32 %v1425, %v1640
      %v1642 = vpop.f32.mrb[0].mxu0
      %1643 = vmatprep.mubr.bf16.mxu0 0
      %1644 = vmatmul.mubr.bf16.gmra.mrb[0].mxu0 %v1560
      %v1645 = vpop.f32.mrb[0].mxu0
      %v1646 = vadd.f32 %v1430, %v1645
      %v1647 = vpop.f32.mrb[0].mxu0
      %v1648 = vpop.f32.mrb[0].mxu0
      %v1649 = vadd.f32 %v1433, %v1648
      %v1650 = vpop.f32.mrb[0].mxu0
      %1651 = vmatprep.mubr.bf16.mxu0 0
      %1652 = vmatmul.mubr.bf16.gmra.mrb[0].mxu0 %v1562
      %v1653 = vpop.f32.mrb[0].mxu0
      %v1654 = vadd.f32 %v1438, %v1653
      %v1655 = vpop.f32.mrb[0].mxu0
      %v1656 = vpop.f32.mrb[0].mxu0
      %v1657 = vadd.f32 %v1441, %v1656
      %v1658 = vpop.f32.mrb[0].mxu0
      %1659 = vmatprep.mubr.bf16.mxu0 0
      %1660 = vmatmul.mubr.bf16.gmra.mrb[0].mxu0 %v1564
      %v1661 = vpop.f32.mrb[0].mxu0
      %v1662 = vadd.f32 %v1446, %v1661
      %v1663 = vpop.f32.mrb[0].mxu0
      %v1664 = vpop.f32.mrb[0].mxu0
      %v1665 = vadd.f32 %v1449, %v1664
      %v1666 = vpop.f32.mrb[0].mxu0
      %1667 = vmatprep.mubr.bf16.mxu0 0
      %1668 = vmatmul.mubr.bf16.gmra.mrb[0].mxu0 %v1566
      %v1669 = vpop.f32.mrb[0].mxu0
      %v1670 = vadd.f32 %v1454, %v1669
      %v1671 = vpop.f32.mrb[0].mxu0
      %v1672 = vpop.f32.mrb[0].mxu0
      %v1673 = vadd.f32 %v1457, %v1672
      %v1674 = vpop.f32.mrb[0].mxu0
      %1675 = vmatprep.mubr.bf16.mxu0 0
      %1676 = vmatmul.mubr.bf16.gmra.mrb[0].mxu0 %v1568
      %v1677 = vpop.f32.mrb[0].mxu0
      %v1678 = vadd.f32 %v1462, %v1677
      %v1679 = vpop.f32.mrb[0].mxu0
      %v1680 = vpop.f32.mrb[0].mxu0
      %v1681 = vadd.f32 %v1465, %v1680
      %v1682 = vpop.f32.mrb[0].mxu0
      %1683 = vmatprep.mubr.bf16.mxu0 0
      %1684 = vmatmul.mubr.bf16.gmra.mrb[0].mxu0 %v1570
      %v1685 = vpop.f32.mrb[0].mxu0
      %v1686 = vadd.f32 %v1470, %v1685
      %v1687 = vpop.f32.mrb[0].mxu0
      %v1688 = vpop.f32.mrb[0].mxu0
      %v1689 = vadd.f32 %v1473, %v1688
      %v1690 = vpop.f32.mrb[0].mxu0
      %1691 = vmatprep.mubr.bf16.mxu0 0
      %1692 = vmatmul.mubr.bf16.gmra.mrb[0].mxu0 %v1572
      %v1693 = vpop.f32.mrb[0].mxu0
      %v1694 = vadd.f32 %v1478, %v1693
      %v1695 = vpop.f32.mrb[0].mxu0
      %v1696 = vpop.f32.mrb[0].mxu0
      %v1697 = vadd.f32 %v1481, %v1696
      %v1698 = vpop.f32.mrb[0].mxu0
      %1699 = vmatprep.mubr.bf16.mxu0 0
      %1700 = vmatmul.mubr.bf16.gmra.mrb[0].mxu0 %v1574
      %v1701 = vpop.f32.mrb[0].mxu0
      %v1702 = vadd.f32 %v1486, %v1701
      %v1703 = vpop.f32.mrb[0].mxu0
      %v1704 = vpop.f32.mrb[0].mxu0
      %v1705 = vadd.f32 %v1489, %v1704
      %v1706 = vpop.f32.mrb[0].mxu0
      %1707 = vmatprep.mubr.bf16.mxu0 0
      %1708 = vmatmul.mubr.bf16.gmra.mrb[0].mxu0 %v1576
      %v1709 = vpop.f32.mrb[0].mxu0
      %v1710 = vadd.f32 %v1494, %v1709
      %v1711 = vpop.f32.mrb[0].mxu0
      %v1712 = vpop.f32.mrb[0].mxu0
      %v1713 = vadd.f32 %v1497, %v1712
      %v1714 = vpop.f32.mrb[0].mxu0
      %1715 = vmatprep.mubr.bf16.mxu0 0
      %1716 = vmatmul.mubr.bf16.gmra.mrb[0].mxu0 %v1578
      %v1717 = vpop.f32.mrb[0].mxu0
      %v1718 = vadd.f32 %v1502, %v1717
      %v1719 = vpop.f32.mrb[0].mxu0
      %v1720 = vpop.f32.mrb[0].mxu0
      %v1721 = vadd.f32 %v1505, %v1720
      %v1722 = vpop.f32.mrb[0].mxu0
      %1723 = vmatprep.mubr.bf16.mxu0 0
      %1724 = vmatmul.mubr.bf16.gmra.mrb[0].mxu0 %v1580
      %v1725 = vpop.f32.mrb[0].mxu0
      %v1726 = vadd.f32 %v1510, %v1725
      %v1727 = vpop.f32.mrb[0].mxu0
      %v1728 = vpop.f32.mrb[0].mxu0
      %v1729 = vadd.f32 %v1513, %v1728
      %v1730 = vpop.f32.mrb[0].mxu0
      %1731 = vmatprep.mubr.bf16.mxu0 0
      %1732 = vmatmul.mubr.bf16.gmra.mrb[0].mxu0 %v1582
      %v1733 = vpop.f32.mrb[0].mxu0
      %v1734 = vadd.f32 %v1518, %v1733
      %v1735 = vpop.f32.mrb[0].mxu0
      %v1736 = vpop.f32.mrb[0].mxu0
      %v1737 = vadd.f32 %v1521, %v1736
      %v1738 = vpop.f32.mrb[0].mxu0
      %1739 = vmatprep.mubr.bf16.mxu0 0
      %1740 = vmatmul.mubr.bf16.gmra.mrb[0].mxu0 %v1584
      %v1741 = vpop.f32.mrb[0].mxu0
      %v1742 = vadd.f32 %v1526, %v1741
      %v1743 = vpop.f32.mrb[0].mxu0
      %v1744 = vpop.f32.mrb[0].mxu0
      %v1745 = vadd.f32 %v1529, %v1744
      %v1746 = vpop.f32.mrb[0].mxu0
      %1747 = vmatprep.mubr.bf16.mxu0 0
      %1748 = vmatmul.mubr.bf16.gmra.mrb[0].mxu0 %v1586
      %v1749 = vpop.f32.mrb[0].mxu0
      %v1750 = vadd.f32 %v1534, %v1749
      %v1751 = vpop.f32.mrb[0].mxu0
      %v1752 = vpop.f32.mrb[0].mxu0
      %v1753 = vadd.f32 %v1537, %v1752
      %v1754 = vpop.f32.mrb[0].mxu0
      %1755 = vmatprep.mubr.bf16.mxu0 0
      %1756 = vmatmul.mubr.bf16.gmra.mrb[0].mxu0 %v1588
      %v1757 = vpop.f32.mrb[0].mxu0
      %v1758 = vadd.f32 %v1542, %v1757
      %v1759 = vpop.f32.mrb[0].mxu0
      %v1760 = vpop.f32.mrb[0].mxu0
      %v1761 = vadd.f32 %v1545, %v1760
      %v1762 = vpop.f32.mrb[0].mxu0
      %1763 = vmatprep.mubr.bf16.mxu0 0
      %1764 = vmatmul.mubr.bf16.gmra.mrb[0].mxu0 %v1590
      %v1765 = vpop.f32.mrb[0].mxu0
      %v1766 = vadd.f32 %v1550, %v1765
      %v1767 = vpop.f32.mrb[0].mxu0
      %v1768 = vpop.f32.mrb[0].mxu0
      %v1769 = vadd.f32 %v1553, %v1768
      %v1770 = vpop.f32.mrb[0].mxu0
      %1771 = vdwg.mxu0
      %s1772 = scalar_lea.vmem %s5, 4
      %v1773 = vld [vmem:[%s1772] sm:$0x3]
      %vm1793 = vcmask 1046528
      %v1794 = vrot.slane %v1149, 1
      %v1795 = vrot.slane %v1150, 1
      %v1796 = vsel %vm1793, %v1794, %v1795
      %v1797 = vrot.slane %v1151, 1
      %v1798 = vsel %vm1793, %v1795, %v1797
      %v1799 = vrot.slane %v1152, 1
      %v1800 = vsel %vm1793, %v1797, %v1799
      %v1801 = vrot.slane %v1153, 1
      %v1802 = vsel %vm1793, %v1799, %v1801
      %v1803 = vrot.slane %v1154, 1
      %v1804 = vsel %vm1793, %v1801, %v1803
      %v1805 = vrot.slane %v1155, 1
      %v1806 = vsel %vm1793, %v1803, %v1805
      %v1807 = vrot.slane %v1156, 1
      %v1808 = vsel %vm1793, %v1805, %v1807
      %v1809 = vrot.slane %v1157, 1
      %v1810 = vsel %vm1793, %v1807, %v1809
      %v1811 = vrot.slane %v1158, 1
      %v1812 = vsel %vm1793, %v1809, %v1811
      %v1813 = vrot.slane %v1159, 1
      %v1814 = vsel %vm1793, %v1811, %v1813
      %v1815 = vrot.slane %v1160, 1
      %v1816 = vsel %vm1793, %v1813, %v1815
      %v1817 = vrot.slane %v1161, 1
      %v1818 = vsel %vm1793, %v1815, %v1817
      %v1819 = vrot.slane %v1162, 1
      %v1820 = vsel %vm1793, %v1817, %v1819
      %v1821 = vrot.slane %v1163, 1
      %v1822 = vsel %vm1793, %v1819, %v1821
      %v1823 = vrot.slane %v1164, 1
      %v1824 = vsel %vm1793, %v1821, %v1823
      %v1825 = vrot.slane %v1165, 1
      %v1826 = vsel %vm1793, %v1823, %v1825
      %v1827 = vrot.slane %v1166, 1
      %v1828 = vsel %vm1793, %v1825, %v1827
      %v1829 = vrot.slane %v1168, 1
      %v1830 = vsel %vm1793, %v1827, %v1829
      %v1832 = vsel %vm1320, %v1796, 0
      %v1835 = vsel %vm1320, %v1798, 0
      %v1838 = vsel %vm1320, %v1800, 0
      %v1841 = vsel %vm1320, %v1802, 0
      %v1844 = vsel %vm1320, %v1804, 0
      %v1847 = vsel %vm1320, %v1806, 0
      %v1850 = vsel %vm1320, %v1808, 0
      %v1853 = vsel %vm1320, %v1810, 0
      %v1856 = vsel %vm1320, %v1812, 0
      %v1859 = vsel %vm1320, %v1814, 0
      %v1862 = vsel %vm1320, %v1816, 0
      %v1865 = vsel %vm1320, %v1818, 0
      %v1868 = vsel %vm1320, %v1820, 0
      %v1871 = vsel %vm1320, %v1822, 0
      %v1874 = vsel %vm1320, %v1824, 0
      %v1877 = vsel %vm1320, %v1826, 0
      %v1880 = vsel %vm1320, %v1828, 0
      %v1883 = vsel %vm1320, %v1830, 0
      %v1886 = vsel %vm1375, %v1773, 0
      %1888 = vmatprep.subr.bf16.mxu0 0
      %1889 = vmatpush1.bf16.msra.mxu0 %v1886
      %1890 = vmatprep.subr.bf16.mxu0 0
      %1891 = vmatpush1.bf16.msra.mxu0 0
      %1892 = vmatprep.subr.bf16.mxu0 0
      %1893 = vmatpush1.bf16.msra.mxu0 0
      %1894 = vmatprep.subr.bf16.mxu0 0
      %1895 = vmatpush1.bf16.msra.mxu0 0
      %1896 = vmatprep.subr.bf16.mxu0 0
      %1897 = vmatpush1.bf16.msra.mxu0 0
      %1898 = vmatprep.subr.bf16.mxu0 0
      %1899 = vmatpush1.bf16.msra.mxu0 0
      %1900 = vmatprep.subr.bf16.mxu0 0
      %1901 = vmatpush1.bf16.msra.mxu0 0
      %1902 = vmatprep.subr.bf16.mxu0 0
      %1903 = vmatpush1.bf16.msra.mxu0 0
      %1904 = vmatprep.subr.bf16.mxu0 0
      %1905 = vmatpush1.bf16.msra.mxu0 0
      %1906 = vmatprep.subr.bf16.mxu0 0
      %1907 = vmatpush1.bf16.msra.mxu0 0
      %1908 = vmatprep.subr.bf16.mxu0 0
      %1909 = vmatpush1.bf16.msra.mxu0 0
      %1910 = vmatprep.subr.bf16.mxu0 0
      %1911 = vmatpush1.bf16.msra.mxu0 0
      %1912 = vmatprep.subr.bf16.mxu0 0
      %1913 = vmatpush1.bf16.msra.mxu0 0
      %1914 = vmatprep.subr.bf16.mxu0 0
      %1915 = vmatpush1.bf16.msra.mxu0 0
      %1916 = vmatprep.subr.bf16.mxu0 0
      %1917 = vmatpush1.bf16.msra.mxu0 0
      %1918 = vmatprep.subr.bf16.mxu0 0
      %1919 = vmatpush1.bf16.msra.mxu0 0
      %1920 = vmatprep.mubr.bf16.mxu0 0
      %1921 = vmatmul.mubr.bf16.gmra.mrb[0].mxu0 %v1832
      %v1922 = vpop.f32.mrb[0].mxu0
      %v1923 = vadd.f32 0.0, %v1922
      %v1924 = vpop.f32.mrb[0].mxu0
      %v1925 = vpop.f32.mrb[0].mxu0
      %v1926 = vadd.f32 0.0, %v1925
      %v1927 = vpop.f32.mrb[0].mxu0
      %1928 = vmatprep.mubr.bf16.mxu0 0
      %1929 = vmatmul.mubr.bf16.gmra.mrb[0].mxu0 %v1835
      %v1930 = vpop.f32.mrb[0].mxu0
      %v1931 = vadd.f32 0.0, %v1930
      %v1932 = vpop.f32.mrb[0].mxu0
      %v1933 = vpop.f32.mrb[0].mxu0
      %v1934 = vadd.f32 0.0, %v1933
      %v1935 = vpop.f32.mrb[0].mxu0
      %1936 = vmatprep.mubr.bf16.mxu0 0
      %1937 = vmatmul.mubr.bf16.gmra.mrb[0].mxu0 %v1838
      %v1938 = vpop.f32.mrb[0].mxu0
      %v1939 = vadd.f32 0.0, %v1938
      %v1940 = vpop.f32.mrb[0].mxu0
      %v1941 = vpop.f32.mrb[0].mxu0
      %v1942 = vadd.f32 0.0, %v1941
      %v1943 = vpop.f32.mrb[0].mxu0
      %1944 = vmatprep.mubr.bf16.mxu0 0
      %1945 = vmatmul.mubr.bf16.gmra.mrb[0].mxu0 %v1841
      %v1946 = vpop.f32.mrb[0].mxu0
      %v1947 = vadd.f32 0.0, %v1946
      %v1948 = vpop.f32.mrb[0].mxu0
      %v1949 = vpop.f32.mrb[0].mxu0
      %v1950 = vadd.f32 0.0, %v1949
      %v1951 = vpop.f32.mrb[0].mxu0
      %1952 = vmatprep.mubr.bf16.mxu0 0
      %1953 = vmatmul.mubr.bf16.gmra.mrb[0].mxu0 %v1844
      %v1954 = vpop.f32.mrb[0].mxu0
      %v1955 = vadd.f32 0.0, %v1954
      %v1956 = vpop.f32.mrb[0].mxu0
      %v1957 = vpop.f32.mrb[0].mxu0
      %v1958 = vadd.f32 0.0, %v1957
      %v1959 = vpop.f32.mrb[0].mxu0
      %1960 = vmatprep.mubr.bf16.mxu0 0
      %1961 = vmatmul.mubr.bf16.gmra.mrb[0].mxu0 %v1847
      %v1962 = vpop.f32.mrb[0].mxu0
      %v1963 = vadd.f32 0.0, %v1962
      %v1964 = vpop.f32.mrb[0].mxu0
      %v1965 = vpop.f32.mrb[0].mxu0
      %v1966 = vadd.f32 0.0, %v1965
      %v1967 = vpop.f32.mrb[0].mxu0
      %1968 = vmatprep.mubr.bf16.mxu0 0
      %1969 = vmatmul.mubr.bf16.gmra.mrb[0].mxu0 %v1850
      %v1970 = vpop.f32.mrb[0].mxu0
      %v1971 = vadd.f32 0.0, %v1970
      %v1972 = vpop.f32.mrb[0].mxu0
      %v1973 = vpop.f32.mrb[0].mxu0
      %v1974 = vadd.f32 0.0, %v1973
      %v1975 = vpop.f32.mrb[0].mxu0
      %1976 = vmatprep.mubr.bf16.mxu0 0
      %1977 = vmatmul.mubr.bf16.gmra.mrb[0].mxu0 %v1853
      %v1978 = vpop.f32.mrb[0].mxu0
      %v1979 = vadd.f32 0.0, %v1978
      %v1980 = vpop.f32.mrb[0].mxu0
      %v1981 = vpop.f32.mrb[0].mxu0
      %v1982 = vadd.f32 0.0, %v1981
      %v1983 = vpop.f32.mrb[0].mxu0
      %1984 = vmatprep.mubr.bf16.mxu0 0
      %1985 = vmatmul.mubr.bf16.gmra.mrb[0].mxu0 %v1856
      %v1986 = vpop.f32.mrb[0].mxu0
      %v1987 = vadd.f32 0.0, %v1986
      %v1988 = vpop.f32.mrb[0].mxu0
      %v1989 = vpop.f32.mrb[0].mxu0
      %v1990 = vadd.f32 0.0, %v1989
      %v1991 = vpop.f32.mrb[0].mxu0
      %1992 = vmatprep.mubr.bf16.mxu0 0
      %1993 = vmatmul.mubr.bf16.gmra.mrb[0].mxu0 %v1859
      %v1994 = vpop.f32.mrb[0].mxu0
      %v1995 = vadd.f32 0.0, %v1994
      %v1996 = vpop.f32.mrb[0].mxu0
      %v1997 = vpop.f32.mrb[0].mxu0
      %v1998 = vadd.f32 0.0, %v1997
      %v1999 = vpop.f32.mrb[0].mxu0
      %2000 = vmatprep.mubr.bf16.mxu0 0
      %2001 = vmatmul.mubr.bf16.gmra.mrb[0].mxu0 %v1862
      %v2002 = vpop.f32.mrb[0].mxu0
      %v2003 = vadd.f32 0.0, %v2002
      %v2004 = vpop.f32.mrb[0].mxu0
      %v2005 = vpop.f32.mrb[0].mxu0
      %v2006 = vadd.f32 0.0, %v2005
      %v2007 = vpop.f32.mrb[0].mxu0
      %2008 = vmatprep.mubr.bf16.mxu0 0
      %2009 = vmatmul.mubr.bf16.gmra.mrb[0].mxu0 %v1865
      %v2010 = vpop.f32.mrb[0].mxu0
      %v2011 = vadd.f32 0.0, %v2010
      %v2012 = vpop.f32.mrb[0].mxu0
      %v2013 = vpop.f32.mrb[0].mxu0
      %v2014 = vadd.f32 0.0, %v2013
      %v2015 = vpop.f32.mrb[0].mxu0
      %2016 = vmatprep.mubr.bf16.mxu0 0
      %2017 = vmatmul.mubr.bf16.gmra.mrb[0].mxu0 %v1868
      %v2018 = vpop.f32.mrb[0].mxu0
      %v2019 = vadd.f32 0.0, %v2018
      %v2020 = vpop.f32.mrb[0].mxu0
      %v2021 = vpop.f32.mrb[0].mxu0
      %v2022 = vadd.f32 0.0, %v2021
      %v2023 = vpop.f32.mrb[0].mxu0
      %2024 = vmatprep.mubr.bf16.mxu0 0
      %2025 = vmatmul.mubr.bf16.gmra.mrb[0].mxu0 %v1871
      %v2026 = vpop.f32.mrb[0].mxu0
      %v2027 = vadd.f32 0.0, %v2026
      %v2028 = vpop.f32.mrb[0].mxu0
      %v2029 = vpop.f32.mrb[0].mxu0
      %v2030 = vadd.f32 0.0, %v2029
      %v2031 = vpop.f32.mrb[0].mxu0
      %2032 = vmatprep.mubr.bf16.mxu0 0
      %2033 = vmatmul.mubr.bf16.gmra.mrb[0].mxu0 %v1874
      %v2034 = vpop.f32.mrb[0].mxu0
      %v2035 = vadd.f32 0.0, %v2034
      %v2036 = vpop.f32.mrb[0].mxu0
      %v2037 = vpop.f32.mrb[0].mxu0
      %v2038 = vadd.f32 0.0, %v2037
      %v2039 = vpop.f32.mrb[0].mxu0
      %2040 = vmatprep.mubr.bf16.mxu0 0
      %2041 = vmatmul.mubr.bf16.gmra.mrb[0].mxu0 %v1877
      %v2042 = vpop.f32.mrb[0].mxu0
      %v2043 = vadd.f32 0.0, %v2042
      %v2044 = vpop.f32.mrb[0].mxu0
      %v2045 = vpop.f32.mrb[0].mxu0
      %v2046 = vadd.f32 0.0, %v2045
      %v2047 = vpop.f32.mrb[0].mxu0
      %2048 = vmatprep.mubr.bf16.mxu0 0
      %2049 = vmatmul.mubr.bf16.gmra.mrb[0].mxu0 %v1880
      %v2050 = vpop.f32.mrb[0].mxu0
      %v2051 = vadd.f32 0.0, %v2050
      %v2052 = vpop.f32.mrb[0].mxu0
      %v2053 = vpop.f32.mrb[0].mxu0
      %v2054 = vadd.f32 0.0, %v2053
      %v2055 = vpop.f32.mrb[0].mxu0
      %2056 = vmatprep.mubr.bf16.mxu0 0
      %2057 = vmatmul.mubr.bf16.gmra.mrb[0].mxu0 %v1883
      %v2058 = vpop.f32.mrb[0].mxu0
      %v2059 = vadd.f32 0.0, %v2058
      %v2060 = vpop.f32.mrb[0].mxu0
      %v2061 = vpop.f32.mrb[0].mxu0
      %v2062 = vadd.f32 0.0, %v2061
      %v2063 = vpop.f32.mrb[0].mxu0
      %2064 = vdwg.mxu0
      %v2065 = vadd.f32 %v1630, %v1923
      %v2066 = vadd.f32 %v1633, %v1926
      %v2067 = vadd.f32 %v1638, %v1931
      %v2068 = vadd.f32 %v1641, %v1934
      %v2069 = vadd.f32 %v1646, %v1939
      %v2070 = vadd.f32 %v1649, %v1942
      %v2071 = vadd.f32 %v1654, %v1947
      %v2072 = vadd.f32 %v1657, %v1950
      %v2073 = vadd.f32 %v1662, %v1955
      %v2074 = vadd.f32 %v1665, %v1958
      %v2075 = vadd.f32 %v1670, %v1963
      %v2076 = vadd.f32 %v1673, %v1966
      %v2077 = vadd.f32 %v1678, %v1971
      %v2078 = vadd.f32 %v1681, %v1974
      %v2079 = vadd.f32 %v1686, %v1979
      %v2080 = vadd.f32 %v1689, %v1982
      %v2081 = vadd.f32 %v1694, %v1987
      %v2082 = vadd.f32 %v1697, %v1990
      %v2083 = vadd.f32 %v1702, %v1995
      %v2084 = vadd.f32 %v1705, %v1998
      %v2085 = vadd.f32 %v1710, %v2003
      %v2086 = vadd.f32 %v1713, %v2006
      %v2087 = vadd.f32 %v1718, %v2011
      %v2088 = vadd.f32 %v1721, %v2014
      %v2089 = vadd.f32 %v1726, %v2019
      %v2090 = vadd.f32 %v1729, %v2022
      %v2091 = vadd.f32 %v1734, %v2027
      %v2092 = vadd.f32 %v1737, %v2030
      %v2093 = vadd.f32 %v1742, %v2035
      %v2094 = vadd.f32 %v1745, %v2038
      %v2095 = vadd.f32 %v1750, %v2043
      %v2096 = vadd.f32 %v1753, %v2046
      %v2097 = vadd.f32 %v1758, %v2051
      %v2098 = vadd.f32 %v1761, %v2054
      %v2099 = vadd.f32 %v1766, %v2059
      %v2100 = vadd.f32 %v1769, %v2062
      %v2101 = vpack.c.bf16 %v1145, %v1144
      %v2102 = vpack.c.bf16 %v1146, %v1146
      %s2103 = scalar_lea.vmem %s5, 6
      %v2104 = vld [vmem:[%s2103] sm:$0x3]
      %v2107 = vrot.slane %v2101, 1
      %v2108 = vsel %vm1793, %v1827, %v2107
      %v2109 = vrot.slane %v2102, 1
      %v2110 = vsel %vm1793, %v2107, %v2109
      %v2112 = vsel %vm1320, %v2108, 0
      %v2115 = vsel %vm1320, %v2110, 0
      %v2118 = vsel %vm1375, %v2104, 0
      %2120 = vmatprep.subr.bf16.mxu0 0
      %2121 = vmatpush1.bf16.msra.mxu0 %v2118
      %2122 = vmatprep.subr.bf16.mxu0 0
      %2123 = vmatpush1.bf16.msra.mxu0 0
      %2124 = vmatprep.subr.bf16.mxu0 0
      %2125 = vmatpush1.bf16.msra.mxu0 0
      %2126 = vmatprep.subr.bf16.mxu0 0
      %2127 = vmatpush1.bf16.msra.mxu0 0
      %2128 = vmatprep.subr.bf16.mxu0 0
      %2129 = vmatpush1.bf16.msra.mxu0 0
      %2130 = vmatprep.subr.bf16.mxu0 0
      %2131 = vmatpush1.bf16.msra.mxu0 0
      %2132 = vmatprep.subr.bf16.mxu0 0
      %2133 = vmatpush1.bf16.msra.mxu0 0
      %2134 = vmatprep.subr.bf16.mxu0 0
      %2135 = vmatpush1.bf16.msra.mxu0 0
      %2136 = vmatprep.subr.bf16.mxu0 0
      %2137 = vmatpush1.bf16.msra.mxu0 0
      %2138 = vmatprep.subr.bf16.mxu0 0
      %2139 = vmatpush1.bf16.msra.mxu0 0
      %2140 = vmatprep.subr.bf16.mxu0 0
      %2141 = vmatpush1.bf16.msra.mxu0 0
      %2142 = vmatprep.subr.bf16.mxu0 0
      %2143 = vmatpush1.bf16.msra.mxu0 0
      %2144 = vmatprep.subr.bf16.mxu0 0
      %2145 = vmatpush1.bf16.msra.mxu0 0
      %2146 = vmatprep.subr.bf16.mxu0 0
      %2147 = vmatpush1.bf16.msra.mxu0 0
      %2148 = vmatprep.subr.bf16.mxu0 0
      %2149 = vmatpush1.bf16.msra.mxu0 0
      %2150 = vmatprep.subr.bf16.mxu0 0
      %2151 = vmatpush1.bf16.msra.mxu0 0
      %2152 = vmatprep.mubr.bf16.mxu0 0
      %2153 = vmatmul.mubr.bf16.gmra.mrb[0].mxu0 %v1835
      %v2154 = vpop.f32.mrb[0].mxu0
      %v2155 = vadd.f32 0.0, %v2154
      %v2156 = vpop.f32.mrb[0].mxu0
      %v2157 = vpop.f32.mrb[0].mxu0
      %v2158 = vadd.f32 0.0, %v2157
      %v2159 = vpop.f32.mrb[0].mxu0
      %2160 = vmatprep.mubr.bf16.mxu0 0
      %2161 = vmatmul.mubr.bf16.gmra.mrb[0].mxu0 %v1838
      %v2162 = vpop.f32.mrb[0].mxu0
      %v2163 = vadd.f32 0.0, %v2162
      %v2164 = vpop.f32.mrb[0].mxu0
      %v2165 = vpop.f32.mrb[0].mxu0
      %v2166 = vadd.f32 0.0, %v2165
      %v2167 = vpop.f32.mrb[0].mxu0
      %2168 = vmatprep.mubr.bf16.mxu0 0
      %2169 = vmatmul.mubr.bf16.gmra.mrb[0].mxu0 %v1841
      %v2170 = vpop.f32.mrb[0].mxu0
      %v2171 = vadd.f32 0.0, %v2170
      %v2172 = vpop.f32.mrb[0].mxu0
      %v2173 = vpop.f32.mrb[0].mxu0
      %v2174 = vadd.f32 0.0, %v2173
      %v2175 = vpop.f32.mrb[0].mxu0
      %2176 = vmatprep.mubr.bf16.mxu0 0
      %2177 = vmatmul.mubr.bf16.gmra.mrb[0].mxu0 %v1844
      %v2178 = vpop.f32.mrb[0].mxu0
      %v2179 = vadd.f32 0.0, %v2178
      %v2180 = vpop.f32.mrb[0].mxu0
      %v2181 = vpop.f32.mrb[0].mxu0
      %v2182 = vadd.f32 0.0, %v2181
      %v2183 = vpop.f32.mrb[0].mxu0
      %2184 = vmatprep.mubr.bf16.mxu0 0
      %2185 = vmatmul.mubr.bf16.gmra.mrb[0].mxu0 %v1847
      %v2186 = vpop.f32.mrb[0].mxu0
      %v2187 = vadd.f32 0.0, %v2186
      %v2188 = vpop.f32.mrb[0].mxu0
      %v2189 = vpop.f32.mrb[0].mxu0
      %v2190 = vadd.f32 0.0, %v2189
      %v2191 = vpop.f32.mrb[0].mxu0
      %2192 = vmatprep.mubr.bf16.mxu0 0
      %2193 = vmatmul.mubr.bf16.gmra.mrb[0].mxu0 %v1850
      %v2194 = vpop.f32.mrb[0].mxu0
      %v2195 = vadd.f32 0.0, %v2194
      %v2196 = vpop.f32.mrb[0].mxu0
      %v2197 = vpop.f32.mrb[0].mxu0
      %v2198 = vadd.f32 0.0, %v2197
      %v2199 = vpop.f32.mrb[0].mxu0
      %2200 = vmatprep.mubr.bf16.mxu0 0
      %2201 = vmatmul.mubr.bf16.gmra.mrb[0].mxu0 %v1853
      %v2202 = vpop.f32.mrb[0].mxu0
      %v2203 = vadd.f32 0.0, %v2202
      %v2204 = vpop.f32.mrb[0].mxu0
      %v2205 = vpop.f32.mrb[0].mxu0
      %v2206 = vadd.f32 0.0, %v2205
      %v2207 = vpop.f32.mrb[0].mxu0
      %2208 = vmatprep.mubr.bf16.mxu0 0
      %2209 = vmatmul.mubr.bf16.gmra.mrb[0].mxu0 %v1856
      %v2210 = vpop.f32.mrb[0].mxu0
      %v2211 = vadd.f32 0.0, %v2210
      %v2212 = vpop.f32.mrb[0].mxu0
      %v2213 = vpop.f32.mrb[0].mxu0
      %v2214 = vadd.f32 0.0, %v2213
      %v2215 = vpop.f32.mrb[0].mxu0
      %2216 = vmatprep.mubr.bf16.mxu0 0
      %2217 = vmatmul.mubr.bf16.gmra.mrb[0].mxu0 %v1859
      %v2218 = vpop.f32.mrb[0].mxu0
      %v2219 = vadd.f32 0.0, %v2218
      %v2220 = vpop.f32.mrb[0].mxu0
      %v2221 = vpop.f32.mrb[0].mxu0
      %v2222 = vadd.f32 0.0, %v2221
      %v2223 = vpop.f32.mrb[0].mxu0
      %2224 = vmatprep.mubr.bf16.mxu0 0
      %2225 = vmatmul.mubr.bf16.gmra.mrb[0].mxu0 %v1862
      %v2226 = vpop.f32.mrb[0].mxu0
      %v2227 = vadd.f32 0.0, %v2226
      %v2228 = vpop.f32.mrb[0].mxu0
      %v2229 = vpop.f32.mrb[0].mxu0
      %v2230 = vadd.f32 0.0, %v2229
      %v2231 = vpop.f32.mrb[0].mxu0
      %2232 = vmatprep.mubr.bf16.mxu0 0
      %2233 = vmatmul.mubr.bf16.gmra.mrb[0].mxu0 %v1865
      %v2234 = vpop.f32.mrb[0].mxu0
      %v2235 = vadd.f32 0.0, %v2234
      %v2236 = vpop.f32.mrb[0].mxu0
      %v2237 = vpop.f32.mrb[0].mxu0
      %v2238 = vadd.f32 0.0, %v2237
      %v2239 = vpop.f32.mrb[0].mxu0
      %2240 = vmatprep.mubr.bf16.mxu0 0
      %2241 = vmatmul.mubr.bf16.gmra.mrb[0].mxu0 %v1868
      %v2242 = vpop.f32.mrb[0].mxu0
      %v2243 = vadd.f32 0.0, %v2242
      %v2244 = vpop.f32.mrb[0].mxu0
      %v2245 = vpop.f32.mrb[0].mxu0
      %v2246 = vadd.f32 0.0, %v2245
      %v2247 = vpop.f32.mrb[0].mxu0
      %2248 = vmatprep.mubr.bf16.mxu0 0
      %2249 = vmatmul.mubr.bf16.gmra.mrb[0].mxu0 %v1871
      %v2250 = vpop.f32.mrb[0].mxu0
      %v2251 = vadd.f32 0.0, %v2250
      %v2252 = vpop.f32.mrb[0].mxu0
      %v2253 = vpop.f32.mrb[0].mxu0
      %v2254 = vadd.f32 0.0, %v2253
      %v2255 = vpop.f32.mrb[0].mxu0
      %2256 = vmatprep.mubr.bf16.mxu0 0
      %2257 = vmatmul.mubr.bf16.gmra.mrb[0].mxu0 %v1874
      %v2258 = vpop.f32.mrb[0].mxu0
      %v2259 = vadd.f32 0.0, %v2258
      %v2260 = vpop.f32.mrb[0].mxu0
      %v2261 = vpop.f32.mrb[0].mxu0
      %v2262 = vadd.f32 0.0, %v2261
      %v2263 = vpop.f32.mrb[0].mxu0
      %2264 = vmatprep.mubr.bf16.mxu0 0
      %2265 = vmatmul.mubr.bf16.gmra.mrb[0].mxu0 %v1877
      %v2266 = vpop.f32.mrb[0].mxu0
      %v2267 = vadd.f32 0.0, %v2266
      %v2268 = vpop.f32.mrb[0].mxu0
      %v2269 = vpop.f32.mrb[0].mxu0
      %v2270 = vadd.f32 0.0, %v2269
      %v2271 = vpop.f32.mrb[0].mxu0
      %2272 = vmatprep.mubr.bf16.mxu0 0
      %2273 = vmatmul.mubr.bf16.gmra.mrb[0].mxu0 %v1880
      %v2274 = vpop.f32.mrb[0].mxu0
      %v2275 = vadd.f32 0.0, %v2274
      %v2276 = vpop.f32.mrb[0].mxu0
      %v2277 = vpop.f32.mrb[0].mxu0
      %v2278 = vadd.f32 0.0, %v2277
      %v2279 = vpop.f32.mrb[0].mxu0
      %2280 = vmatprep.mubr.bf16.mxu0 0
      %2281 = vmatmul.mubr.bf16.gmra.mrb[0].mxu0 %v2112
      %v2282 = vpop.f32.mrb[0].mxu0
      %v2283 = vadd.f32 0.0, %v2282
      %v2284 = vpop.f32.mrb[0].mxu0
      %v2285 = vpop.f32.mrb[0].mxu0
      %v2286 = vadd.f32 0.0, %v2285
      %v2287 = vpop.f32.mrb[0].mxu0
      %2288 = vmatprep.mubr.bf16.mxu0 0
      %2289 = vmatmul.mubr.bf16.gmra.mrb[0].mxu0 %v2115
      %v2290 = vpop.f32.mrb[0].mxu0
      %v2291 = vadd.f32 0.0, %v2290
      %v2292 = vpop.f32.mrb[0].mxu0
      %v2293 = vpop.f32.mrb[0].mxu0
      %v2294 = vadd.f32 0.0, %v2293
      %v2295 = vpop.f32.mrb[0].mxu0
      %2296 = vdwg.mxu0
      %v2297 = vadd.f32 %v2065, %v2155
      %v2298 = vadd.f32 %v2066, %v2158
      %v2299 = vadd.f32 %v2067, %v2163
      %v2300 = vadd.f32 %v2068, %v2166
      %v2301 = vadd.f32 %v2069, %v2171
      %v2302 = vadd.f32 %v2070, %v2174
      %v2303 = vadd.f32 %v2071, %v2179
      %v2304 = vadd.f32 %v2072, %v2182
      %v2305 = vadd.f32 %v2073, %v2187
      %v2306 = vadd.f32 %v2074, %v2190
      %v2307 = vadd.f32 %v2075, %v2195
      %v2308 = vadd.f32 %v2076, %v2198
      %v2309 = vadd.f32 %v2077, %v2203
      %v2310 = vadd.f32 %v2078, %v2206
      %v2311 = vadd.f32 %v2079, %v2211
      %v2312 = vadd.f32 %v2080, %v2214
      %v2313 = vadd.f32 %v2081, %v2219
      %v2314 = vadd.f32 %v2082, %v2222
      %v2315 = vadd.f32 %v2083, %v2227
      %v2316 = vadd.f32 %v2084, %v2230
      %v2317 = vadd.f32 %v2085, %v2235
      %v2318 = vadd.f32 %v2086, %v2238
      %v2319 = vadd.f32 %v2087, %v2243
      %v2320 = vadd.f32 %v2088, %v2246
      %v2321 = vadd.f32 %v2089, %v2251
      %v2322 = vadd.f32 %v2090, %v2254
      %v2323 = vadd.f32 %v2091, %v2259
      %v2324 = vadd.f32 %v2092, %v2262
      %v2325 = vadd.f32 %v2093, %v2267
      %v2326 = vadd.f32 %v2094, %v2270
      %v2327 = vadd.f32 %v2095, %v2275
      %v2328 = vadd.f32 %v2096, %v2278
      %v2329 = vadd.f32 %v2097, %v2283
      %v2330 = vadd.f32 %v2098, %v2286
      %v2331 = vadd.f32 %v2099, %v2291
      %v2332 = vadd.f32 %v2100, %v2294
      %s2333 = scalar_lea.vmem %s5, 8
      %v2334 = vld [vmem:[%s2333] sm:$0x3]
      %vm2335 = vsmask.f32 6400
      %v2336 = vrot.slane %v1184, 1
      %v2337 = vrot.slane %v1180, 2
      %v2338 = vor.u32 %v2336, %v2337
      %v2339 = vrot.slane %v1192, 1
      %v2340 = vrot.slane %v1188, 2
      %v2341 = vor.u32 %v2339, %v2340
      %v2342 = vsel %vm2335, %v2338, %v2341
      %v2343 = vrot.slane %v1200, 1
      %v2344 = vrot.slane %v1196, 2
      %v2345 = vor.u32 %v2343, %v2344
      %v2346 = vsel %vm2335, %v2341, %v2345
      %v2347 = vrot.slane %v1208, 1
      %v2348 = vrot.slane %v1204, 2
      %v2349 = vor.u32 %v2347, %v2348
      %v2350 = vsel %vm2335, %v2345, %v2349
      %v2351 = vrot.slane %v1216, 1
      %v2352 = vrot.slane %v1212, 2
      %v2353 = vor.u32 %v2351, %v2352
      %v2354 = vsel %vm2335, %v2349, %v2353
      %v2355 = vrot.slane %v1224, 1
      %v2356 = vrot.slane %v1220, 2
      %v2357 = vor.u32 %v2355, %v2356
      %v2358 = vsel %vm2335, %v2353, %v2357
      %v2359 = vrot.slane %v1232, 1
      %v2360 = vrot.slane %v1228, 2
      %v2361 = vor.u32 %v2359, %v2360
      %v2362 = vsel %vm2335, %v2357, %v2361
      %v2363 = vrot.slane %v1240, 1
      %v2364 = vrot.slane %v1236, 2
      %v2365 = vor.u32 %v2363, %v2364
      %v2366 = vsel %vm2335, %v2361, %v2365
      %v2367 = vrot.slane %v1248, 1
      %v2368 = vrot.slane %v1244, 2
      %v2369 = vor.u32 %v2367, %v2368
      %v2370 = vsel %vm2335, %v2365, %v2369
      %v2371 = vrot.slane %v1256, 1
      %v2372 = vrot.slane %v1252, 2
      %v2373 = vor.u32 %v2371, %v2372
      %v2374 = vsel %vm2335, %v2369, %v2373
      %v2375 = vrot.slane %v1264, 1
      %v2376 = vrot.slane %v1260, 2
      %v2377 = vor.u32 %v2375, %v2376
      %v2378 = vsel %vm2335, %v2373, %v2377
      %v2379 = vrot.slane %v1272, 1
      %v2380 = vrot.slane %v1268, 2
      %v2381 = vor.u32 %v2379, %v2380
      %v2382 = vsel %vm2335, %v2377, %v2381
      %v2383 = vrot.slane %v1280, 1
      %v2384 = vrot.slane %v1276, 2
      %v2385 = vor.u32 %v2383, %v2384
      %v2386 = vsel %vm2335, %v2381, %v2385
      %v2387 = vrot.slane %v1288, 1
      %v2388 = vrot.slane %v1284, 2
      %v2389 = vor.u32 %v2387, %v2388
      %v2390 = vsel %vm2335, %v2385, %v2389
      %v2391 = vrot.slane %v1296, 1
      %v2392 = vrot.slane %v1292, 2
      %v2393 = vor.u32 %v2391, %v2392
      %v2394 = vsel %vm2335, %v2389, %v2393
      %v2395 = vrot.slane %v1304, 1
      %v2396 = vrot.slane %v1300, 2
      %v2397 = vor.u32 %v2395, %v2396
      %v2398 = vsel %vm2335, %v2393, %v2397
      %v2399 = vrot.slane %v1312, 1
      %v2400 = vrot.slane %v1308, 2
      %v2401 = vor.u32 %v2399, %v2400
      %v2402 = vsel %vm2335, %v2397, %v2401
      %v2404 = vshrl.u32 %v2101, 16
      %v2406 = vrot.slane %v2404, 1
      %v2407 = vshll.u32 %v2101, 16
      %v2409 = vrot.slane %v2407, 2
      %v2410 = vor.u32 %v2406, %v2409
      %v2411 = vsel %vm2335, %v2401, %v2410
      %v2413 = vshrl.u32 %v2102, 16
      %v2415 = vrot.slane %v2413, 1
      %v2416 = vshll.u32 %v2102, 16
      %v2418 = vrot.slane %v2416, 2
      %v2419 = vor.u32 %v2415, %v2418
      %v2420 = vsel %vm2335, %v2410, %v2419
      %v2422 = vsel %vm1320, %v2342, 0
      %v2425 = vsel %vm1320, %v2346, 0
      %v2428 = vsel %vm1320, %v2350, 0
      %v2431 = vsel %vm1320, %v2354, 0
      %v2434 = vsel %vm1320, %v2358, 0
      %v2437 = vsel %vm1320, %v2362, 0
      %v2440 = vsel %vm1320, %v2366, 0
      %v2443 = vsel %vm1320, %v2370, 0
      %v2446 = vsel %vm1320, %v2374, 0
      %v2449 = vsel %vm1320, %v2378, 0
      %v2452 = vsel %vm1320, %v2382, 0
      %v2455 = vsel %vm1320, %v2386, 0
      %v2458 = vsel %vm1320, %v2390, 0
      %v2461 = vsel %vm1320, %v2394, 0
      %v2464 = vsel %vm1320, %v2398, 0
      %v2467 = vsel %vm1320, %v2402, 0
      %v2470 = vsel %vm1320, %v2411, 0
      %v2473 = vsel %vm1320, %v2420, 0
      %v2476 = vsel %vm1375, %v2334, 0
      %2478 = vmatprep.subr.bf16.mxu0 0
      %2479 = vmatpush1.bf16.msra.mxu0 %v2476
      %2480 = vmatprep.subr.bf16.mxu0 0
      %2481 = vmatpush1.bf16.msra.mxu0 0
      %2482 = vmatprep.subr.bf16.mxu0 0
      %2483 = vmatpush1.bf16.msra.mxu0 0
      %2484 = vmatprep.subr.bf16.mxu0 0
      %2485 = vmatpush1.bf16.msra.mxu0 0
      %2486 = vmatprep.subr.bf16.mxu0 0
      %2487 = vmatpush1.bf16.msra.mxu0 0
      %2488 = vmatprep.subr.bf16.mxu0 0
      %2489 = vmatpush1.bf16.msra.mxu0 0
      %2490 = vmatprep.subr.bf16.mxu0 0
      %2491 = vmatpush1.bf16.msra.mxu0 0
      %2492 = vmatprep.subr.bf16.mxu0 0
      %2493 = vmatpush1.bf16.msra.mxu0 0
      %2494 = vmatprep.subr.bf16.mxu0 0
      %2495 = vmatpush1.bf16.msra.mxu0 0
      %2496 = vmatprep.subr.bf16.mxu0 0
      %2497 = vmatpush1.bf16.msra.mxu0 0
      %2498 = vmatprep.subr.bf16.mxu0 0
      %2499 = vmatpush1.bf16.msra.mxu0 0
      %2500 = vmatprep.subr.bf16.mxu0 0
      %2501 = vmatpush1.bf16.msra.mxu0 0
      %2502 = vmatprep.subr.bf16.mxu0 0
      %2503 = vmatpush1.bf16.msra.mxu0 0
      %2504 = vmatprep.subr.bf16.mxu0 0
      %2505 = vmatpush1.bf16.msra.mxu0 0
      %2506 = vmatprep.subr.bf16.mxu0 0
      %2507 = vmatpush1.bf16.msra.mxu0 0
      %2508 = vmatprep.subr.bf16.mxu0 0
      %2509 = vmatpush1.bf16.msra.mxu0 0
      %2510 = vmatprep.mubr.bf16.mxu0 0
      %2511 = vmatmul.mubr.bf16.gmra.mrb[0].mxu0 %v2422
      %v2512 = vpop.f32.mrb[0].mxu0
      %v2513 = vadd.f32 0.0, %v2512
      %v2514 = vpop.f32.mrb[0].mxu0
      %v2515 = vpop.f32.mrb[0].mxu0
      %v2516 = vadd.f32 0.0, %v2515
      %v2517 = vpop.f32.mrb[0].mxu0
      %2518 = vmatprep.mubr.bf16.mxu0 0
      %2519 = vmatmul.mubr.bf16.gmra.mrb[0].mxu0 %v2425
      %v2520 = vpop.f32.mrb[0].mxu0
      %v2521 = vadd.f32 0.0, %v2520
      %v2522 = vpop.f32.mrb[0].mxu0
      %v2523 = vpop.f32.mrb[0].mxu0
      %v2524 = vadd.f32 0.0, %v2523
      %v2525 = vpop.f32.mrb[0].mxu0
      %2526 = vmatprep.mubr.bf16.mxu0 0
      %2527 = vmatmul.mubr.bf16.gmra.mrb[0].mxu0 %v2428
      %v2528 = vpop.f32.mrb[0].mxu0
      %v2529 = vadd.f32 0.0, %v2528
      %v2530 = vpop.f32.mrb[0].mxu0
      %v2531 = vpop.f32.mrb[0].mxu0
      %v2532 = vadd.f32 0.0, %v2531
      %v2533 = vpop.f32.mrb[0].mxu0
      %2534 = vmatprep.mubr.bf16.mxu0 0
      %2535 = vmatmul.mubr.bf16.gmra.mrb[0].mxu0 %v2431
      %v2536 = vpop.f32.mrb[0].mxu0
      %v2537 = vadd.f32 0.0, %v2536
      %v2538 = vpop.f32.mrb[0].mxu0
      %v2539 = vpop.f32.mrb[0].mxu0
      %v2540 = vadd.f32 0.0, %v2539
      %v2541 = vpop.f32.mrb[0].mxu0
      %2542 = vmatprep.mubr.bf16.mxu0 0
      %2543 = vmatmul.mubr.bf16.gmra.mrb[0].mxu0 %v2434
      %v2544 = vpop.f32.mrb[0].mxu0
      %v2545 = vadd.f32 0.0, %v2544
      %v2546 = vpop.f32.mrb[0].mxu0
      %v2547 = vpop.f32.mrb[0].mxu0
      %v2548 = vadd.f32 0.0, %v2547
      %v2549 = vpop.f32.mrb[0].mxu0
      %2550 = vmatprep.mubr.bf16.mxu0 0
      %2551 = vmatmul.mubr.bf16.gmra.mrb[0].mxu0 %v2437
      %v2552 = vpop.f32.mrb[0].mxu0
      %v2553 = vadd.f32 0.0, %v2552
      %v2554 = vpop.f32.mrb[0].mxu0
      %v2555 = vpop.f32.mrb[0].mxu0
      %v2556 = vadd.f32 0.0, %v2555
      %v2557 = vpop.f32.mrb[0].mxu0
      %2558 = vmatprep.mubr.bf16.mxu0 0
      %2559 = vmatmul.mubr.bf16.gmra.mrb[0].mxu0 %v2440
      %v2560 = vpop.f32.mrb[0].mxu0
      %v2561 = vadd.f32 0.0, %v2560
      %v2562 = vpop.f32.mrb[0].mxu0
      %v2563 = vpop.f32.mrb[0].mxu0
      %v2564 = vadd.f32 0.0, %v2563
      %v2565 = vpop.f32.mrb[0].mxu0
      %2566 = vmatprep.mubr.bf16.mxu0 0
      %2567 = vmatmul.mubr.bf16.gmra.mrb[0].mxu0 %v2443
      %v2568 = vpop.f32.mrb[0].mxu0
      %v2569 = vadd.f32 0.0, %v2568
      %v2570 = vpop.f32.mrb[0].mxu0
      %v2571 = vpop.f32.mrb[0].mxu0
      %v2572 = vadd.f32 0.0, %v2571
      %v2573 = vpop.f32.mrb[0].mxu0
      %2574 = vmatprep.mubr.bf16.mxu0 0
      %2575 = vmatmul.mubr.bf16.gmra.mrb[0].mxu0 %v2446
      %v2576 = vpop.f32.mrb[0].mxu0
      %v2577 = vadd.f32 0.0, %v2576
      %v2578 = vpop.f32.mrb[0].mxu0
      %v2579 = vpop.f32.mrb[0].mxu0
      %v2580 = vadd.f32 0.0, %v2579
      %v2581 = vpop.f32.mrb[0].mxu0
      %2582 = vmatprep.mubr.bf16.mxu0 0
      %2583 = vmatmul.mubr.bf16.gmra.mrb[0].mxu0 %v2449
      %v2584 = vpop.f32.mrb[0].mxu0
      %v2585 = vadd.f32 0.0, %v2584
      %v2586 = vpop.f32.mrb[0].mxu0
      %v2587 = vpop.f32.mrb[0].mxu0
      %v2588 = vadd.f32 0.0, %v2587
      %v2589 = vpop.f32.mrb[0].mxu0
      %2590 = vmatprep.mubr.bf16.mxu0 0
      %2591 = vmatmul.mubr.bf16.gmra.mrb[0].mxu0 %v2452
      %v2592 = vpop.f32.mrb[0].mxu0
      %v2593 = vadd.f32 0.0, %v2592
      %v2594 = vpop.f32.mrb[0].mxu0
      %v2595 = vpop.f32.mrb[0].mxu0
      %v2596 = vadd.f32 0.0, %v2595
      %v2597 = vpop.f32.mrb[0].mxu0
      %2598 = vmatprep.mubr.bf16.mxu0 0
      %2599 = vmatmul.mubr.bf16.gmra.mrb[0].mxu0 %v2455
      %v2600 = vpop.f32.mrb[0].mxu0
      %v2601 = vadd.f32 0.0, %v2600
      %v2602 = vpop.f32.mrb[0].mxu0
      %v2603 = vpop.f32.mrb[0].mxu0
      %v2604 = vadd.f32 0.0, %v2603
      %v2605 = vpop.f32.mrb[0].mxu0
      %2606 = vmatprep.mubr.bf16.mxu0 0
      %2607 = vmatmul.mubr.bf16.gmra.mrb[0].mxu0 %v2458
      %v2608 = vpop.f32.mrb[0].mxu0
      %v2609 = vadd.f32 0.0, %v2608
      %v2610 = vpop.f32.mrb[0].mxu0
      %v2611 = vpop.f32.mrb[0].mxu0
      %v2612 = vadd.f32 0.0, %v2611
      %v2613 = vpop.f32.mrb[0].mxu0
      %2614 = vmatprep.mubr.bf16.mxu0 0
      %2615 = vmatmul.mubr.bf16.gmra.mrb[0].mxu0 %v2461
      %v2616 = vpop.f32.mrb[0].mxu0
      %v2617 = vadd.f32 0.0, %v2616
      %v2618 = vpop.f32.mrb[0].mxu0
      %v2619 = vpop.f32.mrb[0].mxu0
      %v2620 = vadd.f32 0.0, %v2619
      %v2621 = vpop.f32.mrb[0].mxu0
      %2622 = vmatprep.mubr.bf16.mxu0 0
      %2623 = vmatmul.mubr.bf16.gmra.mrb[0].mxu0 %v2464
      %v2624 = vpop.f32.mrb[0].mxu0
      %v2625 = vadd.f32 0.0, %v2624
      %v2626 = vpop.f32.mrb[0].mxu0
      %v2627 = vpop.f32.mrb[0].mxu0
      %v2628 = vadd.f32 0.0, %v2627
      %v2629 = vpop.f32.mrb[0].mxu0
      %2630 = vmatprep.mubr.bf16.mxu0 0
      %2631 = vmatmul.mubr.bf16.gmra.mrb[0].mxu0 %v2467
      %v2632 = vpop.f32.mrb[0].mxu0
      %v2633 = vadd.f32 0.0, %v2632
      %v2634 = vpop.f32.mrb[0].mxu0
      %v2635 = vpop.f32.mrb[0].mxu0
      %v2636 = vadd.f32 0.0, %v2635
      %v2637 = vpop.f32.mrb[0].mxu0
      %2638 = vmatprep.mubr.bf16.mxu0 0
      %2639 = vmatmul.mubr.bf16.gmra.mrb[0].mxu0 %v2470
      %v2640 = vpop.f32.mrb[0].mxu0
      %v2641 = vadd.f32 0.0, %v2640
      %v2642 = vpop.f32.mrb[0].mxu0
      %v2643 = vpop.f32.mrb[0].mxu0
      %v2644 = vadd.f32 0.0, %v2643
      %v2645 = vpop.f32.mrb[0].mxu0
      %2646 = vmatprep.mubr.bf16.mxu0 0
      %2647 = vmatmul.mubr.bf16.gmra.mrb[0].mxu0 %v2473
      %v2648 = vpop.f32.mrb[0].mxu0
      %v2649 = vadd.f32 0.0, %v2648
      %v2650 = vpop.f32.mrb[0].mxu0
      %v2651 = vpop.f32.mrb[0].mxu0
      %v2652 = vadd.f32 0.0, %v2651
      %v2653 = vpop.f32.mrb[0].mxu0
      %2654 = vdwg.mxu0
      %v2655 = vadd.f32 %v2297, %v2513
      %v2656 = vadd.f32 %v2298, %v2516
      %v2657 = vadd.f32 %v2299, %v2521
      %v2658 = vadd.f32 %v2300, %v2524
      %v2659 = vadd.f32 %v2301, %v2529
      %v2660 = vadd.f32 %v2302, %v2532
      %v2661 = vadd.f32 %v2303, %v2537
      %v2662 = vadd.f32 %v2304, %v2540
      %v2663 = vadd.f32 %v2305, %v2545
      %v2664 = vadd.f32 %v2306, %v2548
      %v2665 = vadd.f32 %v2307, %v2553
      %v2666 = vadd.f32 %v2308, %v2556
      %v2667 = vadd.f32 %v2309, %v2561
      %v2668 = vadd.f32 %v2310, %v2564
      %v2669 = vadd.f32 %v2311, %v2569
      %v2670 = vadd.f32 %v2312, %v2572
      %v2671 = vadd.f32 %v2313, %v2577
      %v2672 = vadd.f32 %v2314, %v2580
      %v2673 = vadd.f32 %v2315, %v2585
      %v2674 = vadd.f32 %v2316, %v2588
      %v2675 = vadd.f32 %v2317, %v2593
      %v2676 = vadd.f32 %v2318, %v2596
      %v2677 = vadd.f32 %v2319, %v2601
      %v2678 = vadd.f32 %v2320, %v2604
      %v2679 = vadd.f32 %v2321, %v2609
      %v2680 = vadd.f32 %v2322, %v2612
      %v2681 = vadd.f32 %v2323, %v2617
      %v2682 = vadd.f32 %v2324, %v2620
      %v2683 = vadd.f32 %v2325, %v2625
      %v2684 = vadd.f32 %v2326, %v2628
      %v2685 = vadd.f32 %v2327, %v2633
      %v2686 = vadd.f32 %v2328, %v2636
      %v2687 = vadd.f32 %v2329, %v2641
      %v2688 = vadd.f32 %v2330, %v2644
      %v2689 = vadd.f32 %v2331, %v2649
      %v2690 = vadd.f32 %v2332, %v2652
      %s2691 = scalar_lea.vmem %s5, 10
      %v2692 = vld [vmem:[%s2691] sm:$0x3]
      %vm2693 = vcmask 1045504
      %v2694 = vrot.slane %v1150, 2
      %v2695 = vrot.slane %v1151, 2
      %v2696 = vsel %vm2693, %v2694, %v2695
      %v2697 = vrot.slane %v1152, 2
      %v2698 = vsel %vm2693, %v2695, %v2697
      %v2699 = vrot.slane %v1153, 2
      %v2700 = vsel %vm2693, %v2697, %v2699
      %v2701 = vrot.slane %v1154, 2
      %v2702 = vsel %vm2693, %v2699, %v2701
      %v2703 = vrot.slane %v1155, 2
      %v2704 = vsel %vm2693, %v2701, %v2703
      %v2705 = vrot.slane %v1156, 2
      %v2706 = vsel %vm2693, %v2703, %v2705
      %v2707 = vrot.slane %v1157, 2
      %v2708 = vsel %vm2693, %v2705, %v2707
      %v2709 = vrot.slane %v1158, 2
      %v2710 = vsel %vm2693, %v2707, %v2709
      %v2711 = vrot.slane %v1159, 2
      %v2712 = vsel %vm2693, %v2709, %v2711
      %v2713 = vrot.slane %v1160, 2
      %v2714 = vsel %vm2693, %v2711, %v2713
      %v2715 = vrot.slane %v1161, 2
      %v2716 = vsel %vm2693, %v2713, %v2715
      %v2717 = vrot.slane %v1162, 2
      %v2718 = vsel %vm2693, %v2715, %v2717
      %v2719 = vrot.slane %v1163, 2
      %v2720 = vsel %vm2693, %v2717, %v2719
      %v2721 = vrot.slane %v1164, 2
      %v2722 = vsel %vm2693, %v2719, %v2721
      %v2723 = vrot.slane %v1165, 2
      %v2724 = vsel %vm2693, %v2721, %v2723
      %v2725 = vrot.slane %v1166, 2
      %v2726 = vsel %vm2693, %v2723, %v2725
      %v2727 = vrot.slane %v2101, 2
      %v2728 = vsel %vm2693, %v2725, %v2727
      %v2729 = vrot.slane %v2102, 2
      %v2730 = vsel %vm2693, %v2727, %v2729
      %v2732 = vsel %vm1320, %v2696, 0
      %v2735 = vsel %vm1320, %v2698, 0
      %v2738 = vsel %vm1320, %v2700, 0
      %v2741 = vsel %vm1320, %v2702, 0
      %v2744 = vsel %vm1320, %v2704, 0
      %v2747 = vsel %vm1320, %v2706, 0
      %v2750 = vsel %vm1320, %v2708, 0
      %v2753 = vsel %vm1320, %v2710, 0
      %v2756 = vsel %vm1320, %v2712, 0
      %v2759 = vsel %vm1320, %v2714, 0
      %v2762 = vsel %vm1320, %v2716, 0
      %v2765 = vsel %vm1320, %v2718, 0
      %v2768 = vsel %vm1320, %v2720, 0
      %v2771 = vsel %vm1320, %v2722, 0
      %v2774 = vsel %vm1320, %v2724, 0
      %v2777 = vsel %vm1320, %v2726, 0
      %v2780 = vsel %vm1320, %v2728, 0
      %v2783 = vsel %vm1320, %v2730, 0
      %v2786 = vsel %vm1375, %v2692, 0
      %2788 = vmatprep.subr.bf16.mxu0 0
      %2789 = vmatpush1.bf16.msra.mxu0 %v2786
      %2790 = vmatprep.subr.bf16.mxu0 0
      %2791 = vmatpush1.bf16.msra.mxu0 0
      %2792 = vmatprep.subr.bf16.mxu0 0
      %2793 = vmatpush1.bf16.msra.mxu0 0
      %2794 = vmatprep.subr.bf16.mxu0 0
      %2795 = vmatpush1.bf16.msra.mxu0 0
      %2796 = vmatprep.subr.bf16.mxu0 0
      %2797 = vmatpush1.bf16.msra.mxu0 0
      %2798 = vmatprep.subr.bf16.mxu0 0
      %2799 = vmatpush1.bf16.msra.mxu0 0
      %2800 = vmatprep.subr.bf16.mxu0 0
      %2801 = vmatpush1.bf16.msra.mxu0 0
      %2802 = vmatprep.subr.bf16.mxu0 0
      %2803 = vmatpush1.bf16.msra.mxu0 0
      %2804 = vmatprep.subr.bf16.mxu0 0
      %2805 = vmatpush1.bf16.msra.mxu0 0
      %2806 = vmatprep.subr.bf16.mxu0 0
      %2807 = vmatpush1.bf16.msra.mxu0 0
      %2808 = vmatprep.subr.bf16.mxu0 0
      %2809 = vmatpush1.bf16.msra.mxu0 0
      %2810 = vmatprep.subr.bf16.mxu0 0
      %2811 = vmatpush1.bf16.msra.mxu0 0
      %2812 = vmatprep.subr.bf16.mxu0 0
      %2813 = vmatpush1.bf16.msra.mxu0 0
      %2814 = vmatprep.subr.bf16.mxu0 0
      %2815 = vmatpush1.bf16.msra.mxu0 0
      %2816 = vmatprep.subr.bf16.mxu0 0
      %2817 = vmatpush1.bf16.msra.mxu0 0
      %2818 = vmatprep.subr.bf16.mxu0 0
      %2819 = vmatpush1.bf16.msra.mxu0 0
      %2820 = vmatprep.mubr.bf16.mxu0 0
      %2821 = vmatmul.mubr.bf16.gmra.mrb[0].mxu0 %v2732
      %v2822 = vpop.f32.mrb[0].mxu0
      %v2823 = vadd.f32 0.0, %v2822
      %v2824 = vpop.f32.mrb[0].mxu0
      %v2825 = vpop.f32.mrb[0].mxu0
      %v2826 = vadd.f32 0.0, %v2825
      %v2827 = vpop.f32.mrb[0].mxu0
      %2828 = vmatprep.mubr.bf16.mxu0 0
      %2829 = vmatmul.mubr.bf16.gmra.mrb[0].mxu0 %v2735
      %v2830 = vpop.f32.mrb[0].mxu0
      %v2831 = vadd.f32 0.0, %v2830
      %v2832 = vpop.f32.mrb[0].mxu0
      %v2833 = vpop.f32.mrb[0].mxu0
      %v2834 = vadd.f32 0.0, %v2833
      %v2835 = vpop.f32.mrb[0].mxu0
      %2836 = vmatprep.mubr.bf16.mxu0 0
      %2837 = vmatmul.mubr.bf16.gmra.mrb[0].mxu0 %v2738
      %v2838 = vpop.f32.mrb[0].mxu0
      %v2839 = vadd.f32 0.0, %v2838
      %v2840 = vpop.f32.mrb[0].mxu0
      %v2841 = vpop.f32.mrb[0].mxu0
      %v2842 = vadd.f32 0.0, %v2841
      %v2843 = vpop.f32.mrb[0].mxu0
      %2844 = vmatprep.mubr.bf16.mxu0 0
      %2845 = vmatmul.mubr.bf16.gmra.mrb[0].mxu0 %v2741
      %v2846 = vpop.f32.mrb[0].mxu0
      %v2847 = vadd.f32 0.0, %v2846
      %v2848 = vpop.f32.mrb[0].mxu0
      %v2849 = vpop.f32.mrb[0].mxu0
      %v2850 = vadd.f32 0.0, %v2849
      %v2851 = vpop.f32.mrb[0].mxu0
      %2852 = vmatprep.mubr.bf16.mxu0 0
      %2853 = vmatmul.mubr.bf16.gmra.mrb[0].mxu0 %v2744
      %v2854 = vpop.f32.mrb[0].mxu0
      %v2855 = vadd.f32 0.0, %v2854
      %v2856 = vpop.f32.mrb[0].mxu0
      %v2857 = vpop.f32.mrb[0].mxu0
      %v2858 = vadd.f32 0.0, %v2857
      %v2859 = vpop.f32.mrb[0].mxu0
      %2860 = vmatprep.mubr.bf16.mxu0 0
      %2861 = vmatmul.mubr.bf16.gmra.mrb[0].mxu0 %v2747
      %v2862 = vpop.f32.mrb[0].mxu0
      %v2863 = vadd.f32 0.0, %v2862
      %v2864 = vpop.f32.mrb[0].mxu0
      %v2865 = vpop.f32.mrb[0].mxu0
      %v2866 = vadd.f32 0.0, %v2865
      %v2867 = vpop.f32.mrb[0].mxu0
      %2868 = vmatprep.mubr.bf16.mxu0 0
      %2869 = vmatmul.mubr.bf16.gmra.mrb[0].mxu0 %v2750
      %v2870 = vpop.f32.mrb[0].mxu0
      %v2871 = vadd.f32 0.0, %v2870
      %v2872 = vpop.f32.mrb[0].mxu0
      %v2873 = vpop.f32.mrb[0].mxu0
      %v2874 = vadd.f32 0.0, %v2873
      %v2875 = vpop.f32.mrb[0].mxu0
      %2876 = vmatprep.mubr.bf16.mxu0 0
      %2877 = vmatmul.mubr.bf16.gmra.mrb[0].mxu0 %v2753
      %v2878 = vpop.f32.mrb[0].mxu0
      %v2879 = vadd.f32 0.0, %v2878
      %v2880 = vpop.f32.mrb[0].mxu0
      %v2881 = vpop.f32.mrb[0].mxu0
      %v2882 = vadd.f32 0.0, %v2881
      %v2883 = vpop.f32.mrb[0].mxu0
      %2884 = vmatprep.mubr.bf16.mxu0 0
      %2885 = vmatmul.mubr.bf16.gmra.mrb[0].mxu0 %v2756
      %v2886 = vpop.f32.mrb[0].mxu0
      %v2887 = vadd.f32 0.0, %v2886
      %v2888 = vpop.f32.mrb[0].mxu0
      %v2889 = vpop.f32.mrb[0].mxu0
      %v2890 = vadd.f32 0.0, %v2889
      %v2891 = vpop.f32.mrb[0].mxu0
      %2892 = vmatprep.mubr.bf16.mxu0 0
      %2893 = vmatmul.mubr.bf16.gmra.mrb[0].mxu0 %v2759
      %v2894 = vpop.f32.mrb[0].mxu0
      %v2895 = vadd.f32 0.0, %v2894
      %v2896 = vpop.f32.mrb[0].mxu0
      %v2897 = vpop.f32.mrb[0].mxu0
      %v2898 = vadd.f32 0.0, %v2897
      %v2899 = vpop.f32.mrb[0].mxu0
      %2900 = vmatprep.mubr.bf16.mxu0 0
      %2901 = vmatmul.mubr.bf16.gmra.mrb[0].mxu0 %v2762
      %v2902 = vpop.f32.mrb[0].mxu0
      %v2903 = vadd.f32 0.0, %v2902
      %v2904 = vpop.f32.mrb[0].mxu0
      %v2905 = vpop.f32.mrb[0].mxu0
      %v2906 = vadd.f32 0.0, %v2905
      %v2907 = vpop.f32.mrb[0].mxu0
      %2908 = vmatprep.mubr.bf16.mxu0 0
      %2909 = vmatmul.mubr.bf16.gmra.mrb[0].mxu0 %v2765
      %v2910 = vpop.f32.mrb[0].mxu0
      %v2911 = vadd.f32 0.0, %v2910
      %v2912 = vpop.f32.mrb[0].mxu0
      %v2913 = vpop.f32.mrb[0].mxu0
      %v2914 = vadd.f32 0.0, %v2913
      %v2915 = vpop.f32.mrb[0].mxu0
      %2916 = vmatprep.mubr.bf16.mxu0 0
      %2917 = vmatmul.mubr.bf16.gmra.mrb[0].mxu0 %v2768
      %v2918 = vpop.f32.mrb[0].mxu0
      %v2919 = vadd.f32 0.0, %v2918
      %v2920 = vpop.f32.mrb[0].mxu0
      %v2921 = vpop.f32.mrb[0].mxu0
      %v2922 = vadd.f32 0.0, %v2921
      %v2923 = vpop.f32.mrb[0].mxu0
      %2924 = vmatprep.mubr.bf16.mxu0 0
      %2925 = vmatmul.mubr.bf16.gmra.mrb[0].mxu0 %v2771
      %v2926 = vpop.f32.mrb[0].mxu0
      %v2927 = vadd.f32 0.0, %v2926
      %v2928 = vpop.f32.mrb[0].mxu0
      %v2929 = vpop.f32.mrb[0].mxu0
      %v2930 = vadd.f32 0.0, %v2929
      %v2931 = vpop.f32.mrb[0].mxu0
      %2932 = vmatprep.mubr.bf16.mxu0 0
      %2933 = vmatmul.mubr.bf16.gmra.mrb[0].mxu0 %v2774
      %v2934 = vpop.f32.mrb[0].mxu0
      %v2935 = vadd.f32 0.0, %v2934
      %v2936 = vpop.f32.mrb[0].mxu0
      %v2937 = vpop.f32.mrb[0].mxu0
      %v2938 = vadd.f32 0.0, %v2937
      %v2939 = vpop.f32.mrb[0].mxu0
      %2940 = vmatprep.mubr.bf16.mxu0 0
      %2941 = vmatmul.mubr.bf16.gmra.mrb[0].mxu0 %v2777
      %v2942 = vpop.f32.mrb[0].mxu0
      %v2943 = vadd.f32 0.0, %v2942
      %v2944 = vpop.f32.mrb[0].mxu0
      %v2945 = vpop.f32.mrb[0].mxu0
      %v2946 = vadd.f32 0.0, %v2945
      %v2947 = vpop.f32.mrb[0].mxu0
      %2948 = vmatprep.mubr.bf16.mxu0 0
      %2949 = vmatmul.mubr.bf16.gmra.mrb[0].mxu0 %v2780
      %v2950 = vpop.f32.mrb[0].mxu0
      %v2951 = vadd.f32 0.0, %v2950
      %v2952 = vpop.f32.mrb[0].mxu0
      %v2953 = vpop.f32.mrb[0].mxu0
      %v2954 = vadd.f32 0.0, %v2953
      %v2955 = vpop.f32.mrb[0].mxu0
      %2956 = vmatprep.mubr.bf16.mxu0 0
      %2957 = vmatmul.mubr.bf16.gmra.mrb[0].mxu0 %v2783
      %v2958 = vpop.f32.mrb[0].mxu0
      %v2959 = vadd.f32 0.0, %v2958
      %v2960 = vpop.f32.mrb[0].mxu0
      %v2961 = vpop.f32.mrb[0].mxu0
      %v2962 = vadd.f32 0.0, %v2961
      %v2963 = vpop.f32.mrb[0].mxu0
      %2964 = vdwg.mxu0
      %v2965 = vadd.f32 %v2655, %v2823
      %v2966 = vadd.f32 %v2656, %v2826
      %v2967 = vadd.f32 %v2657, %v2831
      %v2968 = vadd.f32 %v2658, %v2834
      %v2969 = vadd.f32 %v2659, %v2839
      %v2970 = vadd.f32 %v2660, %v2842
      %v2971 = vadd.f32 %v2661, %v2847
      %v2972 = vadd.f32 %v2662, %v2850
      %v2973 = vadd.f32 %v2663, %v2855
      %v2974 = vadd.f32 %v2664, %v2858
      %v2975 = vadd.f32 %v2665, %v2863
      %v2976 = vadd.f32 %v2666, %v2866
      %v2977 = vadd.f32 %v2667, %v2871
      %v2978 = vadd.f32 %v2668, %v2874
      %v2979 = vadd.f32 %v2669, %v2879
      %v2980 = vadd.f32 %v2670, %v2882
      %v2981 = vadd.f32 %v2671, %v2887
      %v2982 = vadd.f32 %v2672, %v2890
      %v2983 = vadd.f32 %v2673, %v2895
      %v2984 = vadd.f32 %v2674, %v2898
      %v2985 = vadd.f32 %v2675, %v2903
      %v2986 = vadd.f32 %v2676, %v2906
      %v2987 = vadd.f32 %v2677, %v2911
      %v2988 = vadd.f32 %v2678, %v2914
      %v2989 = vadd.f32 %v2679, %v2919
      %v2990 = vadd.f32 %v2680, %v2922
      %v2991 = vadd.f32 %v2681, %v2927
      %v2992 = vadd.f32 %v2682, %v2930
      %v2993 = vadd.f32 %v2683, %v2935
      %v2994 = vadd.f32 %v2684, %v2938
      %v2995 = vadd.f32 %v2685, %v2943
      %v2996 = vadd.f32 %v2686, %v2946
      %v2997 = vadd.f32 %v2687, %v2951
      %v2998 = vadd.f32 %v2688, %v2954
      %v2999 = vadd.f32 %v2689, %v2959
      %v3000 = vadd.f32 %v2690, %v2962
      %v3001 = vpack.c.bf16 %v1147, %v1146
      %v3002 = vpack.c.bf16 %v1148, %v1148
      %s3003 = scalar_lea.vmem %s5, 12
      %v3004 = vld [vmem:[%s3003] sm:$0x3]
      %v3007 = vrot.slane %v3001, 2
      %v3008 = vsel %vm2693, %v2727, %v3007
      %v3009 = vrot.slane %v3002, 2
      %v3010 = vsel %vm2693, %v3007, %v3009
      %v3012 = vsel %vm1320, %v3008, 0
      %v3015 = vsel %vm1320, %v3010, 0
      %v3018 = vsel %vm1375, %v3004, 0
      %3020 = vmatprep.subr.bf16.mxu0 0
      %3021 = vmatpush1.bf16.msra.mxu0 %v3018
      %3022 = vmatprep.subr.bf16.mxu0 0
      %3023 = vmatpush1.bf16.msra.mxu0 0
      %3024 = vmatprep.subr.bf16.mxu0 0
      %3025 = vmatpush1.bf16.msra.mxu0 0
      %3026 = vmatprep.subr.bf16.mxu0 0
      %3027 = vmatpush1.bf16.msra.mxu0 0
      %3028 = vmatprep.subr.bf16.mxu0 0
      %3029 = vmatpush1.bf16.msra.mxu0 0
      %3030 = vmatprep.subr.bf16.mxu0 0
      %3031 = vmatpush1.bf16.msra.mxu0 0
      %3032 = vmatprep.subr.bf16.mxu0 0
      %3033 = vmatpush1.bf16.msra.mxu0 0
      %3034 = vmatprep.subr.bf16.mxu0 0
      %3035 = vmatpush1.bf16.msra.mxu0 0
      %3036 = vmatprep.subr.bf16.mxu0 0
      %3037 = vmatpush1.bf16.msra.mxu0 0
      %3038 = vmatprep.subr.bf16.mxu0 0
      %3039 = vmatpush1.bf16.msra.mxu0 0
      %3040 = vmatprep.subr.bf16.mxu0 0
      %3041 = vmatpush1.bf16.msra.mxu0 0
      %3042 = vmatprep.subr.bf16.mxu0 0
      %3043 = vmatpush1.bf16.msra.mxu0 0
      %3044 = vmatprep.subr.bf16.mxu0 0
      %3045 = vmatpush1.bf16.msra.mxu0 0
      %3046 = vmatprep.subr.bf16.mxu0 0
      %3047 = vmatpush1.bf16.msra.mxu0 0
      %3048 = vmatprep.subr.bf16.mxu0 0
      %3049 = vmatpush1.bf16.msra.mxu0 0
      %3050 = vmatprep.subr.bf16.mxu0 0
      %3051 = vmatpush1.bf16.msra.mxu0 0
      %3052 = vmatprep.mubr.bf16.mxu0 0
      %3053 = vmatmul.mubr.bf16.gmra.mrb[0].mxu0 %v2735
      %v3054 = vpop.f32.mrb[0].mxu0
      %v3055 = vadd.f32 0.0, %v3054
      %v3056 = vpop.f32.mrb[0].mxu0
      %v3057 = vpop.f32.mrb[0].mxu0
      %v3058 = vadd.f32 0.0, %v3057
      %v3059 = vpop.f32.mrb[0].mxu0
      %3060 = vmatprep.mubr.bf16.mxu0 0
      %3061 = vmatmul.mubr.bf16.gmra.mrb[0].mxu0 %v2738
      %v3062 = vpop.f32.mrb[0].mxu0
      %v3063 = vadd.f32 0.0, %v3062
      %v3064 = vpop.f32.mrb[0].mxu0
      %v3065 = vpop.f32.mrb[0].mxu0
      %v3066 = vadd.f32 0.0, %v3065
      %v3067 = vpop.f32.mrb[0].mxu0
      %3068 = vmatprep.mubr.bf16.mxu0 0
      %3069 = vmatmul.mubr.bf16.gmra.mrb[0].mxu0 %v2741
      %v3070 = vpop.f32.mrb[0].mxu0
      %v3071 = vadd.f32 0.0, %v3070
      %v3072 = vpop.f32.mrb[0].mxu0
      %v3073 = vpop.f32.mrb[0].mxu0
      %v3074 = vadd.f32 0.0, %v3073
      %v3075 = vpop.f32.mrb[0].mxu0
      %3076 = vmatprep.mubr.bf16.mxu0 0
      %3077 = vmatmul.mubr.bf16.gmra.mrb[0].mxu0 %v2744
      %v3078 = vpop.f32.mrb[0].mxu0
      %v3079 = vadd.f32 0.0, %v3078
      %v3080 = vpop.f32.mrb[0].mxu0
      %v3081 = vpop.f32.mrb[0].mxu0
      %v3082 = vadd.f32 0.0, %v3081
      %v3083 = vpop.f32.mrb[0].mxu0
      %3084 = vmatprep.mubr.bf16.mxu0 0
      %3085 = vmatmul.mubr.bf16.gmra.mrb[0].mxu0 %v2747
      %v3086 = vpop.f32.mrb[0].mxu0
      %v3087 = vadd.f32 0.0, %v3086
      %v3088 = vpop.f32.mrb[0].mxu0
      %v3089 = vpop.f32.mrb[0].mxu0
      %v3090 = vadd.f32 0.0, %v3089
      %v3091 = vpop.f32.mrb[0].mxu0
      %3092 = vmatprep.mubr.bf16.mxu0 0
      %3093 = vmatmul.mubr.bf16.gmra.mrb[0].mxu0 %v2750
      %v3094 = vpop.f32.mrb[0].mxu0
      %v3095 = vadd.f32 0.0, %v3094
      %v3096 = vpop.f32.mrb[0].mxu0
      %v3097 = vpop.f32.mrb[0].mxu0
      %v3098 = vadd.f32 0.0, %v3097
      %v3099 = vpop.f32.mrb[0].mxu0
      %3100 = vmatprep.mubr.bf16.mxu0 0
      %3101 = vmatmul.mubr.bf16.gmra.mrb[0].mxu0 %v2753
      %v3102 = vpop.f32.mrb[0].mxu0
      %v3103 = vadd.f32 0.0, %v3102
      %v3104 = vpop.f32.mrb[0].mxu0
      %v3105 = vpop.f32.mrb[0].mxu0
      %v3106 = vadd.f32 0.0, %v3105
      %v3107 = vpop.f32.mrb[0].mxu0
      %3108 = vmatprep.mubr.bf16.mxu0 0
      %3109 = vmatmul.mubr.bf16.gmra.mrb[0].mxu0 %v2756
      %v3110 = vpop.f32.mrb[0].mxu0
      %v3111 = vadd.f32 0.0, %v3110
      %v3112 = vpop.f32.mrb[0].mxu0
      %v3113 = vpop.f32.mrb[0].mxu0
      %v3114 = vadd.f32 0.0, %v3113
      %v3115 = vpop.f32.mrb[0].mxu0
      %3116 = vmatprep.mubr.bf16.mxu0 0
      %3117 = vmatmul.mubr.bf16.gmra.mrb[0].mxu0 %v2759
      %v3118 = vpop.f32.mrb[0].mxu0
      %v3119 = vadd.f32 0.0, %v3118
      %v3120 = vpop.f32.mrb[0].mxu0
      %v3121 = vpop.f32.mrb[0].mxu0
      %v3122 = vadd.f32 0.0, %v3121
      %v3123 = vpop.f32.mrb[0].mxu0
      %3124 = vmatprep.mubr.bf16.mxu0 0
      %3125 = vmatmul.mubr.bf16.gmra.mrb[0].mxu0 %v2762
      %v3126 = vpop.f32.mrb[0].mxu0
      %v3127 = vadd.f32 0.0, %v3126
      %v3128 = vpop.f32.mrb[0].mxu0
      %v3129 = vpop.f32.mrb[0].mxu0
      %v3130 = vadd.f32 0.0, %v3129
      %v3131 = vpop.f32.mrb[0].mxu0
      %3132 = vmatprep.mubr.bf16.mxu0 0
      %3133 = vmatmul.mubr.bf16.gmra.mrb[0].mxu0 %v2765
      %v3134 = vpop.f32.mrb[0].mxu0
      %v3135 = vadd.f32 0.0, %v3134
      %v3136 = vpop.f32.mrb[0].mxu0
      %v3137 = vpop.f32.mrb[0].mxu0
      %v3138 = vadd.f32 0.0, %v3137
      %v3139 = vpop.f32.mrb[0].mxu0
      %3140 = vmatprep.mubr.bf16.mxu0 0
      %3141 = vmatmul.mubr.bf16.gmra.mrb[0].mxu0 %v2768
      %v3142 = vpop.f32.mrb[0].mxu0
      %v3143 = vadd.f32 0.0, %v3142
      %v3144 = vpop.f32.mrb[0].mxu0
      %v3145 = vpop.f32.mrb[0].mxu0
      %v3146 = vadd.f32 0.0, %v3145
      %v3147 = vpop.f32.mrb[0].mxu0
      %3148 = vmatprep.mubr.bf16.mxu0 0
      %3149 = vmatmul.mubr.bf16.gmra.mrb[0].mxu0 %v2771
      %v3150 = vpop.f32.mrb[0].mxu0
      %v3151 = vadd.f32 0.0, %v3150
      %v3152 = vpop.f32.mrb[0].mxu0
      %v3153 = vpop.f32.mrb[0].mxu0
      %v3154 = vadd.f32 0.0, %v3153
      %v3155 = vpop.f32.mrb[0].mxu0
      %3156 = vmatprep.mubr.bf16.mxu0 0
      %3157 = vmatmul.mubr.bf16.gmra.mrb[0].mxu0 %v2774
      %v3158 = vpop.f32.mrb[0].mxu0
      %v3159 = vadd.f32 0.0, %v3158
      %v3160 = vpop.f32.mrb[0].mxu0
      %v3161 = vpop.f32.mrb[0].mxu0
      %v3162 = vadd.f32 0.0, %v3161
      %v3163 = vpop.f32.mrb[0].mxu0
      %3164 = vmatprep.mubr.bf16.mxu0 0
      %3165 = vmatmul.mubr.bf16.gmra.mrb[0].mxu0 %v2777
      %v3166 = vpop.f32.mrb[0].mxu0
      %v3167 = vadd.f32 0.0, %v3166
      %v3168 = vpop.f32.mrb[0].mxu0
      %v3169 = vpop.f32.mrb[0].mxu0
      %v3170 = vadd.f32 0.0, %v3169
      %v3171 = vpop.f32.mrb[0].mxu0
      %3172 = vmatprep.mubr.bf16.mxu0 0
      %3173 = vmatmul.mubr.bf16.gmra.mrb[0].mxu0 %v2780
      %v3174 = vpop.f32.mrb[0].mxu0
      %v3175 = vadd.f32 0.0, %v3174
      %v3176 = vpop.f32.mrb[0].mxu0
      %v3177 = vpop.f32.mrb[0].mxu0
      %v3178 = vadd.f32 0.0, %v3177
      %v3179 = vpop.f32.mrb[0].mxu0
      %3180 = vmatprep.mubr.bf16.mxu0 0
      %3181 = vmatmul.mubr.bf16.gmra.mrb[0].mxu0 %v3012
      %v3182 = vpop.f32.mrb[0].mxu0
      %v3183 = vadd.f32 0.0, %v3182
      %v3184 = vpop.f32.mrb[0].mxu0
      %v3185 = vpop.f32.mrb[0].mxu0
      %v3186 = vadd.f32 0.0, %v3185
      %v3187 = vpop.f32.mrb[0].mxu0
      %3188 = vmatprep.mubr.bf16.mxu0 0
      %3189 = vmatmul.mubr.bf16.gmra.mrb[0].mxu0 %v3015
      %v3190 = vpop.f32.mrb[0].mxu0
      %v3191 = vadd.f32 0.0, %v3190
      %v3192 = vpop.f32.mrb[0].mxu0
      %v3193 = vpop.f32.mrb[0].mxu0
      %v3194 = vadd.f32 0.0, %v3193
      %v3195 = vpop.f32.mrb[0].mxu0
      %3196 = vdwg.mxu0
      %v3197 = vadd.f32 %v2965, %v3055
      %v3198 = vadd.f32 %v2966, %v3058
      %v3199 = vadd.f32 %v2967, %v3063
      %v3200 = vadd.f32 %v2968, %v3066
      %v3201 = vadd.f32 %v2969, %v3071
      %v3202 = vadd.f32 %v2970, %v3074
      %v3203 = vadd.f32 %v2971, %v3079
      %v3204 = vadd.f32 %v2972, %v3082
      %v3205 = vadd.f32 %v2973, %v3087
      %v3206 = vadd.f32 %v2974, %v3090
      %v3207 = vadd.f32 %v2975, %v3095
      %v3208 = vadd.f32 %v2976, %v3098
      %v3209 = vadd.f32 %v2977, %v3103
      %v3210 = vadd.f32 %v2978, %v3106
      %v3211 = vadd.f32 %v2979, %v3111
      %v3212 = vadd.f32 %v2980, %v3114
      %v3213 = vadd.f32 %v2981, %v3119
      %v3214 = vadd.f32 %v2982, %v3122
      %v3215 = vadd.f32 %v2983, %v3127
      %v3216 = vadd.f32 %v2984, %v3130
      %v3217 = vadd.f32 %v2985, %v3135
      %v3218 = vadd.f32 %v2986, %v3138
      %v3219 = vadd.f32 %v2987, %v3143
      %v3220 = vadd.f32 %v2988, %v3146
      %v3221 = vadd.f32 %v2989, %v3151
      %v3222 = vadd.f32 %v2990, %v3154
      %v3223 = vadd.f32 %v2991, %v3159
      %v3224 = vadd.f32 %v2992, %v3162
      %v3225 = vadd.f32 %v2993, %v3167
      %v3226 = vadd.f32 %v2994, %v3170
      %v3227 = vadd.f32 %v2995, %v3175
      %v3228 = vadd.f32 %v2996, %v3178
      %v3229 = vadd.f32 %v2997, %v3183
      %v3230 = vadd.f32 %v2998, %v3186
      %v3231 = vadd.f32 %v2999, %v3191
      %v3232 = vadd.f32 %v3000, %v3194
      %s3233 = scalar_lea.vmem %s5, 14
      %v3234 = vld [vmem:[%s3233] sm:$0x3]
      %vm3235 = vsmask.f32 5376
      %v3236 = vrot.slane %v1192, 2
      %v3237 = vrot.slane %v1188, 3
      %v3238 = vor.u32 %v3236, %v3237
      %v3239 = vrot.slane %v1200, 2
      %v3240 = vrot.slane %v1196, 3
      %v3241 = vor.u32 %v3239, %v3240
      %v3242 = vsel %vm3235, %v3238, %v3241
      %v3243 = vrot.slane %v1208, 2
      %v3244 = vrot.slane %v1204, 3
      %v3245 = vor.u32 %v3243, %v3244
      %v3246 = vsel %vm3235, %v3241, %v3245
      %v3247 = vrot.slane %v1216, 2
      %v3248 = vrot.slane %v1212, 3
      %v3249 = vor.u32 %v3247, %v3248
      %v3250 = vsel %vm3235, %v3245, %v3249
      %v3251 = vrot.slane %v1224, 2
      %v3252 = vrot.slane %v1220, 3
      %v3253 = vor.u32 %v3251, %v3252
      %v3254 = vsel %vm3235, %v3249, %v3253
      %v3255 = vrot.slane %v1232, 2
      %v3256 = vrot.slane %v1228, 3
      %v3257 = vor.u32 %v3255, %v3256
      %v3258 = vsel %vm3235, %v3253, %v3257
      %v3259 = vrot.slane %v1240, 2
      %v3260 = vrot.slane %v1236, 3
      %v3261 = vor.u32 %v3259, %v3260
      %v3262 = vsel %vm3235, %v3257, %v3261
      %v3263 = vrot.slane %v1248, 2
      %v3264 = vrot.slane %v1244, 3
      %v3265 = vor.u32 %v3263, %v3264
      %v3266 = vsel %vm3235, %v3261, %v3265
      %v3267 = vrot.slane %v1256, 2
      %v3268 = vrot.slane %v1252, 3
      %v3269 = vor.u32 %v3267, %v3268
      %v3270 = vsel %vm3235, %v3265, %v3269
      %v3271 = vrot.slane %v1264, 2
      %v3272 = vrot.slane %v1260, 3
      %v3273 = vor.u32 %v3271, %v3272
      %v3274 = vsel %vm3235, %v3269, %v3273
      %v3275 = vrot.slane %v1272, 2
      %v3276 = vrot.slane %v1268, 3
      %v3277 = vor.u32 %v3275, %v3276
      %v3278 = vsel %vm3235, %v3273, %v3277
      %v3279 = vrot.slane %v1280, 2
      %v3280 = vrot.slane %v1276, 3
      %v3281 = vor.u32 %v3279, %v3280
      %v3282 = vsel %vm3235, %v3277, %v3281
      %v3283 = vrot.slane %v1288, 2
      %v3284 = vrot.slane %v1284, 3
      %v3285 = vor.u32 %v3283, %v3284
      %v3286 = vsel %vm3235, %v3281, %v3285
      %v3287 = vrot.slane %v1296, 2
      %v3288 = vrot.slane %v1292, 3
      %v3289 = vor.u32 %v3287, %v3288
      %v3290 = vsel %vm3235, %v3285, %v3289
      %v3291 = vrot.slane %v1304, 2
      %v3292 = vrot.slane %v1300, 3
      %v3293 = vor.u32 %v3291, %v3292
      %v3294 = vsel %vm3235, %v3289, %v3293
      %v3295 = vrot.slane %v1312, 2
      %v3296 = vrot.slane %v1308, 3
      %v3297 = vor.u32 %v3295, %v3296
      %v3298 = vsel %vm3235, %v3293, %v3297
      %v3299 = vrot.slane %v2404, 2
      %v3300 = vrot.slane %v2407, 3
      %v3301 = vor.u32 %v3299, %v3300
      %v3302 = vsel %vm3235, %v3297, %v3301
      %v3304 = vshrl.u32 %v3001, 16
      %v3306 = vrot.slane %v3304, 2
      %v3307 = vshll.u32 %v3001, 16
      %v3309 = vrot.slane %v3307, 3
      %v3310 = vor.u32 %v3306, %v3309
      %v3311 = vsel %vm3235, %v3301, %v3310
      %v3313 = vshrl.u32 %v3002, 16
      %v3315 = vrot.slane %v3313, 2
      %v3316 = vshll.u32 %v3002, 16
      %v3318 = vrot.slane %v3316, 3
      %v3319 = vor.u32 %v3315, %v3318
      %v3320 = vsel %vm3235, %v3310, %v3319
      %v3322 = vsel %vm1320, %v3242, 0
      %v3325 = vsel %vm1320, %v3246, 0
      %v3328 = vsel %vm1320, %v3250, 0
      %v3331 = vsel %vm1320, %v3254, 0
      %v3334 = vsel %vm1320, %v3258, 0
      %v3337 = vsel %vm1320, %v3262, 0
      %v3340 = vsel %vm1320, %v3266, 0
      %v3343 = vsel %vm1320, %v3270, 0
      %v3346 = vsel %vm1320, %v3274, 0
      %v3349 = vsel %vm1320, %v3278, 0
      %v3352 = vsel %vm1320, %v3282, 0
      %v3355 = vsel %vm1320, %v3286, 0
      %v3358 = vsel %vm1320, %v3290, 0
      %v3361 = vsel %vm1320, %v3294, 0
      %v3364 = vsel %vm1320, %v3298, 0
      %v3367 = vsel %vm1320, %v3302, 0
      %v3370 = vsel %vm1320, %v3311, 0
      %v3373 = vsel %vm1320, %v3320, 0
      %v3376 = vsel %vm1375, %v3234, 0
      %3378 = vmatprep.subr.bf16.mxu0 0
      %3379 = vmatpush1.bf16.msra.mxu0 %v3376
      %3380 = vmatprep.subr.bf16.mxu0 0
      %3381 = vmatpush1.bf16.msra.mxu0 0
      %3382 = vmatprep.subr.bf16.mxu0 0
      %3383 = vmatpush1.bf16.msra.mxu0 0
      %3384 = vmatprep.subr.bf16.mxu0 0
      %3385 = vmatpush1.bf16.msra.mxu0 0
      %3386 = vmatprep.subr.bf16.mxu0 0
      %3387 = vmatpush1.bf16.msra.mxu0 0
      %3388 = vmatprep.subr.bf16.mxu0 0
      %3389 = vmatpush1.bf16.msra.mxu0 0
      %3390 = vmatprep.subr.bf16.mxu0 0
      %3391 = vmatpush1.bf16.msra.mxu0 0
      %3392 = vmatprep.subr.bf16.mxu0 0
      %3393 = vmatpush1.bf16.msra.mxu0 0
      %3394 = vmatprep.subr.bf16.mxu0 0
      %3395 = vmatpush1.bf16.msra.mxu0 0
      %3396 = vmatprep.subr.bf16.mxu0 0
      %3397 = vmatpush1.bf16.msra.mxu0 0
      %3398 = vmatprep.subr.bf16.mxu0 0
      %3399 = vmatpush1.bf16.msra.mxu0 0
      %3400 = vmatprep.subr.bf16.mxu0 0
      %3401 = vmatpush1.bf16.msra.mxu0 0
      %3402 = vmatprep.subr.bf16.mxu0 0
      %3403 = vmatpush1.bf16.msra.mxu0 0
      %3404 = vmatprep.subr.bf16.mxu0 0
      %3405 = vmatpush1.bf16.msra.mxu0 0
      %3406 = vmatprep.subr.bf16.mxu0 0
      %3407 = vmatpush1.bf16.msra.mxu0 0
      %3408 = vmatprep.subr.bf16.mxu0 0
      %3409 = vmatpush1.bf16.msra.mxu0 0
      %3410 = vmatprep.mubr.bf16.mxu0 0
      %3411 = vmatmul.mubr.bf16.gmra.mrb[0].mxu0 %v3322
      %v3412 = vpop.f32.mrb[0].mxu0
      %v3413 = vadd.f32 0.0, %v3412
      %v3414 = vpop.f32.mrb[0].mxu0
      %v3415 = vpop.f32.mrb[0].mxu0
      %v3416 = vadd.f32 0.0, %v3415
      %v3417 = vpop.f32.mrb[0].mxu0
      %3418 = vmatprep.mubr.bf16.mxu0 0
      %3419 = vmatmul.mubr.bf16.gmra.mrb[0].mxu0 %v3325
      %v3420 = vpop.f32.mrb[0].mxu0
      %v3421 = vadd.f32 0.0, %v3420
      %v3422 = vpop.f32.mrb[0].mxu0
      %v3423 = vpop.f32.mrb[0].mxu0
      %v3424 = vadd.f32 0.0, %v3423
      %v3425 = vpop.f32.mrb[0].mxu0
      %3426 = vmatprep.mubr.bf16.mxu0 0
      %3427 = vmatmul.mubr.bf16.gmra.mrb[0].mxu0 %v3328
      %v3428 = vpop.f32.mrb[0].mxu0
      %v3429 = vadd.f32 0.0, %v3428
      %v3430 = vpop.f32.mrb[0].mxu0
      %v3431 = vpop.f32.mrb[0].mxu0
      %v3432 = vadd.f32 0.0, %v3431
      %v3433 = vpop.f32.mrb[0].mxu0
      %3434 = vmatprep.mubr.bf16.mxu0 0
      %3435 = vmatmul.mubr.bf16.gmra.mrb[0].mxu0 %v3331
      %v3436 = vpop.f32.mrb[0].mxu0
      %v3437 = vadd.f32 0.0, %v3436
      %v3438 = vpop.f32.mrb[0].mxu0
      %v3439 = vpop.f32.mrb[0].mxu0
      %v3440 = vadd.f32 0.0, %v3439
      %v3441 = vpop.f32.mrb[0].mxu0
      %3442 = vmatprep.mubr.bf16.mxu0 0
      %3443 = vmatmul.mubr.bf16.gmra.mrb[0].mxu0 %v3334
      %v3444 = vpop.f32.mrb[0].mxu0
      %v3445 = vadd.f32 0.0, %v3444
      %v3446 = vpop.f32.mrb[0].mxu0
      %v3447 = vpop.f32.mrb[0].mxu0
      %v3448 = vadd.f32 0.0, %v3447
      %v3449 = vpop.f32.mrb[0].mxu0
      %3450 = vmatprep.mubr.bf16.mxu0 0
      %3451 = vmatmul.mubr.bf16.gmra.mrb[0].mxu0 %v3337
      %v3452 = vpop.f32.mrb[0].mxu0
      %v3453 = vadd.f32 0.0, %v3452
      %v3454 = vpop.f32.mrb[0].mxu0
      %v3455 = vpop.f32.mrb[0].mxu0
      %v3456 = vadd.f32 0.0, %v3455
      %v3457 = vpop.f32.mrb[0].mxu0
      %3458 = vmatprep.mubr.bf16.mxu0 0
      %3459 = vmatmul.mubr.bf16.gmra.mrb[0].mxu0 %v3340
      %v3460 = vpop.f32.mrb[0].mxu0
      %v3461 = vadd.f32 0.0, %v3460
      %v3462 = vpop.f32.mrb[0].mxu0
      %v3463 = vpop.f32.mrb[0].mxu0
      %v3464 = vadd.f32 0.0, %v3463
      %v3465 = vpop.f32.mrb[0].mxu0
      %3466 = vmatprep.mubr.bf16.mxu0 0
      %3467 = vmatmul.mubr.bf16.gmra.mrb[0].mxu0 %v3343
      %v3468 = vpop.f32.mrb[0].mxu0
      %v3469 = vadd.f32 0.0, %v3468
      %v3470 = vpop.f32.mrb[0].mxu0
      %v3471 = vpop.f32.mrb[0].mxu0
      %v3472 = vadd.f32 0.0, %v3471
      %v3473 = vpop.f32.mrb[0].mxu0
      %3474 = vmatprep.mubr.bf16.mxu0 0
      %3475 = vmatmul.mubr.bf16.gmra.mrb[0].mxu0 %v3346
      %v3476 = vpop.f32.mrb[0].mxu0
      %v3477 = vadd.f32 0.0, %v3476
      %v3478 = vpop.f32.mrb[0].mxu0
      %v3479 = vpop.f32.mrb[0].mxu0
      %v3480 = vadd.f32 0.0, %v3479
      %v3481 = vpop.f32.mrb[0].mxu0
      %3482 = vmatprep.mubr.bf16.mxu0 0
      %3483 = vmatmul.mubr.bf16.gmra.mrb[0].mxu0 %v3349
      %v3484 = vpop.f32.mrb[0].mxu0
      %v3485 = vadd.f32 0.0, %v3484
      %v3486 = vpop.f32.mrb[0].mxu0
      %v3487 = vpop.f32.mrb[0].mxu0
      %v3488 = vadd.f32 0.0, %v3487
      %v3489 = vpop.f32.mrb[0].mxu0
      %3490 = vmatprep.mubr.bf16.mxu0 0
      %3491 = vmatmul.mubr.bf16.gmra.mrb[0].mxu0 %v3352
      %v3492 = vpop.f32.mrb[0].mxu0
      %v3493 = vadd.f32 0.0, %v3492
      %v3494 = vpop.f32.mrb[0].mxu0
      %v3495 = vpop.f32.mrb[0].mxu0
      %v3496 = vadd.f32 0.0, %v3495
      %v3497 = vpop.f32.mrb[0].mxu0
      %3498 = vmatprep.mubr.bf16.mxu0 0
      %3499 = vmatmul.mubr.bf16.gmra.mrb[0].mxu0 %v3355
      %v3500 = vpop.f32.mrb[0].mxu0
      %v3501 = vadd.f32 0.0, %v3500
      %v3502 = vpop.f32.mrb[0].mxu0
      %v3503 = vpop.f32.mrb[0].mxu0
      %v3504 = vadd.f32 0.0, %v3503
      %v3505 = vpop.f32.mrb[0].mxu0
      %3506 = vmatprep.mubr.bf16.mxu0 0
      %3507 = vmatmul.mubr.bf16.gmra.mrb[0].mxu0 %v3358
      %v3508 = vpop.f32.mrb[0].mxu0
      %v3509 = vadd.f32 0.0, %v3508
      %v3510 = vpop.f32.mrb[0].mxu0
      %v3511 = vpop.f32.mrb[0].mxu0
      %v3512 = vadd.f32 0.0, %v3511
      %v3513 = vpop.f32.mrb[0].mxu0
      %3514 = vmatprep.mubr.bf16.mxu0 0
      %3515 = vmatmul.mubr.bf16.gmra.mrb[0].mxu0 %v3361
      %v3516 = vpop.f32.mrb[0].mxu0
      %v3517 = vadd.f32 0.0, %v3516
      %v3518 = vpop.f32.mrb[0].mxu0
      %v3519 = vpop.f32.mrb[0].mxu0
      %v3520 = vadd.f32 0.0, %v3519
      %v3521 = vpop.f32.mrb[0].mxu0
      %3522 = vmatprep.mubr.bf16.mxu0 0
      %3523 = vmatmul.mubr.bf16.gmra.mrb[0].mxu0 %v3364
      %v3524 = vpop.f32.mrb[0].mxu0
      %v3525 = vadd.f32 0.0, %v3524
      %v3526 = vpop.f32.mrb[0].mxu0
      %v3527 = vpop.f32.mrb[0].mxu0
      %v3528 = vadd.f32 0.0, %v3527
      %v3529 = vpop.f32.mrb[0].mxu0
      %3530 = vmatprep.mubr.bf16.mxu0 0
      %3531 = vmatmul.mubr.bf16.gmra.mrb[0].mxu0 %v3367
      %v3532 = vpop.f32.mrb[0].mxu0
      %v3533 = vadd.f32 0.0, %v3532
      %v3534 = vpop.f32.mrb[0].mxu0
      %v3535 = vpop.f32.mrb[0].mxu0
      %v3536 = vadd.f32 0.0, %v3535
      %v3537 = vpop.f32.mrb[0].mxu0
      %3538 = vmatprep.mubr.bf16.mxu0 0
      %3539 = vmatmul.mubr.bf16.gmra.mrb[0].mxu0 %v3370
      %v3540 = vpop.f32.mrb[0].mxu0
      %v3541 = vadd.f32 0.0, %v3540
      %v3542 = vpop.f32.mrb[0].mxu0
      %v3543 = vpop.f32.mrb[0].mxu0
      %v3544 = vadd.f32 0.0, %v3543
      %v3545 = vpop.f32.mrb[0].mxu0
      %3546 = vmatprep.mubr.bf16.mxu0 0
      %3547 = vmatmul.mubr.bf16.gmra.mrb[0].mxu0 %v3373
      %v3548 = vpop.f32.mrb[0].mxu0
      %v3549 = vadd.f32 0.0, %v3548
      %v3550 = vpop.f32.mrb[0].mxu0
      %v3551 = vpop.f32.mrb[0].mxu0
      %v3552 = vadd.f32 0.0, %v3551
      %v3553 = vpop.f32.mrb[0].mxu0
      %3554 = vdwg.mxu0
      %v3555 = vadd.f32 %v3197, %v3413
      %v3556 = vadd.f32 %v3198, %v3416
      %v3557 = vadd.f32 %v3199, %v3421
      %v3558 = vadd.f32 %v3200, %v3424
      %v3559 = vadd.f32 %v3201, %v3429
      %v3560 = vadd.f32 %v3202, %v3432
      %v3561 = vadd.f32 %v3203, %v3437
      %v3562 = vadd.f32 %v3204, %v3440
      %v3563 = vadd.f32 %v3205, %v3445
      %v3564 = vadd.f32 %v3206, %v3448
      %v3565 = vadd.f32 %v3207, %v3453
      %v3566 = vadd.f32 %v3208, %v3456
      %v3567 = vadd.f32 %v3209, %v3461
      %v3568 = vadd.f32 %v3210, %v3464
      %v3569 = vadd.f32 %v3211, %v3469
      %v3570 = vadd.f32 %v3212, %v3472
      %v3571 = vadd.f32 %v3213, %v3477
      %v3572 = vadd.f32 %v3214, %v3480
      %v3573 = vadd.f32 %v3215, %v3485
      %v3574 = vadd.f32 %v3216, %v3488
      %v3575 = vadd.f32 %v3217, %v3493
      %v3576 = vadd.f32 %v3218, %v3496
      %v3577 = vadd.f32 %v3219, %v3501
      %v3578 = vadd.f32 %v3220, %v3504
      %v3579 = vadd.f32 %v3221, %v3509
      %v3580 = vadd.f32 %v3222, %v3512
      %v3581 = vadd.f32 %v3223, %v3517
      %v3582 = vadd.f32 %v3224, %v3520
      %v3583 = vadd.f32 %v3225, %v3525
      %v3584 = vadd.f32 %v3226, %v3528
      %v3585 = vadd.f32 %v3227, %v3533
      %v3586 = vadd.f32 %v3228, %v3536
      %v3587 = vadd.f32 %v3229, %v3541
      %v3588 = vadd.f32 %v3230, %v3544
      %v3589 = vadd.f32 %v3231, %v3549
      %v3590 = vadd.f32 %v3232, %v3552
      %s3591 = scalar_lea.vmem %s5, 16
      %v3592 = vld [vmem:[%s3591] sm:$0x3]
      %vm3593 = vcmask 1044480
      %v3594 = vrot.slane %v1151, 3
      %v3595 = vrot.slane %v1152, 3
      %v3596 = vsel %vm3593, %v3594, %v3595
      %v3597 = vrot.slane %v1153, 3
      %v3598 = vsel %vm3593, %v3595, %v3597
      %v3599 = vrot.slane %v1154, 3
      %v3600 = vsel %vm3593, %v3597, %v3599
      %v3601 = vrot.slane %v1155, 3
      %v3602 = vsel %vm3593, %v3599, %v3601
      %v3603 = vrot.slane %v1156, 3
      %v3604 = vsel %vm3593, %v3601, %v3603
      %v3605 = vrot.slane %v1157, 3
      %v3606 = vsel %vm3593, %v3603, %v3605
      %v3607 = vrot.slane %v1158, 3
      %v3608 = vsel %vm3593, %v3605, %v3607
      %v3609 = vrot.slane %v1159, 3
      %v3610 = vsel %vm3593, %v3607, %v3609
      %v3611 = vrot.slane %v1160, 3
      %v3612 = vsel %vm3593, %v3609, %v3611
      %v3613 = vrot.slane %v1161, 3
      %v3614 = vsel %vm3593, %v3611, %v3613
      %v3615 = vrot.slane %v1162, 3
      %v3616 = vsel %vm3593, %v3613, %v3615
      %v3617 = vrot.slane %v1163, 3
      %v3618 = vsel %vm3593, %v3615, %v3617
      %v3619 = vrot.slane %v1164, 3
      %v3620 = vsel %vm3593, %v3617, %v3619
      %v3621 = vrot.slane %v1165, 3
      %v3622 = vsel %vm3593, %v3619, %v3621
      %v3623 = vrot.slane %v1166, 3
      %v3624 = vsel %vm3593, %v3621, %v3623
      %v3625 = vrot.slane %v2101, 3
      %v3626 = vsel %vm3593, %v3623, %v3625
      %v3627 = vrot.slane %v3001, 3
      %v3628 = vsel %vm3593, %v3625, %v3627
      %v3629 = vrot.slane %v3002, 3
      %v3630 = vsel %vm3593, %v3627, %v3629
      %v3632 = vsel %vm1320, %v3596, 0
      %v3635 = vsel %vm1320, %v3598, 0
      %v3638 = vsel %vm1320, %v3600, 0
      %v3641 = vsel %vm1320, %v3602, 0
      %v3644 = vsel %vm1320, %v3604, 0
      %v3647 = vsel %vm1320, %v3606, 0
      %v3650 = vsel %vm1320, %v3608, 0
      %v3653 = vsel %vm1320, %v3610, 0
      %v3656 = vsel %vm1320, %v3612, 0
      %v3659 = vsel %vm1320, %v3614, 0
      %v3662 = vsel %vm1320, %v3616, 0
      %v3665 = vsel %vm1320, %v3618, 0
      %v3668 = vsel %vm1320, %v3620, 0
      %v3671 = vsel %vm1320, %v3622, 0
      %v3674 = vsel %vm1320, %v3624, 0
      %v3677 = vsel %vm1320, %v3626, 0
      %v3680 = vsel %vm1320, %v3628, 0
      %v3683 = vsel %vm1320, %v3630, 0
      %v3686 = vsel %vm1375, %v3592, 0
      %3688 = vmatprep.subr.bf16.mxu0 0
      %3689 = vmatpush1.bf16.msra.mxu0 %v3686
      %3690 = vmatprep.subr.bf16.mxu0 0
      %3691 = vmatpush1.bf16.msra.mxu0 0
      %3692 = vmatprep.subr.bf16.mxu0 0
      %3693 = vmatpush1.bf16.msra.mxu0 0
      %3694 = vmatprep.subr.bf16.mxu0 0
      %3695 = vmatpush1.bf16.msra.mxu0 0
      %3696 = vmatprep.subr.bf16.mxu0 0
      %3697 = vmatpush1.bf16.msra.mxu0 0
      %3698 = vmatprep.subr.bf16.mxu0 0
      %3699 = vmatpush1.bf16.msra.mxu0 0
      %3700 = vmatprep.subr.bf16.mxu0 0
      %3701 = vmatpush1.bf16.msra.mxu0 0
      %3702 = vmatprep.subr.bf16.mxu0 0
      %3703 = vmatpush1.bf16.msra.mxu0 0
      %3704 = vmatprep.subr.bf16.mxu0 0
      %3705 = vmatpush1.bf16.msra.mxu0 0
      %3706 = vmatprep.subr.bf16.mxu0 0
      %3707 = vmatpush1.bf16.msra.mxu0 0
      %3708 = vmatprep.subr.bf16.mxu0 0
      %3709 = vmatpush1.bf16.msra.mxu0 0
      %3710 = vmatprep.subr.bf16.mxu0 0
      %3711 = vmatpush1.bf16.msra.mxu0 0
      %3712 = vmatprep.subr.bf16.mxu0 0
      %3713 = vmatpush1.bf16.msra.mxu0 0
      %3714 = vmatprep.subr.bf16.mxu0 0
      %3715 = vmatpush1.bf16.msra.mxu0 0
      %3716 = vmatprep.subr.bf16.mxu0 0
      %3717 = vmatpush1.bf16.msra.mxu0 0
      %3718 = vmatprep.subr.bf16.mxu0 0
      %3719 = vmatpush1.bf16.msra.mxu0 0
      %3720 = vmatprep.mubr.bf16.mxu0 0
      %3721 = vmatmul.mubr.bf16.gmra.mrb[0].mxu0 %v3632
      %v3722 = vpop.f32.mrb[0].mxu0
      %v3723 = vadd.f32 0.0, %v3722
      %v3724 = vpop.f32.mrb[0].mxu0
      %v3725 = vpop.f32.mrb[0].mxu0
      %v3726 = vadd.f32 0.0, %v3725
      %v3727 = vpop.f32.mrb[0].mxu0
      %3728 = vmatprep.mubr.bf16.mxu0 0
      %3729 = vmatmul.mubr.bf16.gmra.mrb[0].mxu0 %v3635
      %v3730 = vpop.f32.mrb[0].mxu0
      %v3731 = vadd.f32 0.0, %v3730
      %v3732 = vpop.f32.mrb[0].mxu0
      %v3733 = vpop.f32.mrb[0].mxu0
      %v3734 = vadd.f32 0.0, %v3733
      %v3735 = vpop.f32.mrb[0].mxu0
      %3736 = vmatprep.mubr.bf16.mxu0 0
      %3737 = vmatmul.mubr.bf16.gmra.mrb[0].mxu0 %v3638
      %v3738 = vpop.f32.mrb[0].mxu0
      %v3739 = vadd.f32 0.0, %v3738
      %v3740 = vpop.f32.mrb[0].mxu0
      %v3741 = vpop.f32.mrb[0].mxu0
      %v3742 = vadd.f32 0.0, %v3741
      %v3743 = vpop.f32.mrb[0].mxu0
      %3744 = vmatprep.mubr.bf16.mxu0 0
      %3745 = vmatmul.mubr.bf16.gmra.mrb[0].mxu0 %v3641
      %v3746 = vpop.f32.mrb[0].mxu0
      %v3747 = vadd.f32 0.0, %v3746
      %v3748 = vpop.f32.mrb[0].mxu0
      %v3749 = vpop.f32.mrb[0].mxu0
      %v3750 = vadd.f32 0.0, %v3749
      %v3751 = vpop.f32.mrb[0].mxu0
      %3752 = vmatprep.mubr.bf16.mxu0 0
      %3753 = vmatmul.mubr.bf16.gmra.mrb[0].mxu0 %v3644
      %v3754 = vpop.f32.mrb[0].mxu0
      %v3755 = vadd.f32 0.0, %v3754
      %v3756 = vpop.f32.mrb[0].mxu0
      %v3757 = vpop.f32.mrb[0].mxu0
      %v3758 = vadd.f32 0.0, %v3757
      %v3759 = vpop.f32.mrb[0].mxu0
      %3760 = vmatprep.mubr.bf16.mxu0 0
      %3761 = vmatmul.mubr.bf16.gmra.mrb[0].mxu0 %v3647
      %v3762 = vpop.f32.mrb[0].mxu0
      %v3763 = vadd.f32 0.0, %v3762
      %v3764 = vpop.f32.mrb[0].mxu0
      %v3765 = vpop.f32.mrb[0].mxu0
      %v3766 = vadd.f32 0.0, %v3765
      %v3767 = vpop.f32.mrb[0].mxu0
      %3768 = vmatprep.mubr.bf16.mxu0 0
      %3769 = vmatmul.mubr.bf16.gmra.mrb[0].mxu0 %v3650
      %v3770 = vpop.f32.mrb[0].mxu0
      %v3771 = vadd.f32 0.0, %v3770
      %v3772 = vpop.f32.mrb[0].mxu0
      %v3773 = vpop.f32.mrb[0].mxu0
      %v3774 = vadd.f32 0.0, %v3773
      %v3775 = vpop.f32.mrb[0].mxu0
      %3776 = vmatprep.mubr.bf16.mxu0 0
      %3777 = vmatmul.mubr.bf16.gmra.mrb[0].mxu0 %v3653
      %v3778 = vpop.f32.mrb[0].mxu0
      %v3779 = vadd.f32 0.0, %v3778
      %v3780 = vpop.f32.mrb[0].mxu0
      %v3781 = vpop.f32.mrb[0].mxu0
      %v3782 = vadd.f32 0.0, %v3781
      %v3783 = vpop.f32.mrb[0].mxu0
      %3784 = vmatprep.mubr.bf16.mxu0 0
      %3785 = vmatmul.mubr.bf16.gmra.mrb[0].mxu0 %v3656
      %v3786 = vpop.f32.mrb[0].mxu0
      %v3787 = vadd.f32 0.0, %v3786
      %v3788 = vpop.f32.mrb[0].mxu0
      %v3789 = vpop.f32.mrb[0].mxu0
      %v3790 = vadd.f32 0.0, %v3789
      %v3791 = vpop.f32.mrb[0].mxu0
      %3792 = vmatprep.mubr.bf16.mxu0 0
      %3793 = vmatmul.mubr.bf16.gmra.mrb[0].mxu0 %v3659
      %v3794 = vpop.f32.mrb[0].mxu0
      %v3795 = vadd.f32 0.0, %v3794
      %v3796 = vpop.f32.mrb[0].mxu0
      %v3797 = vpop.f32.mrb[0].mxu0
      %v3798 = vadd.f32 0.0, %v3797
      %v3799 = vpop.f32.mrb[0].mxu0
      %3800 = vmatprep.mubr.bf16.mxu0 0
      %3801 = vmatmul.mubr.bf16.gmra.mrb[0].mxu0 %v3662
      %v3802 = vpop.f32.mrb[0].mxu0
      %v3803 = vadd.f32 0.0, %v3802
      %v3804 = vpop.f32.mrb[0].mxu0
      %v3805 = vpop.f32.mrb[0].mxu0
      %v3806 = vadd.f32 0.0, %v3805
      %v3807 = vpop.f32.mrb[0].mxu0
      %3808 = vmatprep.mubr.bf16.mxu0 0
      %3809 = vmatmul.mubr.bf16.gmra.mrb[0].mxu0 %v3665
      %v3810 = vpop.f32.mrb[0].mxu0
      %v3811 = vadd.f32 0.0, %v3810
      %v3812 = vpop.f32.mrb[0].mxu0
      %v3813 = vpop.f32.mrb[0].mxu0
      %v3814 = vadd.f32 0.0, %v3813
      %v3815 = vpop.f32.mrb[0].mxu0
      %3816 = vmatprep.mubr.bf16.mxu0 0
      %3817 = vmatmul.mubr.bf16.gmra.mrb[0].mxu0 %v3668
      %v3818 = vpop.f32.mrb[0].mxu0
      %v3819 = vadd.f32 0.0, %v3818
      %v3820 = vpop.f32.mrb[0].mxu0
      %v3821 = vpop.f32.mrb[0].mxu0
      %v3822 = vadd.f32 0.0, %v3821
      %v3823 = vpop.f32.mrb[0].mxu0
      %3824 = vmatprep.mubr.bf16.mxu0 0
      %3825 = vmatmul.mubr.bf16.gmra.mrb[0].mxu0 %v3671
      %v3826 = vpop.f32.mrb[0].mxu0
      %v3827 = vadd.f32 0.0, %v3826
      %v3828 = vpop.f32.mrb[0].mxu0
      %v3829 = vpop.f32.mrb[0].mxu0
      %v3830 = vadd.f32 0.0, %v3829
      %v3831 = vpop.f32.mrb[0].mxu0
      %3832 = vmatprep.mubr.bf16.mxu0 0
      %3833 = vmatmul.mubr.bf16.gmra.mrb[0].mxu0 %v3674
      %v3834 = vpop.f32.mrb[0].mxu0
      %v3835 = vadd.f32 0.0, %v3834
      %v3836 = vpop.f32.mrb[0].mxu0
      %v3837 = vpop.f32.mrb[0].mxu0
      %v3838 = vadd.f32 0.0, %v3837
      %v3839 = vpop.f32.mrb[0].mxu0
      %3840 = vmatprep.mubr.bf16.mxu0 0
      %3841 = vmatmul.mubr.bf16.gmra.mrb[0].mxu0 %v3677
      %v3842 = vpop.f32.mrb[0].mxu0
      %v3843 = vadd.f32 0.0, %v3842
      %v3844 = vpop.f32.mrb[0].mxu0
      %v3845 = vpop.f32.mrb[0].mxu0
      %v3846 = vadd.f32 0.0, %v3845
      %v3847 = vpop.f32.mrb[0].mxu0
      %3848 = vmatprep.mubr.bf16.mxu0 0
      %3849 = vmatmul.mubr.bf16.gmra.mrb[0].mxu0 %v3680
      %v3850 = vpop.f32.mrb[0].mxu0
      %v3851 = vadd.f32 0.0, %v3850
      %v3852 = vpop.f32.mrb[0].mxu0
      %v3853 = vpop.f32.mrb[0].mxu0
      %v3854 = vadd.f32 0.0, %v3853
      %v3855 = vpop.f32.mrb[0].mxu0
      %3856 = vmatprep.mubr.bf16.mxu0 0
      %3857 = vmatmul.mubr.bf16.gmra.mrb[0].mxu0 %v3683
      %v3858 = vpop.f32.mrb[0].mxu0
      %v3859 = vadd.f32 0.0, %v3858
      %v3860 = vpop.f32.mrb[0].mxu0
      %v3861 = vpop.f32.mrb[0].mxu0
      %v3862 = vadd.f32 0.0, %v3861
      %v3863 = vpop.f32.mrb[0].mxu0
      %3864 = vdwg.mxu0
      %v3865 = vadd.f32 %v3555, %v3723
      %v3866 = vadd.f32 %v3556, %v3726
      %v3867 = vadd.f32 %v3557, %v3731
      %v3868 = vadd.f32 %v3558, %v3734
      %v3869 = vadd.f32 %v3559, %v3739
      %v3870 = vadd.f32 %v3560, %v3742
      %v3871 = vadd.f32 %v3561, %v3747
      %v3872 = vadd.f32 %v3562, %v3750
      %v3873 = vadd.f32 %v3563, %v3755
      %v3874 = vadd.f32 %v3564, %v3758
      %v3875 = vadd.f32 %v3565, %v3763
      %v3876 = vadd.f32 %v3566, %v3766
      %v3877 = vadd.f32 %v3567, %v3771
      %v3878 = vadd.f32 %v3568, %v3774
      %v3879 = vadd.f32 %v3569, %v3779
      %v3880 = vadd.f32 %v3570, %v3782
      %v3881 = vadd.f32 %v3571, %v3787
      %v3882 = vadd.f32 %v3572, %v3790
      %v3883 = vadd.f32 %v3573, %v3795
      %v3884 = vadd.f32 %v3574, %v3798
      %v3885 = vadd.f32 %v3575, %v3803
      %v3886 = vadd.f32 %v3576, %v3806
      %v3887 = vadd.f32 %v3577, %v3811
      %v3888 = vadd.f32 %v3578, %v3814
      %v3889 = vadd.f32 %v3579, %v3819
      %v3890 = vadd.f32 %v3580, %v3822
      %v3891 = vadd.f32 %v3581, %v3827
      %v3892 = vadd.f32 %v3582, %v3830
      %v3893 = vadd.f32 %v3583, %v3835
      %v3894 = vadd.f32 %v3584, %v3838
      %v3895 = vadd.f32 %v3585, %v3843
      %v3896 = vadd.f32 %v3586, %v3846
      %v3897 = vadd.f32 %v3587, %v3851
      %v3898 = vadd.f32 %v3588, %v3854
      %v3899 = vadd.f32 %v3589, %v3859
      %v3900 = vadd.f32 %v3590, %v3862
      %v3901 = vld [vmem:[%s6] sm:$0x1]
      %v3903 = vlaneseq
      %v3904 = vshrl.u32 %v3903, 7
      %v3905 = vsub.s32 0, %v3904
      %v3906 = vrot.slane %v3901, %v3905
      %v3908 = vmul.f32 %v3865, %v3906
      %v3909 = vmul.f32 %v3866, %v3906
      %v3910 = vmul.f32 %v3867, %v3906
      %v3911 = vmul.f32 %v3868, %v3906
      %v3912 = vmul.f32 %v3869, %v3906
      %v3913 = vmul.f32 %v3870, %v3906
      %v3914 = vmul.f32 %v3871, %v3906
      %v3915 = vmul.f32 %v3872, %v3906
      %v3916 = vmul.f32 %v3873, %v3906
      %v3917 = vmul.f32 %v3874, %v3906
      %v3918 = vmul.f32 %v3875, %v3906
      %v3919 = vmul.f32 %v3876, %v3906
      %v3920 = vmul.f32 %v3877, %v3906
      %v3921 = vmul.f32 %v3878, %v3906
      %v3922 = vmul.f32 %v3879, %v3906
      %v3923 = vmul.f32 %v3880, %v3906
      %v3924 = vmul.f32 %v3881, %v3906
      %v3925 = vmul.f32 %v3882, %v3906
      %v3926 = vmul.f32 %v3883, %v3906
      %v3927 = vmul.f32 %v3884, %v3906
      %v3928 = vmul.f32 %v3885, %v3906
      %v3929 = vmul.f32 %v3886, %v3906
      %v3930 = vmul.f32 %v3887, %v3906
      %v3931 = vmul.f32 %v3888, %v3906
      %v3932 = vmul.f32 %v3889, %v3906
      %v3933 = vmul.f32 %v3890, %v3906
      %v3934 = vmul.f32 %v3891, %v3906
      %v3935 = vmul.f32 %v3892, %v3906
      %v3936 = vmul.f32 %v3893, %v3906
      %v3937 = vmul.f32 %v3894, %v3906
      %v3938 = vmul.f32 %v3895, %v3906
      %v3939 = vmul.f32 %v3896, %v3906
      %v3940 = vmul.f32 %v3897, %v3906
      %v3941 = vmul.f32 %v3898, %v3906
      %v3942 = vmul.f32 %v3899, %v3906
      %v3943 = vmul.f32 %v3900, %v3906
      %v3944 = vld [vmem:[%s7] sm:$0x1]
      %v3946 = vlaneseq
      %v3947 = vshrl.u32 %v3946, 7
      %v3948 = vsub.s32 0, %v3947
      %v3949 = vrot.slane %v3944, %v3948
      %v3951 = vadd.f32 %v3908, %v3949
      %v3952 = vadd.f32 %v3909, %v3949
      %v3953 = vadd.f32 %v3910, %v3949
      %v3954 = vadd.f32 %v3911, %v3949
      %v3955 = vadd.f32 %v3912, %v3949
      %v3956 = vadd.f32 %v3913, %v3949
      %v3957 = vadd.f32 %v3914, %v3949
      %v3958 = vadd.f32 %v3915, %v3949
      %v3959 = vadd.f32 %v3916, %v3949
      %v3960 = vadd.f32 %v3917, %v3949
      %v3961 = vadd.f32 %v3918, %v3949
      %v3962 = vadd.f32 %v3919, %v3949
      %v3963 = vadd.f32 %v3920, %v3949
      %v3964 = vadd.f32 %v3921, %v3949
      %v3965 = vadd.f32 %v3922, %v3949
      %v3966 = vadd.f32 %v3923, %v3949
      %v3967 = vadd.f32 %v3924, %v3949
      %v3968 = vadd.f32 %v3925, %v3949
      %v3969 = vadd.f32 %v3926, %v3949
      %v3970 = vadd.f32 %v3927, %v3949
      %v3971 = vadd.f32 %v3928, %v3949
      %v3972 = vadd.f32 %v3929, %v3949
      %v3973 = vadd.f32 %v3930, %v3949
      %v3974 = vadd.f32 %v3931, %v3949
      %v3975 = vadd.f32 %v3932, %v3949
      %v3976 = vadd.f32 %v3933, %v3949
      %v3977 = vadd.f32 %v3934, %v3949
      %v3978 = vadd.f32 %v3935, %v3949
      %v3979 = vadd.f32 %v3936, %v3949
      %v3980 = vadd.f32 %v3937, %v3949
      %v3981 = vadd.f32 %v3938, %v3949
      %v3982 = vadd.f32 %v3939, %v3949
      %v3983 = vadd.f32 %v3940, %v3949
      %v3984 = vadd.f32 %v3941, %v3949
      %v3985 = vadd.f32 %v3942, %v3949
      %v3986 = vadd.f32 %v3943, %v3949
      %v3987 = vmax.f32 %v3951, 0.0
      %v3988 = vmax.f32 %v3952, 0.0
      %v3989 = vmax.f32 %v3953, 0.0
      %v3990 = vmax.f32 %v3954, 0.0
      %v3991 = vmax.f32 %v3955, 0.0
      %v3992 = vmax.f32 %v3956, 0.0
      %v3993 = vmax.f32 %v3957, 0.0
      %v3994 = vmax.f32 %v3958, 0.0
      %v3995 = vmax.f32 %v3959, 0.0
      %v3996 = vmax.f32 %v3960, 0.0
      %v3997 = vmax.f32 %v3961, 0.0
      %v3998 = vmax.f32 %v3962, 0.0
      %v3999 = vmax.f32 %v3963, 0.0
      %v4000 = vmax.f32 %v3964, 0.0
      %v4001 = vmax.f32 %v3965, 0.0
      %v4002 = vmax.f32 %v3966, 0.0
      %v4003 = vmax.f32 %v3967, 0.0
      %v4004 = vmax.f32 %v3968, 0.0
      %v4005 = vmax.f32 %v3969, 0.0
      %v4006 = vmax.f32 %v3970, 0.0
      %v4007 = vmax.f32 %v3971, 0.0
      %v4008 = vmax.f32 %v3972, 0.0
      %v4009 = vmax.f32 %v3973, 0.0
      %v4010 = vmax.f32 %v3974, 0.0
      %v4011 = vmax.f32 %v3975, 0.0
      %v4012 = vmax.f32 %v3976, 0.0
      %v4013 = vmax.f32 %v3977, 0.0
      %v4014 = vmax.f32 %v3978, 0.0
      %v4015 = vmax.f32 %v3979, 0.0
      %v4016 = vmax.f32 %v3980, 0.0
      %v4017 = vmax.f32 %v3981, 0.0
      %v4018 = vmax.f32 %v3982, 0.0
      %v4019 = vmax.f32 %v3983, 0.0
      %v4020 = vmax.f32 %v3984, 0.0
      %v4021 = vmax.f32 %v3985, 0.0
      %v4022 = vmax.f32 %v3986, 0.0
      %v4023 = vpack.c.bf16 %v3988, %v3987
      %v4024 = vpack.c.bf16 %v3990, %v3989
      %v4025 = vpack.c.bf16 %v3992, %v3991
      %v4026 = vpack.c.bf16 %v3994, %v3993
      %v4027 = vpack.c.bf16 %v3996, %v3995
      %v4028 = vpack.c.bf16 %v3998, %v3997
      %v4029 = vpack.c.bf16 %v4000, %v3999
      %v4030 = vpack.c.bf16 %v4002, %v4001
      %v4031 = vpack.c.bf16 %v4004, %v4003
      %v4032 = vpack.c.bf16 %v4006, %v4005
      %v4033 = vpack.c.bf16 %v4008, %v4007
      %v4034 = vpack.c.bf16 %v4010, %v4009
      %v4035 = vpack.c.bf16 %v4012, %v4011
      %v4036 = vpack.c.bf16 %v4014, %v4013
      %v4037 = vpack.c.bf16 %v4016, %v4015
      %v4038 = vpack.c.bf16 %v4018, %v4017
      %v4039 = vpack.c.bf16 %v4020, %v4019
      %v4040 = vpack.c.bf16 %v4022, %v4021
      %v4041 = vld [vmem:[%s8] sm:$0x3]
      %v4043 = vsel %vm1320, %v4023, 0
      %v4046 = vsel %vm1320, %v4024, 0
      %v4049 = vsel %vm1320, %v4025, 0
      %v4052 = vsel %vm1320, %v4026, 0
      %v4055 = vsel %vm1320, %v4027, 0
      %v4058 = vsel %vm1320, %v4028, 0
      %v4061 = vsel %vm1320, %v4029, 0
      %v4064 = vsel %vm1320, %v4030, 0
      %v4067 = vsel %vm1320, %v4031, 0
      %v4070 = vsel %vm1320, %v4032, 0
      %v4073 = vsel %vm1320, %v4033, 0
      %v4076 = vsel %vm1320, %v4034, 0
      %v4079 = vsel %vm1320, %v4035, 0
      %v4082 = vsel %vm1320, %v4036, 0
      %v4085 = vsel %vm1320, %v4037, 0
      %v4088 = vsel %vm1320, %v4038, 0
      %v4091 = vsel %vm1320, %v4039, 0
      %v4094 = vsel %vm1320, %v4040, 0
      %v4097 = vsel %vm1375, %v4041, 0
      %4099 = vmatprep.subr.bf16.mxu0 0
      %4100 = vmatpush1.bf16.msra.mxu0 %v4097
      %4101 = vmatprep.subr.bf16.mxu0 0
      %4102 = vmatpush1.bf16.msra.mxu0 0
      %4103 = vmatprep.subr.bf16.mxu0 0
      %4104 = vmatpush1.bf16.msra.mxu0 0
      %4105 = vmatprep.subr.bf16.mxu0 0
      %4106 = vmatpush1.bf16.msra.mxu0 0
      %4107 = vmatprep.subr.bf16.mxu0 0
      %4108 = vmatpush1.bf16.msra.mxu0 0
      %4109 = vmatprep.subr.bf16.mxu0 0
      %4110 = vmatpush1.bf16.msra.mxu0 0
      %4111 = vmatprep.subr.bf16.mxu0 0
      %4112 = vmatpush1.bf16.msra.mxu0 0
      %4113 = vmatprep.subr.bf16.mxu0 0
      %4114 = vmatpush1.bf16.msra.mxu0 0
      %4115 = vmatprep.subr.bf16.mxu0 0
      %4116 = vmatpush1.bf16.msra.mxu0 0
      %4117 = vmatprep.subr.bf16.mxu0 0
      %4118 = vmatpush1.bf16.msra.mxu0 0
      %4119 = vmatprep.subr.bf16.mxu0 0
      %4120 = vmatpush1.bf16.msra.mxu0 0
      %4121 = vmatprep.subr.bf16.mxu0 0
      %4122 = vmatpush1.bf16.msra.mxu0 0
      %4123 = vmatprep.subr.bf16.mxu0 0
      %4124 = vmatpush1.bf16.msra.mxu0 0
      %4125 = vmatprep.subr.bf16.mxu0 0
      %4126 = vmatpush1.bf16.msra.mxu0 0
      %4127 = vmatprep.subr.bf16.mxu0 0
      %4128 = vmatpush1.bf16.msra.mxu0 0
      %4129 = vmatprep.subr.bf16.mxu0 0
      %4130 = vmatpush1.bf16.msra.mxu0 0
      %4131 = vmatprep.mubr.bf16.mxu0 0
      %4132 = vmatmul.mubr.bf16.gmra.mrb[0].mxu0 %v4043
      %v4133 = vpop.f32.mrb[0].mxu0
      %v4134 = vadd.f32 0.0, %v4133
      %v4135 = vpop.f32.mrb[0].mxu0
      %v4136 = vpop.f32.mrb[0].mxu0
      %v4137 = vadd.f32 0.0, %v4136
      %v4138 = vpop.f32.mrb[0].mxu0
      %4139 = vmatprep.mubr.bf16.mxu0 0
      %4140 = vmatmul.mubr.bf16.gmra.mrb[0].mxu0 %v4046
      %v4141 = vpop.f32.mrb[0].mxu0
      %v4142 = vadd.f32 0.0, %v4141
      %v4143 = vpop.f32.mrb[0].mxu0
      %v4144 = vpop.f32.mrb[0].mxu0
      %v4145 = vadd.f32 0.0, %v4144
      %v4146 = vpop.f32.mrb[0].mxu0
      %4147 = vmatprep.mubr.bf16.mxu0 0
      %4148 = vmatmul.mubr.bf16.gmra.mrb[0].mxu0 %v4049
      %v4149 = vpop.f32.mrb[0].mxu0
      %v4150 = vadd.f32 0.0, %v4149
      %v4151 = vpop.f32.mrb[0].mxu0
      %v4152 = vpop.f32.mrb[0].mxu0
      %v4153 = vadd.f32 0.0, %v4152
      %v4154 = vpop.f32.mrb[0].mxu0
      %4155 = vmatprep.mubr.bf16.mxu0 0
      %4156 = vmatmul.mubr.bf16.gmra.mrb[0].mxu0 %v4052
      %v4157 = vpop.f32.mrb[0].mxu0
      %v4158 = vadd.f32 0.0, %v4157
      %v4159 = vpop.f32.mrb[0].mxu0
      %v4160 = vpop.f32.mrb[0].mxu0
      %v4161 = vadd.f32 0.0, %v4160
      %v4162 = vpop.f32.mrb[0].mxu0
      %4163 = vmatprep.mubr.bf16.mxu0 0
      %4164 = vmatmul.mubr.bf16.gmra.mrb[0].mxu0 %v4055
      %v4165 = vpop.f32.mrb[0].mxu0
      %v4166 = vadd.f32 0.0, %v4165
      %v4167 = vpop.f32.mrb[0].mxu0
      %v4168 = vpop.f32.mrb[0].mxu0
      %v4169 = vadd.f32 0.0, %v4168
      %v4170 = vpop.f32.mrb[0].mxu0
      %4171 = vmatprep.mubr.bf16.mxu0 0
      %4172 = vmatmul.mubr.bf16.gmra.mrb[0].mxu0 %v4058
      %v4173 = vpop.f32.mrb[0].mxu0
      %v4174 = vadd.f32 0.0, %v4173
      %v4175 = vpop.f32.mrb[0].mxu0
      %v4176 = vpop.f32.mrb[0].mxu0
      %v4177 = vadd.f32 0.0, %v4176
      %v4178 = vpop.f32.mrb[0].mxu0
      %4179 = vmatprep.mubr.bf16.mxu0 0
      %4180 = vmatmul.mubr.bf16.gmra.mrb[0].mxu0 %v4061
      %v4181 = vpop.f32.mrb[0].mxu0
      %v4182 = vadd.f32 0.0, %v4181
      %v4183 = vpop.f32.mrb[0].mxu0
      %v4184 = vpop.f32.mrb[0].mxu0
      %v4185 = vadd.f32 0.0, %v4184
      %v4186 = vpop.f32.mrb[0].mxu0
      %4187 = vmatprep.mubr.bf16.mxu0 0
      %4188 = vmatmul.mubr.bf16.gmra.mrb[0].mxu0 %v4064
      %v4189 = vpop.f32.mrb[0].mxu0
      %v4190 = vadd.f32 0.0, %v4189
      %v4191 = vpop.f32.mrb[0].mxu0
      %v4192 = vpop.f32.mrb[0].mxu0
      %v4193 = vadd.f32 0.0, %v4192
      %v4194 = vpop.f32.mrb[0].mxu0
      %4195 = vmatprep.mubr.bf16.mxu0 0
      %4196 = vmatmul.mubr.bf16.gmra.mrb[0].mxu0 %v4067
      %v4197 = vpop.f32.mrb[0].mxu0
      %v4198 = vadd.f32 0.0, %v4197
      %v4199 = vpop.f32.mrb[0].mxu0
      %v4200 = vpop.f32.mrb[0].mxu0
      %v4201 = vadd.f32 0.0, %v4200
      %v4202 = vpop.f32.mrb[0].mxu0
      %4203 = vmatprep.mubr.bf16.mxu0 0
      %4204 = vmatmul.mubr.bf16.gmra.mrb[0].mxu0 %v4070
      %v4205 = vpop.f32.mrb[0].mxu0
      %v4206 = vadd.f32 0.0, %v4205
      %v4207 = vpop.f32.mrb[0].mxu0
      %v4208 = vpop.f32.mrb[0].mxu0
      %v4209 = vadd.f32 0.0, %v4208
      %v4210 = vpop.f32.mrb[0].mxu0
      %4211 = vmatprep.mubr.bf16.mxu0 0
      %4212 = vmatmul.mubr.bf16.gmra.mrb[0].mxu0 %v4073
      %v4213 = vpop.f32.mrb[0].mxu0
      %v4214 = vadd.f32 0.0, %v4213
      %v4215 = vpop.f32.mrb[0].mxu0
      %v4216 = vpop.f32.mrb[0].mxu0
      %v4217 = vadd.f32 0.0, %v4216
      %v4218 = vpop.f32.mrb[0].mxu0
      %4219 = vmatprep.mubr.bf16.mxu0 0
      %4220 = vmatmul.mubr.bf16.gmra.mrb[0].mxu0 %v4076
      %v4221 = vpop.f32.mrb[0].mxu0
      %v4222 = vadd.f32 0.0, %v4221
      %v4223 = vpop.f32.mrb[0].mxu0
      %v4224 = vpop.f32.mrb[0].mxu0
      %v4225 = vadd.f32 0.0, %v4224
      %v4226 = vpop.f32.mrb[0].mxu0
      %4227 = vmatprep.mubr.bf16.mxu0 0
      %4228 = vmatmul.mubr.bf16.gmra.mrb[0].mxu0 %v4079
      %v4229 = vpop.f32.mrb[0].mxu0
      %v4230 = vadd.f32 0.0, %v4229
      %v4231 = vpop.f32.mrb[0].mxu0
      %v4232 = vpop.f32.mrb[0].mxu0
      %v4233 = vadd.f32 0.0, %v4232
      %v4234 = vpop.f32.mrb[0].mxu0
      %4235 = vmatprep.mubr.bf16.mxu0 0
      %4236 = vmatmul.mubr.bf16.gmra.mrb[0].mxu0 %v4082
      %v4237 = vpop.f32.mrb[0].mxu0
      %v4238 = vadd.f32 0.0, %v4237
      %v4239 = vpop.f32.mrb[0].mxu0
      %v4240 = vpop.f32.mrb[0].mxu0
      %v4241 = vadd.f32 0.0, %v4240
      %v4242 = vpop.f32.mrb[0].mxu0
      %4243 = vmatprep.mubr.bf16.mxu0 0
      %4244 = vmatmul.mubr.bf16.gmra.mrb[0].mxu0 %v4085
      %v4245 = vpop.f32.mrb[0].mxu0
      %v4246 = vadd.f32 0.0, %v4245
      %v4247 = vpop.f32.mrb[0].mxu0
      %v4248 = vpop.f32.mrb[0].mxu0
      %v4249 = vadd.f32 0.0, %v4248
      %v4250 = vpop.f32.mrb[0].mxu0
      %4251 = vmatprep.mubr.bf16.mxu0 0
      %4252 = vmatmul.mubr.bf16.gmra.mrb[0].mxu0 %v4088
      %v4253 = vpop.f32.mrb[0].mxu0
      %v4254 = vadd.f32 0.0, %v4253
      %v4255 = vpop.f32.mrb[0].mxu0
      %v4256 = vpop.f32.mrb[0].mxu0
      %v4257 = vadd.f32 0.0, %v4256
      %v4258 = vpop.f32.mrb[0].mxu0
      %4259 = vmatprep.mubr.bf16.mxu0 0
      %4260 = vmatmul.mubr.bf16.gmra.mrb[0].mxu0 %v4091
      %v4261 = vpop.f32.mrb[0].mxu0
      %v4262 = vadd.f32 0.0, %v4261
      %v4263 = vpop.f32.mrb[0].mxu0
      %v4264 = vpop.f32.mrb[0].mxu0
      %v4265 = vadd.f32 0.0, %v4264
      %v4266 = vpop.f32.mrb[0].mxu0
      %4267 = vmatprep.mubr.bf16.mxu0 0
      %4268 = vmatmul.mubr.bf16.gmra.mrb[0].mxu0 %v4094
      %v4269 = vpop.f32.mrb[0].mxu0
      %v4270 = vadd.f32 0.0, %v4269
      %v4271 = vpop.f32.mrb[0].mxu0
      %v4272 = vpop.f32.mrb[0].mxu0
      %v4273 = vadd.f32 0.0, %v4272
      %v4274 = vpop.f32.mrb[0].mxu0
      %4275 = vdwg.mxu0
      %v4276 = vld [vmem:[%s9] sm:$0x1]
      %v4278 = vlaneseq
      %v4279 = vshrl.u32 %v4278, 7
      %v4280 = vsub.s32 0, %v4279
      %v4281 = vrot.slane %v4276, %v4280
      %v4283 = vmul.f32 %v4134, %v4281
      %v4284 = vmul.f32 %v4137, %v4281
      %v4285 = vmul.f32 %v4142, %v4281
      %v4286 = vmul.f32 %v4145, %v4281
      %v4287 = vmul.f32 %v4150, %v4281
      %v4288 = vmul.f32 %v4153, %v4281
      %v4289 = vmul.f32 %v4158, %v4281
      %v4290 = vmul.f32 %v4161, %v4281
      %v4291 = vmul.f32 %v4166, %v4281
      %v4292 = vmul.f32 %v4169, %v4281
      %v4293 = vmul.f32 %v4174, %v4281
      %v4294 = vmul.f32 %v4177, %v4281
      %v4295 = vmul.f32 %v4182, %v4281
      %v4296 = vmul.f32 %v4185, %v4281
      %v4297 = vmul.f32 %v4190, %v4281
      %v4298 = vmul.f32 %v4193, %v4281
      %v4299 = vmul.f32 %v4198, %v4281
      %v4300 = vmul.f32 %v4201, %v4281
      %v4301 = vmul.f32 %v4206, %v4281
      %v4302 = vmul.f32 %v4209, %v4281
      %v4303 = vmul.f32 %v4214, %v4281
      %v4304 = vmul.f32 %v4217, %v4281
      %v4305 = vmul.f32 %v4222, %v4281
      %v4306 = vmul.f32 %v4225, %v4281
      %v4307 = vmul.f32 %v4230, %v4281
      %v4308 = vmul.f32 %v4233, %v4281
      %v4309 = vmul.f32 %v4238, %v4281
      %v4310 = vmul.f32 %v4241, %v4281
      %v4311 = vmul.f32 %v4246, %v4281
      %v4312 = vmul.f32 %v4249, %v4281
      %v4313 = vmul.f32 %v4254, %v4281
      %v4314 = vmul.f32 %v4257, %v4281
      %v4315 = vmul.f32 %v4262, %v4281
      %v4316 = vmul.f32 %v4265, %v4281
      %v4317 = vmul.f32 %v4270, %v4281
      %v4318 = vmul.f32 %v4273, %v4281
      %v4319 = vld [vmem:[%s10] sm:$0x1]
      %v4321 = vlaneseq
      %v4322 = vshrl.u32 %v4321, 7
      %v4323 = vsub.s32 0, %v4322
      %v4324 = vrot.slane %v4319, %v4323
      %v4326 = vadd.f32 %v4283, %v4324
      %v4327 = vadd.f32 %v4284, %v4324
      %v4328 = vadd.f32 %v4285, %v4324
      %v4329 = vadd.f32 %v4286, %v4324
      %v4330 = vadd.f32 %v4287, %v4324
      %v4331 = vadd.f32 %v4288, %v4324
      %v4332 = vadd.f32 %v4289, %v4324
      %v4333 = vadd.f32 %v4290, %v4324
      %v4334 = vadd.f32 %v4291, %v4324
      %v4335 = vadd.f32 %v4292, %v4324
      %v4336 = vadd.f32 %v4293, %v4324
      %v4337 = vadd.f32 %v4294, %v4324
      %v4338 = vadd.f32 %v4295, %v4324
      %v4339 = vadd.f32 %v4296, %v4324
      %v4340 = vadd.f32 %v4297, %v4324
      %v4341 = vadd.f32 %v4298, %v4324
      %v4342 = vadd.f32 %v4299, %v4324
      %v4343 = vadd.f32 %v4300, %v4324
      %v4344 = vadd.f32 %v4301, %v4324
      %v4345 = vadd.f32 %v4302, %v4324
      %v4346 = vadd.f32 %v4303, %v4324
      %v4347 = vadd.f32 %v4304, %v4324
      %v4348 = vadd.f32 %v4305, %v4324
      %v4349 = vadd.f32 %v4306, %v4324
      %v4350 = vadd.f32 %v4307, %v4324
      %v4351 = vadd.f32 %v4308, %v4324
      %v4352 = vadd.f32 %v4309, %v4324
      %v4353 = vadd.f32 %v4310, %v4324
      %v4354 = vadd.f32 %v4311, %v4324
      %v4355 = vadd.f32 %v4312, %v4324
      %v4356 = vadd.f32 %v4313, %v4324
      %v4357 = vadd.f32 %v4314, %v4324
      %v4358 = vadd.f32 %v4315, %v4324
      %v4359 = vadd.f32 %v4316, %v4324
      %v4360 = vadd.f32 %v4317, %v4324
      %v4361 = vadd.f32 %v4318, %v4324
      %vm4399 = vcmask 1044480
      %v4400 = vrot.slane %v393, 3
      %v4401 = vrot.slane %v394, 3
      %v4402 = vsel %vm4399, %v4400, %v4401
      %v4403 = vrot.slane %v395, 3
      %v4404 = vsel %vm4399, %v4401, %v4403
      %v4405 = vrot.slane %v396, 3
      %v4406 = vsel %vm4399, %v4403, %v4405
      %v4407 = vrot.slane %v397, 3
      %v4408 = vsel %vm4399, %v4405, %v4407
      %v4409 = vrot.slane %v398, 3
      %v4410 = vsel %vm4399, %v4407, %v4409
      %v4411 = vrot.slane %v399, 3
      %v4412 = vsel %vm4399, %v4409, %v4411
      %v4413 = vrot.slane %v400, 3
      %v4414 = vsel %vm4399, %v4411, %v4413
      %v4415 = vrot.slane %v401, 3
      %v4416 = vsel %vm4399, %v4413, %v4415
      %v4417 = vrot.slane %v402, 3
      %v4418 = vsel %vm4399, %v4415, %v4417
      %v4419 = vrot.slane %v403, 3
      %v4420 = vsel %vm4399, %v4417, %v4419
      %v4421 = vrot.slane %v404, 3
      %v4422 = vsel %vm4399, %v4419, %v4421
      %v4423 = vrot.slane %v405, 3
      %v4424 = vsel %vm4399, %v4421, %v4423
      %v4425 = vrot.slane %v406, 3
      %v4426 = vsel %vm4399, %v4423, %v4425
      %v4427 = vrot.slane %v407, 3
      %v4428 = vsel %vm4399, %v4425, %v4427
      %v4429 = vrot.slane %v408, 3
      %v4430 = vsel %vm4399, %v4427, %v4429
      %v4431 = vrot.slane %v409, 3
      %v4432 = vsel %vm4399, %v4429, %v4431
      %v4433 = vrot.slane %v410, 3
      %v4434 = vsel %vm4399, %v4431, %v4433
      %v4435 = vrot.slane %v411, 3
      %v4436 = vsel %vm4399, %v4433, %v4435
      %v4437 = vrot.slane %v412, 3
      %v4438 = vsel %vm4399, %v4435, %v4437
      %v4439 = vrot.slane %v413, 3
      %v4440 = vsel %vm4399, %v4437, %v4439
      %v4441 = vrot.slane %v414, 3
      %v4442 = vsel %vm4399, %v4439, %v4441
      %v4443 = vrot.slane %v415, 3
      %v4444 = vsel %vm4399, %v4441, %v4443
      %v4445 = vrot.slane %v416, 3
      %v4446 = vsel %vm4399, %v4443, %v4445
      %v4447 = vrot.slane %v417, 3
      %v4448 = vsel %vm4399, %v4445, %v4447
      %v4449 = vrot.slane %v418, 3
      %v4450 = vsel %vm4399, %v4447, %v4449
      %v4451 = vrot.slane %v419, 3
      %v4452 = vsel %vm4399, %v4449, %v4451
      %v4453 = vrot.slane %v420, 3
      %v4454 = vsel %vm4399, %v4451, %v4453
      %v4455 = vrot.slane %v421, 3
      %v4456 = vsel %vm4399, %v4453, %v4455
      %v4457 = vrot.slane %v422, 3
      %v4458 = vsel %vm4399, %v4455, %v4457
      %v4459 = vrot.slane %v423, 3
      %v4460 = vsel %vm4399, %v4457, %v4459
      %v4461 = vrot.slane %v424, 3
      %v4462 = vsel %vm4399, %v4459, %v4461
      %v4463 = vrot.slane %v425, 3
      %v4464 = vsel %vm4399, %v4461, %v4463
      %v4465 = vrot.slane %v426, 3
      %v4466 = vsel %vm4399, %v4463, %v4465
      %v4467 = vrot.slane %v427, 3
      %v4468 = vsel %vm4399, %v4465, %v4467
      %v4469 = vrot.slane %v428, 3
      %v4470 = vsel %vm4399, %v4467, %v4469
      %v4471 = vrot.slane %v429, 3
      %v4472 = vsel %vm4399, %v4469, %v4471
      %v4509 = vadd.f32 %v4326, %v4402
      %v4510 = vadd.f32 %v4327, %v4404
      %v4511 = vadd.f32 %v4328, %v4406
      %v4512 = vadd.f32 %v4329, %v4408
      %v4513 = vadd.f32 %v4330, %v4410
      %v4514 = vadd.f32 %v4331, %v4412
      %v4515 = vadd.f32 %v4332, %v4414
      %v4516 = vadd.f32 %v4333, %v4416
      %v4517 = vadd.f32 %v4334, %v4418
      %v4518 = vadd.f32 %v4335, %v4420
      %v4519 = vadd.f32 %v4336, %v4422
      %v4520 = vadd.f32 %v4337, %v4424
      %v4521 = vadd.f32 %v4338, %v4426
      %v4522 = vadd.f32 %v4339, %v4428
      %v4523 = vadd.f32 %v4340, %v4430
      %v4524 = vadd.f32 %v4341, %v4432
      %v4525 = vadd.f32 %v4342, %v4434
      %v4526 = vadd.f32 %v4343, %v4436
      %v4527 = vadd.f32 %v4344, %v4438
      %v4528 = vadd.f32 %v4345, %v4440
      %v4529 = vadd.f32 %v4346, %v4442
      %v4530 = vadd.f32 %v4347, %v4444
      %v4531 = vadd.f32 %v4348, %v4446
      %v4532 = vadd.f32 %v4349, %v4448
      %v4533 = vadd.f32 %v4350, %v4450
      %v4534 = vadd.f32 %v4351, %v4452
      %v4535 = vadd.f32 %v4352, %v4454
      %v4536 = vadd.f32 %v4353, %v4456
      %v4537 = vadd.f32 %v4354, %v4458
      %v4538 = vadd.f32 %v4355, %v4460
      %v4539 = vadd.f32 %v4356, %v4462
      %v4540 = vadd.f32 %v4357, %v4464
      %v4541 = vadd.f32 %v4358, %v4466
      %v4542 = vadd.f32 %v4359, %v4468
      %v4543 = vadd.f32 %v4360, %v4470
      %v4544 = vadd.f32 %v4361, %v4472
      %v4545 = vmax.f32 %v4509, 0.0
      %v4546 = vmax.f32 %v4510, 0.0
      %v4547 = vmax.f32 %v4511, 0.0
      %v4548 = vmax.f32 %v4512, 0.0
      %v4549 = vmax.f32 %v4513, 0.0
      %v4550 = vmax.f32 %v4514, 0.0
      %v4551 = vmax.f32 %v4515, 0.0
      %v4552 = vmax.f32 %v4516, 0.0
      %v4553 = vmax.f32 %v4517, 0.0
      %v4554 = vmax.f32 %v4518, 0.0
      %v4555 = vmax.f32 %v4519, 0.0
      %v4556 = vmax.f32 %v4520, 0.0
      %v4557 = vmax.f32 %v4521, 0.0
      %v4558 = vmax.f32 %v4522, 0.0
      %v4559 = vmax.f32 %v4523, 0.0
      %v4560 = vmax.f32 %v4524, 0.0
      %v4561 = vmax.f32 %v4525, 0.0
      %v4562 = vmax.f32 %v4526, 0.0
      %v4563 = vmax.f32 %v4527, 0.0
      %v4564 = vmax.f32 %v4528, 0.0
      %v4565 = vmax.f32 %v4529, 0.0
      %v4566 = vmax.f32 %v4530, 0.0
      %v4567 = vmax.f32 %v4531, 0.0
      %v4568 = vmax.f32 %v4532, 0.0
      %v4569 = vmax.f32 %v4533, 0.0
      %v4570 = vmax.f32 %v4534, 0.0
      %v4571 = vmax.f32 %v4535, 0.0
      %v4572 = vmax.f32 %v4536, 0.0
      %v4573 = vmax.f32 %v4537, 0.0
      %v4574 = vmax.f32 %v4538, 0.0
      %v4575 = vmax.f32 %v4539, 0.0
      %v4576 = vmax.f32 %v4540, 0.0
      %v4577 = vmax.f32 %v4541, 0.0
      %v4578 = vmax.f32 %v4542, 0.0
      %v4579 = vmax.f32 %v4543, 0.0
      %v4580 = vmax.f32 %v4544, 0.0
      %4581 = vst.msk [vmem:[%s388] sm:$0xff] %vm461, %v4545
      %4582 = vst.msk [vmem:[%s388 + $0x8] sm:$0xff] %vm461, %v4546
      %4583 = vst.msk [vmem:[%s388 + $0x10] sm:$0xff] %vm461, %v4547
      %4584 = vst.msk [vmem:[%s388 + $0x18] sm:$0xff] %vm461, %v4548
      %4585 = vst.msk [vmem:[%s388 + $0x20] sm:$0xff] %vm461, %v4549
      %4586 = vst.msk [vmem:[%s388 + $0x28] sm:$0xff] %vm461, %v4550
      %4587 = vst.msk [vmem:[%s388 + $0x30] sm:$0xff] %vm461, %v4551
      %4588 = vst.msk [vmem:[%s388 + $0x38] sm:$0xff] %vm461, %v4552
      %4589 = vst.msk [vmem:[%s388 + $0x40] sm:$0xff] %vm461, %v4553
      %4590 = vst.msk [vmem:[%s388 + $0x48] sm:$0xff] %vm461, %v4554
      %4591 = vst.msk [vmem:[%s388 + $0x50] sm:$0xff] %vm461, %v4555
      %4592 = vst.msk [vmem:[%s388 + $0x58] sm:$0xff] %vm461, %v4556
      %4593 = vst.msk [vmem:[%s388 + $0x60] sm:$0xff] %vm461, %v4557
      %4594 = vst.msk [vmem:[%s388 + $0x68] sm:$0xff] %vm461, %v4558
      %4595 = vst.msk [vmem:[%s388 + $0x70] sm:$0xff] %vm461, %v4559
      %4596 = vst.msk [vmem:[%s388 + $0x78] sm:$0xff] %vm461, %v4560
      %4597 = vst.msk [vmem:[%s388 + $0x80] sm:$0xff] %vm461, %v4561
      %4598 = vst.msk [vmem:[%s388 + $0x88] sm:$0xff] %vm461, %v4562
      %4599 = vst.msk [vmem:[%s388 + $0x90] sm:$0xff] %vm461, %v4563
      %4600 = vst.msk [vmem:[%s388 + $0x98] sm:$0xff] %vm461, %v4564
      %4601 = vst.msk [vmem:[%s388 + $0xa0] sm:$0xff] %vm461, %v4565
      %4602 = vst.msk [vmem:[%s388 + $0xa8] sm:$0xff] %vm461, %v4566
      %4603 = vst.msk [vmem:[%s388 + $0xb0] sm:$0xff] %vm461, %v4567
      %4604 = vst.msk [vmem:[%s388 + $0xb8] sm:$0xff] %vm461, %v4568
      %4605 = vst.msk [vmem:[%s388 + $0xc0] sm:$0xff] %vm461, %v4569
      %4606 = vst.msk [vmem:[%s388 + $0xc8] sm:$0xff] %vm461, %v4570
      %4607 = vst.msk [vmem:[%s388 + $0xd0] sm:$0xff] %vm461, %v4571
      %4608 = vst.msk [vmem:[%s388 + $0xd8] sm:$0xff] %vm461, %v4572
      %4609 = vst.msk [vmem:[%s388 + $0xe0] sm:$0xff] %vm461, %v4573
      %4610 = vst.msk [vmem:[%s388 + $0xe8] sm:$0xff] %vm461, %v4574
      %4611 = vst.msk [vmem:[%s388 + $0xf0] sm:$0xff] %vm461, %v4575
      %4612 = vst.msk [vmem:[%s388 + $0xf8] sm:$0xff] %vm461, %v4576
      %4613 = vst.msk [vmem:[%s388 + $0x100] sm:$0xff] %vm461, %v4577
      %4614 = vst.msk [vmem:[%s388 + $0x108] sm:$0xff] %vm461, %v4578
      %4615 = vst.msk [vmem:[%s388 + $0x110] sm:$0xff] %vm461, %v4579
      %4616 = vst.msk [vmem:[%s388 + $0x118] sm:$0xff] %vm461, %v4580
      %s4617 = smul.u32 36, %s22
      %p4618 = scmp.lt.s32.totalorder %s4617, 71
      %s4619 = scalar_select %p4618, %s4617, 71
      %s4620 = smul.addr %s4619, 8
      %s4621 = scalar_lea.vmem %s11, %s4620
      // Predicated region
      $region65: #{tpu_custom_call.1} parent=63 // pred_check
        %p4622 = pneg %p276
      $region66: #{tpu_custom_call.1} parent=63 // pred_check_branch
        %4624 = sbr.rel (%p4622) target = $region68
      $region67: #{tpu_custom_call.1} parent=63 // pred_region
        %s4625 = smul.u32 36, %s22
      $region68: #{tpu_custom_call.1} parent=63 // pred_fallthru
        _
    $region64: #{tpu_custom_call.1} parent=5 // pred_fallthru
      _
    %p4626 = scmp.le.s32.totalorder 2, %s17
    // Predicated region
    $region69: #{tpu_custom_call.1} parent=5 // pred_check
      %p4627 = pneg %p4626
    $region70: #{tpu_custom_call.1} parent=5 // pred_check_branch
      %4629 = sbr.rel (%p4627) target = $region72
    $region71: #{tpu_custom_call.1} parent=5 // pred_region
      %s4630 = ssub.s32 %s17, 2
      // Predicated region
      $region73: #{tpu_custom_call.1} parent=71 // pred_check
        %p4631 = pneg %p282
      $region74: #{tpu_custom_call.1} parent=71 // pred_check_branch
        %4633 = sbr.rel (%p4631) target = $region76
      $region75: #{tpu_custom_call.1} parent=71 // pred_region
        %s4634 = smul.u32 36, %s23
        %p4635 = scmp.lt.s32.totalorder %s4634, 71
        %s4636 = scalar_select %p4635, %s4634, 71
        %s4637 = smul.addr %s4636, 8
        %s4638 = scalar_lea.vmem %s11, %s4637
      $region76: #{tpu_custom_call.1} parent=71 // pred_fallthru
        _
    $region72: #{tpu_custom_call.1} parent=5 // pred_fallthru
      _
  $region6: #{tpu_custom_call.1} parent=0 // loop_footer
    %s21 = sadd.s32 1, %s17
  $region7: #{tpu_custom_call.1} parent=0 // loop_footer_branch
    %16 = sbr.rel target = $region3
  $region8: #{tpu_custom_call.1} parent=0 // loop_exit
    _

</llo_original>
